<compile_context>
chip_gen: v5e
topology: v5e:2x2
jax: 0.10.0
libtpu: 0.0.40
codegen_flags: <defaults>
</compile_context>

<pallas_src>
import jax
import jax.numpy as jnp
from jax.experimental import pallas as pl
from jax.experimental.pallas import tpu as pltpu

_NEG = -1e30  # bias for padded logit columns (masked out of the f32 log-softmax)


# ---------------------------------------------------------------------------
# Fused Pallas kernel: one image per grid step, everything VMEM-resident.
# ---------------------------------------------------------------------------

def _log_softmax(z):
    m = jnp.max(z, axis=-1, keepdims=True)
    return z - (m + jnp.log(jnp.sum(jnp.exp(z - m), axis=-1, keepdims=True)))


def fused_dann_kernel(p1_ref, w1_ref, b1_ref, w2_ref, b2_ref,
                      hw1_ref, hb1_ref, cw2_ref, cb2_ref, cw3_ref, cb3_ref,
                      dw2_ref, db2_ref, c_out_ref, d_out_ref, xs_ref):
    """Whole DANN forward for one image.

    p1_ref : (1, 576, 32) bf16  conv1 im2col patches; rows ordered
                                (pool_pos = py*2+px, i, j) so 4 aligned 144-row
                                slabs of the GEMM output max-reduce into the
                                2x2-pooled activation; cols = 25 taps padded to 32.
    w1_ref : (32, 64)   bf16    conv1 weight (channel-expand + BN scale folded).
    b1_ref : (1, 64)    f32     conv1 bias + BN shift.
    w2_ref : (1600, 64) bf16    conv2 weight, tap-major: rows [t*64:(t+1)*64] =
                                W2[dy,dx] as (Cin=64, Cout 50->64), BN folded.
    b2_ref : (1, 64)    f32     conv2 bias + BN shift (Cout padded to 64).
    hw1_ref: (1024, 256) bf16   [class_fc1 | domain_fc1], rows in (i, j, c64) order.
    hb1_ref: (1, 256)   f32
    cw2/cb2, cw3/cb3, dw2/db2:  128-lane padded head layers (BN folded).
    c_out_ref, d_out_ref: (1, 1, 128) f32 log-softmax outputs (real cols [:2]).
    xs_ref : (160, 64) bf16 scratch — zero-padded conv1 pooled output (12x12x64,
                                row-major r = h*12 + w).
    """
    f32, bf16 = jnp.float32, jnp.bfloat16

    # ---- conv1 (+BN) as one GEMM over all 4 pool positions, then pool + ReLU ----
    y = jnp.dot(p1_ref[0], w1_ref[...], preferred_element_type=f32)       # (576, 64)
    y = jnp.maximum(jnp.maximum(y[0:144], y[144:288]),
                    jnp.maximum(y[288:432], y[432:576]))                   # (144, 64)
    x2 = jnp.maximum(y + b1_ref[...], 0.0).astype(bf16)                    # (12,12,64)

    # Stage into a zero-padded scratch so the 25 shifted-window reads stay in bounds.
    xs_ref[0:144, :] = x2
    xs_ref[144:160, :] = jnp.zeros((16, 64), bf16)
    xs = xs_ref[...]                                                       # (160, 64)

    # ---- conv2 (+BN) via 25 shifted-slab GEMMs (in-VMEM tap accumulation) ----
    # acc[r] with r = oh*12 + ow (oh, ow < 8 valid) = conv2 output (pre-bias).
    acc = jnp.zeros((96, 64), f32)
    for dy in range(5):
        for dx in range(5):
            t = dy * 5 + dx
            s = dy * 12 + dx
            acc = acc + jnp.dot(xs[s:s + 96, :],
                                w2_ref[t * 64:(t + 1) * 64, :],
                                preferred_element_type=f32)

    # ---- fused 2x2 max-pool + bias + ReLU (row-offset maxima, no gathers) ----
    hmax = jnp.maximum(acc[0:95], acc[1:96])        # horizontal pair max
    vmax = jnp.maximum(hmax[0:83], hmax[12:95])     # vertical pair max
    # pooled feature (i, j, :) lives at vmax row 24*i + 2*j
    feat = jnp.maximum(vmax + b2_ref[...], 0.0).astype(bf16)               # (83, 64)

    # ---- fused class+domain fc1: contract the (4,4,64) feature with [cw1|dw1] ----
    h1 = hb1_ref[...]                                                      # (1, 256)
    for i in range(4):
        for j in range(4):
            r = 24 * i + 2 * j
            rho = i * 4 + j
            h1 = h1 + jnp.dot(feat[r:r + 1, :],
                              hw1_ref[rho * 64:(rho + 1) * 64, :],
                              preferred_element_type=f32)

    # ---- class head: bn(folded) -> relu -> fc2+bn -> relu -> fc3 -> log_softmax ----
    hc = jnp.maximum(h1[:, 0:128], 0.0).astype(bf16)
    zc = jnp.dot(hc, cw2_ref[...], preferred_element_type=f32) + cb2_ref[...]
    zc = jnp.maximum(zc, 0.0).astype(bf16)
    zc = jnp.dot(zc, cw3_ref[...], preferred_element_type=f32) + cb3_ref[...]
    c_out_ref[0] = _log_softmax(zc)

    # ---- domain head (ReverseLayerF fwd = identity): relu -> fc2 -> log_softmax ----
    hd = jnp.maximum(h1[:, 128:256], 0.0).astype(bf16)
    zd = jnp.dot(hd, dw2_ref[...], preferred_element_type=f32) + db2_ref[...]
    d_out_ref[0] = _log_softmax(zd)


def fused_forward(p1, q):
    B = p1.shape[0]

    def const2d(shape):
        return pl.BlockSpec(shape, lambda b: (0, 0))

    flops_per_img = (2 * 576 * 32 * 64 + 25 * 2 * 96 * 64 * 64
                     + 16 * 2 * 64 * 256 + 3 * 2 * 128 * 128)
    weight_bytes = (32 * 64 + 1600 * 64 + 1024 * 256 + 3 * 128 * 128) * 2 + 3072
    return pl.pallas_call(
        fused_dann_kernel,
        out_shape=(jax.ShapeDtypeStruct((B, 1, 128), jnp.float32),
                   jax.ShapeDtypeStruct((B, 1, 128), jnp.float32)),
        grid=(B,),
        in_specs=[
            pl.BlockSpec((1, 576, 32), lambda b: (b, 0, 0)),
            const2d((32, 64)), const2d((1, 64)),
            const2d((1600, 64)), const2d((1, 64)),
            const2d((1024, 256)), const2d((1, 256)),
            const2d((128, 128)), const2d((1, 128)),
            const2d((128, 128)), const2d((1, 128)),
            const2d((128, 128)), const2d((1, 128)),
        ],
        out_specs=(pl.BlockSpec((1, 1, 128), lambda b: (b, 0, 0)),
                   pl.BlockSpec((1, 1, 128), lambda b: (b, 0, 0))),
        scratch_shapes=[pltpu.VMEM((160, 64), jnp.bfloat16)],
        compiler_params=pltpu.CompilerParams(dimension_semantics=("parallel",)),
        cost_estimate=pl.CostEstimate(
            flops=B * flops_per_img, transcendentals=B * 256,
            bytes_accessed=weight_bytes + B * (576 * 32 * 2 + 2 * 128 * 4)),
    )(p1, q["w1"], q["b1"], q["w2"], q["b2"],
      q["hw1"], q["hb1"], q["cw2"], q["cb2"], q["cw3"], q["cb3"],
      q["dw2"], q["db2"])


# ---------------------------------------------------------------------------
# Glue: pool-ordered im2col (conv1 only), BN folding, parameter preparation
# ---------------------------------------------------------------------------

def im2col_conv1_pooled(x):
    """x: (B, 28, 28) single-channel input -> (B, 576, 32) bf16 conv1 patches.

    Per image, rows are ordered (pool_pos = py*2+px, pooled_row i, pooled_col j)
    so the kernel max-reduces 4 aligned 144-row GEMM slabs into the 2x2-pooled
    activation; columns are the 25 conv taps (dy*5+dx), padded to 32 lanes."""
    B = x.shape[0]
    taps = [x[:, dy:dy + 24, dx:dx + 24] for dy in range(5) for dx in range(5)]
    p = jnp.stack(taps, axis=-1)                     # (B, 24, 24, 25)
    p = p.reshape(B, 12, 2, 12, 2, 25)               # (B, i, py, j, px, t)
    p = p.transpose(0, 2, 4, 1, 3, 5)                # (B, py, px, i, j, t)
    p = p.reshape(B, 576, 25)
    return jnp.pad(p, ((0, 0), (0, 0), (0, 7))).astype(jnp.bfloat16)


def bn_scale_shift(gamma, beta, mean, var, eps=1e-5):
    scale = gamma / jnp.sqrt(var + eps)
    return scale, beta - mean * scale


def _fc1_to_feature_layout(w):
    """(100, 800) with columns in NCHW (c=50,h=4,w=4) order -> (1024, 100) rows in
    (h, w, c_pad64) order matching the kernel's pooled-feature traversal."""
    w = w.reshape(100, 50, 4, 4).transpose(0, 2, 3, 1)        # (n, h, w, c)
    w = jnp.pad(w, ((0, 0), (0, 0), (0, 0), (0, 14)))         # c 50 -> 64
    return w.reshape(100, 1024).T


def prepare_params(p):
    """Fold BN (+ channel expand), permute/pad to lane-friendly shapes, cast to bf16."""
    f32, bf16 = jnp.float32, jnp.bfloat16
    q = {}

    # conv1: fold 1->3 channel expand (sum over Cin) and eval-BN scale; taps -> rows.
    s1, t1 = bn_scale_shift(*p["bn1"])
    w1 = p["conv1_w"].sum(axis=1).transpose(1, 2, 0).reshape(25, 64) * s1[None, :]
    q["w1"] = jnp.pad(w1, ((0, 7), (0, 0))).astype(bf16)                   # (32, 64)
    q["b1"] = (p["conv1_b"] * s1 + t1).reshape(1, 64).astype(f32)

    # conv2: per-tap (Cin=64, Cout 50->64) blocks stacked tap-major -> (1600, 64).
    s2, t2 = bn_scale_shift(*p["bn2"])
    w2 = (p["conv2_w"] * s2[:, None, None, None]).transpose(2, 3, 1, 0).reshape(1600, 50)
    q["w2"] = jnp.pad(w2, ((0, 0), (0, 14))).astype(bf16)
    q["b2"] = jnp.pad(p["conv2_b"] * s2 + t2, (0, 14)).reshape(1, 64).astype(f32)

    # fused first FC layer of both heads: [class | domain] -> (1024, 256).
    sc1, tc1 = bn_scale_shift(*p["c_bn1"])
    sd1, td1 = bn_scale_shift(*p["d_bn1"])
    cw1 = _fc1_to_feature_layout(p["c_fc1_w"]) * sc1[None, :]
    dw1 = _fc1_to_feature_layout(p["d_fc1_w"]) * sd1[None, :]
    cb1 = p["c_fc1_b"] * sc1 + tc1
    db1 = p["d_fc1_b"] * sd1 + td1
    q["hw1"] = jnp.concatenate(
        [jnp.pad(cw1, ((0, 0), (0, 28))), jnp.pad(dw1, ((0, 0), (0, 28)))],
        axis=1).astype(bf16)                                               # (1024, 256)
    q["hb1"] = jnp.concatenate(
        [jnp.pad(cb1, (0, 28)), jnp.pad(db1, (0, 28))]).reshape(1, 256).astype(f32)

    # class fc2 (+bn) and fc3 (2 logits -> 128 lanes, padded bias -1e30).
    sc2, tc2 = bn_scale_shift(*p["c_bn2"])
    q["cw2"] = jnp.pad(p["c_fc2_w"].T * sc2[None, :], ((0, 28), (0, 28))).astype(bf16)
    q["cb2"] = jnp.pad(p["c_fc2_b"] * sc2 + tc2, (0, 28)).reshape(1, 128).astype(f32)
    q["cw3"] = jnp.pad(p["c_fc3_w"].T, ((0, 28), (0, 126))).astype(bf16)
    q["cb3"] = jnp.pad(p["c_fc3_b"], (0, 126),
                       constant_values=_NEG).reshape(1, 128).astype(f32)

    # domain fc2.
    q["dw2"] = jnp.pad(p["d_fc2_w"].T, ((0, 28), (0, 126))).astype(bf16)
    q["db2"] = jnp.pad(p["d_fc2_b"], (0, 126),
                       constant_values=_NEG).reshape(1, 128).astype(f32)
    return q


def init_params(key):
    ks = jax.random.split(key, 24)
    f32 = jnp.float32

    def w_init(k, shape, s=0.05):
        return (s * jax.random.normal(k, shape)).astype(f32)

    def bn_init(k, n):
        k1, k2, k3, k4 = jax.random.split(k, 4)
        gamma = 1.0 + 0.05 * jax.random.normal(k1, (n,))
        beta = 0.05 * jax.random.normal(k2, (n,))
        mean = 0.05 * jax.random.normal(k3, (n,))
        var = 1.0 + 0.1 * jax.random.uniform(k4, (n,))
        return tuple(a.astype(f32) for a in (gamma, beta, mean, var))

    p = {}
    p["conv1_w"] = w_init(ks[0], (64, 3, 5, 5));  p["conv1_b"] = w_init(ks[1], (64,))
    p["bn1"] = bn_init(ks[2], 64)
    p["conv2_w"] = w_init(ks[3], (50, 64, 5, 5)); p["conv2_b"] = w_init(ks[4], (50,))
    p["bn2"] = bn_init(ks[5], 50)
    p["c_fc1_w"] = w_init(ks[6], (100, 800));     p["c_fc1_b"] = w_init(ks[7], (100,))
    p["c_bn1"] = bn_init(ks[8], 100)
    p["c_fc2_w"] = w_init(ks[9], (100, 100));     p["c_fc2_b"] = w_init(ks[10], (100,))
    p["c_bn2"] = bn_init(ks[11], 100)
    p["c_fc3_w"] = w_init(ks[12], (2, 100));      p["c_fc3_b"] = w_init(ks[13], (2,))
    p["d_fc1_w"] = w_init(ks[14], (100, 800));    p["d_fc1_b"] = w_init(ks[15], (100,))
    p["d_bn1"] = bn_init(ks[16], 100)
    p["d_fc2_w"] = w_init(ks[17], (2, 100));      p["d_fc2_b"] = w_init(ks[18], (2,))
    return p


# ---------------------------------------------------------------------------
# Full forward pass (single kernel launch)
# ---------------------------------------------------------------------------

def cnn_forward(input_data, alpha, q):
    # input_data: (B, 1, 28, 28) NCHW; alpha only affects backward (identity fwd).
    del alpha
    B = input_data.shape[0]
    x = input_data.reshape(B, 28, 28).astype(jnp.float32)   # 1->3 expand folded into w1
    p1 = im2col_conv1_pooled(x)                              # (B, 576, 32) bf16
    c_pad, d_pad = fused_forward(p1, q)                      # (B, 1, 128) f32 each
    return c_pad[:, 0, :2], d_pad[:, 0, :2]


# ---------------------------------------------------------------------------
# Pure-JAX f32 reference (PyTorch eval-mode semantics) to guard the fusion math
# ---------------------------------------------------------------------------

def reference_forward(input_data, p):
    B = input_data.shape[0]
    x = jnp.broadcast_to(input_data, (B, 3, 28, 28)).astype(jnp.float32)

    def conv2d(x, w, b):
        y = jax.lax.conv_general_dilated(
            x, w, (1, 1), 'VALID', dimension_numbers=('NCHW', 'OIHW', 'NCHW'))
        return y + b[None, :, None, None]

    def bn4(x, bnp):
        g, be, m, v = bnp
        s = g / jnp.sqrt(v + 1e-5)
        return x * s[None, :, None, None] + (be - m * s)[None, :, None, None]

    def bn1(x, bnp):
        g, be, m, v = bnp
        s = g / jnp.sqrt(v + 1e-5)
        return x * s + (be - m * s)

    def pool2(x):
        b, c, h, w = x.shape
        return x.reshape(b, c, h // 2, 2, w // 2, 2).max(axis=(3, 5))

    h = jax.nn.relu(pool2(bn4(conv2d(x, p["conv1_w"], p["conv1_b"]), p["bn1"])))
    h = jax.nn.relu(pool2(bn4(conv2d(h, p["conv2_w"], p["conv2_b"]), p["bn2"])))
    feat = h.reshape(B, 800)

    c = jax.nn.relu(bn1(feat @ p["c_fc1_w"].T + p["c_fc1_b"], p["c_bn1"]))
    c = jax.nn.relu(bn1(c @ p["c_fc2_w"].T + p["c_fc2_b"], p["c_bn2"]))
    c = jax.nn.log_softmax(c @ p["c_fc3_w"].T + p["c_fc3_b"], axis=1)
    d = jax.nn.relu(bn1(feat @ p["d_fc1_w"].T + p["d_fc1_b"], p["d_bn1"]))
    d = jax.nn.log_softmax(d @ p["d_fc2_w"].T + p["d_fc2_b"], axis=1)
    return c, d


if __name__ == "__main__":
    key = jax.random.PRNGKey(0)
    k_in, k_par = jax.random.split(key)
    params = init_params(k_par)
    q = prepare_params(params)

    B = 2
    input_data = jax.random.normal(k_in, (B, 1, 28, 28), jnp.float32)
    alpha = jnp.float32(0.5)

    fwd = jax.jit(lambda x, a: cnn_forward(x, a, q))
    class_out, domain_out = fwd(input_data, alpha)
    jax.block_until_ready((class_out, domain_out))

    assert class_out.shape == (B, 2) and domain_out.shape == (B, 2)
    assert bool(jnp.all(jnp.isfinite(class_out)))
    assert bool(jnp.all(jnp.isfinite(domain_out)))

    # Correctness guard vs. full-precision reference (bf16 GEMM chain => loose tol).
    ref_c, ref_d = reference_forward(input_data, params)
    assert float(jnp.max(jnp.abs(class_out - ref_c))) < 5e-2
    assert float(jnp.max(jnp.abs(domain_out - ref_d))) < 5e-2

    print("KERNEL_OK")
</pallas_src>

<mosaic_0001>
module attributes {stable_mosaic.version = 11 : i64} {
  func.func @fused_dann_kernel(%arg0: i32, %arg1: memref<1x576x32xbf16, #tpu.memory_space<vmem>>, %arg2: memref<32x64xbf16, #tpu.memory_space<vmem>>, %arg3: memref<1x64xf32, #tpu.memory_space<vmem>>, %arg4: memref<1600x64xbf16, #tpu.memory_space<vmem>>, %arg5: memref<1x64xf32, #tpu.memory_space<vmem>>, %arg6: memref<1024x256xbf16, #tpu.memory_space<vmem>>, %arg7: memref<1x256xf32, #tpu.memory_space<vmem>>, %arg8: memref<128x128xbf16, #tpu.memory_space<vmem>>, %arg9: memref<1x128xf32, #tpu.memory_space<vmem>>, %arg10: memref<128x128xbf16, #tpu.memory_space<vmem>>, %arg11: memref<1x128xf32, #tpu.memory_space<vmem>>, %arg12: memref<128x128xbf16, #tpu.memory_space<vmem>>, %arg13: memref<1x128xf32, #tpu.memory_space<vmem>>, %arg14: memref<1x1x128xf32, #tpu.memory_space<vmem>>, %arg15: memref<1x1x128xf32, #tpu.memory_space<vmem>>, %arg16: memref<160x64xbf16, #tpu.memory_space<vmem>>) attributes {dimension_semantics = [#tpu.dimension_semantics<parallel>], iteration_bounds = array<i64: 2>, scalar_prefetch = 0 : i64, scratch_operands = 1 : i64, tpu.core_type = #tpu.core_type<tc>, window_params = [{transform_indices = @transform_0, window_bounds = array<i64: 1, 576, 32>}, {pipeline_mode = #tpu.pipeline_mode<synchronous>, transform_indices = @transform_1, window_bounds = array<i64: 32, 64>}, {pipeline_mode = #tpu.pipeline_mode<synchronous>, transform_indices = @transform_2, window_bounds = array<i64: 1, 64>}, {pipeline_mode = #tpu.pipeline_mode<synchronous>, transform_indices = @transform_3, window_bounds = array<i64: 1600, 64>}, {pipeline_mode = #tpu.pipeline_mode<synchronous>, transform_indices = @transform_4, window_bounds = array<i64: 1, 64>}, {pipeline_mode = #tpu.pipeline_mode<synchronous>, transform_indices = @transform_5, window_bounds = array<i64: 1024, 256>}, {pipeline_mode = #tpu.pipeline_mode<synchronous>, transform_indices = @transform_6, window_bounds = array<i64: 1, 256>}, {pipeline_mode = #tpu.pipeline_mode<synchronous>, transform_indices = @transform_7, window_bounds = array<i64: 128, 128>}, {pipeline_mode = #tpu.pipeline_mode<synchronous>, transform_indices = @transform_8, window_bounds = array<i64: 1, 128>}, {pipeline_mode = #tpu.pipeline_mode<synchronous>, transform_indices = @transform_9, window_bounds = array<i64: 128, 128>}, {pipeline_mode = #tpu.pipeline_mode<synchronous>, transform_indices = @transform_10, window_bounds = array<i64: 1, 128>}, {pipeline_mode = #tpu.pipeline_mode<synchronous>, transform_indices = @transform_11, window_bounds = array<i64: 128, 128>}, {pipeline_mode = #tpu.pipeline_mode<synchronous>, transform_indices = @transform_12, window_bounds = array<i64: 1, 128>}, {transform_indices = @transform_13, window_bounds = array<i64: 1, 1, 128>}, {transform_indices = @transform_14, window_bounds = array<i64: 1, 1, 128>}]} {
    %c0 = arith.constant 0 : index
    %c0_0 = arith.constant 0 : index
    %c0_1 = arith.constant 0 : index
    %0 = vector.load %arg1[%c0, %c0_0, %c0_1] : memref<1x576x32xbf16, #tpu.memory_space<vmem>>, vector<1x576x32xbf16>
    %1 = vector.shape_cast %0 : vector<1x576x32xbf16> to vector<576x32xbf16>
    %c0_2 = arith.constant 0 : index
    %c0_3 = arith.constant 0 : index
    %2 = vector.load %arg2[%c0_2, %c0_3] : memref<32x64xbf16, #tpu.memory_space<vmem>>, vector<32x64xbf16>
    %cst = arith.constant dense<0.000000e+00> : vector<576x64xf32>
    %3 = tpu.matmul %1, %2, %cst {dimension_numbers = #tpu.dot_dimension_numbers<[1], [0], [0], [1], [0, 0, 1, 1], [], []>} : vector<576x32xbf16>, vector<32x64xbf16>, vector<576x64xf32> -> vector<576x64xf32>
    %4 = vector.extract_strided_slice %3 {offsets = [0, 0], sizes = [144, 64], strides = [1, 1]} : vector<576x64xf32> to vector<144x64xf32>
    %5 = vector.extract_strided_slice %3 {offsets = [144, 0], sizes = [144, 64], strides = [1, 1]} : vector<576x64xf32> to vector<144x64xf32>
    %6 = arith.maximumf %4, %5 : vector<144x64xf32>
    %7 = vector.extract_strided_slice %3 {offsets = [288, 0], sizes = [144, 64], strides = [1, 1]} : vector<576x64xf32> to vector<144x64xf32>
    %8 = vector.extract_strided_slice %3 {offsets = [432, 0], sizes = [144, 64], strides = [1, 1]} : vector<576x64xf32> to vector<144x64xf32>
    %9 = arith.maximumf %7, %8 : vector<144x64xf32>
    %10 = arith.maximumf %6, %9 : vector<144x64xf32>
    %c0_4 = arith.constant 0 : index
    %c0_5 = arith.constant 0 : index
    %11 = vector.load %arg3[%c0_4, %c0_5] : memref<1x64xf32, #tpu.memory_space<vmem>>, vector<1x64xf32>
    %12 = vector.broadcast %11 : vector<1x64xf32> to vector<144x64xf32>
    %13 = arith.addf %10, %12 : vector<144x64xf32>
    %cst_6 = arith.constant 0.000000e+00 : f32
    %14 = vector.broadcast %cst_6 : f32 to vector<144x64xf32>
    %15 = arith.maximumf %13, %14 : vector<144x64xf32>
    %16 = arith.truncf %15 : vector<144x64xf32> to vector<144x64xbf16>
    %c0_7 = arith.constant 0 : index
    %c0_8 = arith.constant 0 : index
    %17 = vector.load %arg16[%c0_7, %c0_8] : memref<160x64xbf16, #tpu.memory_space<vmem>>, vector<144x64xbf16>
    tpu.vector_store %arg16[%c0_7, %c0_8], %16 {strides = array<i32>} : memref<160x64xbf16, #tpu.memory_space<vmem>>, vector<144x64xbf16>,
    %cst_9 = arith.constant 0.000000e+00 : bf16
    %18 = vector.broadcast %cst_9 : bf16 to vector<16x64xbf16>
    %c144 = arith.constant 144 : index
    %c0_10 = arith.constant 0 : index
    %19 = vector.load %arg16[%c144, %c0_10] : memref<160x64xbf16, #tpu.memory_space<vmem>>, vector<16x64xbf16>
    tpu.vector_store %arg16[%c144, %c0_10], %18 {strides = array<i32>} : memref<160x64xbf16, #tpu.memory_space<vmem>>, vector<16x64xbf16>,
    %c0_11 = arith.constant 0 : index
    %c0_12 = arith.constant 0 : index
    %20 = vector.load %arg16[%c0_11, %c0_12] : memref<160x64xbf16, #tpu.memory_space<vmem>>, vector<160x64xbf16>
    %cst_13 = arith.constant 0.000000e+00 : f32
    %21 = vector.broadcast %cst_13 : f32 to vector<96x64xf32>
    %22 = vector.extract_strided_slice %20 {offsets = [0, 0], sizes = [96, 64], strides = [1, 1]} : vector<160x64xbf16> to vector<96x64xbf16>
    %c0_14 = arith.constant 0 : index
    %c0_15 = arith.constant 0 : index
    %23 = vector.load %arg4[%c0_14, %c0_15] : memref<1600x64xbf16, #tpu.memory_space<vmem>>, vector<64x64xbf16>
    %cst_16 = arith.constant dense<0.000000e+00> : vector<96x64xf32>
    %24 = tpu.matmul %22, %23, %cst_16 {dimension_numbers = #tpu.dot_dimension_numbers<[1], [0], [0], [1], [0, 0, 1, 1], [], []>} : vector<96x64xbf16>, vector<64x64xbf16>, vector<96x64xf32> -> vector<96x64xf32>
    %25 = arith.addf %21, %24 : vector<96x64xf32>
    %26 = vector.extract_strided_slice %20 {offsets = [1, 0], sizes = [96, 64], strides = [1, 1]} : vector<160x64xbf16> to vector<96x64xbf16>
    %c64 = arith.constant 64 : index
    %c0_17 = arith.constant 0 : index
    %27 = vector.load %arg4[%c64, %c0_17] : memref<1600x64xbf16, #tpu.memory_space<vmem>>, vector<64x64xbf16>
    %cst_18 = arith.constant dense<0.000000e+00> : vector<96x64xf32>
    %28 = tpu.matmul %26, %27, %cst_18 {dimension_numbers = #tpu.dot_dimension_numbers<[1], [0], [0], [1], [0, 0, 1, 1], [], []>} : vector<96x64xbf16>, vector<64x64xbf16>, vector<96x64xf32> -> vector<96x64xf32>
    %29 = arith.addf %25, %28 : vector<96x64xf32>
    %30 = vector.extract_strided_slice %20 {offsets = [2, 0], sizes = [96, 64], strides = [1, 1]} : vector<160x64xbf16> to vector<96x64xbf16>
    %c128 = arith.constant 128 : index
    %c0_19 = arith.constant 0 : index
    %31 = vector.load %arg4[%c128, %c0_19] : memref<1600x64xbf16, #tpu.memory_space<vmem>>, vector<64x64xbf16>
    %cst_20 = arith.constant dense<0.000000e+00> : vector<96x64xf32>
    %32 = tpu.matmul %30, %31, %cst_20 {dimension_numbers = #tpu.dot_dimension_numbers<[1], [0], [0], [1], [0, 0, 1, 1], [], []>} : vector<96x64xbf16>, vector<64x64xbf16>, vector<96x64xf32> -> vector<96x64xf32>
    %33 = arith.addf %29, %32 : vector<96x64xf32>
    %34 = vector.extract_strided_slice %20 {offsets = [3, 0], sizes = [96, 64], strides = [1, 1]} : vector<160x64xbf16> to vector<96x64xbf16>
    %c192 = arith.constant 192 : index
    %c0_21 = arith.constant 0 : index
    %35 = vector.load %arg4[%c192, %c0_21] : memref<1600x64xbf16, #tpu.memory_space<vmem>>, vector<64x64xbf16>
    %cst_22 = arith.constant dense<0.000000e+00> : vector<96x64xf32>
    %36 = tpu.matmul %34, %35, %cst_22 {dimension_numbers = #tpu.dot_dimension_numbers<[1], [0], [0], [1], [0, 0, 1, 1], [], []>} : vector<96x64xbf16>, vector<64x64xbf16>, vector<96x64xf32> -> vector<96x64xf32>
    %37 = arith.addf %33, %36 : vector<96x64xf32>
    %38 = vector.extract_strided_slice %20 {offsets = [4, 0], sizes = [96, 64], strides = [1, 1]} : vector<160x64xbf16> to vector<96x64xbf16>
    %c256 = arith.constant 256 : index
    %c0_23 = arith.constant 0 : index
    %39 = vector.load %arg4[%c256, %c0_23] : memref<1600x64xbf16, #tpu.memory_space<vmem>>, vector<64x64xbf16>
    %cst_24 = arith.constant dense<0.000000e+00> : vector<96x64xf32>
    %40 = tpu.matmul %38, %39, %cst_24 {dimension_numbers = #tpu.dot_dimension_numbers<[1], [0], [0], [1], [0, 0, 1, 1], [], []>} : vector<96x64xbf16>, vector<64x64xbf16>, vector<96x64xf32> -> vector<96x64xf32>
    %41 = arith.addf %37, %40 : vector<96x64xf32>
    %42 = vector.extract_strided_slice %20 {offsets = [12, 0], sizes = [96, 64], strides = [1, 1]} : vector<160x64xbf16> to vector<96x64xbf16>
    %c320 = arith.constant 320 : index
    %c0_25 = arith.constant 0 : index
    %43 = vector.load %arg4[%c320, %c0_25] : memref<1600x64xbf16, #tpu.memory_space<vmem>>, vector<64x64xbf16>
    %cst_26 = arith.constant dense<0.000000e+00> : vector<96x64xf32>
    %44 = tpu.matmul %42, %43, %cst_26 {dimension_numbers = #tpu.dot_dimension_numbers<[1], [0], [0], [1], [0, 0, 1, 1], [], []>} : vector<96x64xbf16>, vector<64x64xbf16>, vector<96x64xf32> -> vector<96x64xf32>
    %45 = arith.addf %41, %44 : vector<96x64xf32>
    %46 = vector.extract_strided_slice %20 {offsets = [13, 0], sizes = [96, 64], strides = [1, 1]} : vector<160x64xbf16> to vector<96x64xbf16>
    %c384 = arith.constant 384 : index
    %c0_27 = arith.constant 0 : index
    %47 = vector.load %arg4[%c384, %c0_27] : memref<1600x64xbf16, #tpu.memory_space<vmem>>, vector<64x64xbf16>
    %cst_28 = arith.constant dense<0.000000e+00> : vector<96x64xf32>
    %48 = tpu.matmul %46, %47, %cst_28 {dimension_numbers = #tpu.dot_dimension_numbers<[1], [0], [0], [1], [0, 0, 1, 1], [], []>} : vector<96x64xbf16>, vector<64x64xbf16>, vector<96x64xf32> -> vector<96x64xf32>
    %49 = arith.addf %45, %48 : vector<96x64xf32>
    %50 = vector.extract_strided_slice %20 {offsets = [14, 0], sizes = [96, 64], strides = [1, 1]} : vector<160x64xbf16> to vector<96x64xbf16>
    %c448 = arith.constant 448 : index
    %c0_29 = arith.constant 0 : index
    %51 = vector.load %arg4[%c448, %c0_29] : memref<1600x64xbf16, #tpu.memory_space<vmem>>, vector<64x64xbf16>
    %cst_30 = arith.constant dense<0.000000e+00> : vector<96x64xf32>
    %52 = tpu.matmul %50, %51, %cst_30 {dimension_numbers = #tpu.dot_dimension_numbers<[1], [0], [0], [1], [0, 0, 1, 1], [], []>} : vector<96x64xbf16>, vector<64x64xbf16>, vector<96x64xf32> -> vector<96x64xf32>
    %53 = arith.addf %49, %52 : vector<96x64xf32>
    %54 = vector.extract_strided_slice %20 {offsets = [15, 0], sizes = [96, 64], strides = [1, 1]} : vector<160x64xbf16> to vector<96x64xbf16>
    %c512 = arith.constant 512 : index
    %c0_31 = arith.constant 0 : index
    %55 = vector.load %arg4[%c512, %c0_31] : memref<1600x64xbf16, #tpu.memory_space<vmem>>, vector<64x64xbf16>
    %cst_32 = arith.constant dense<0.000000e+00> : vector<96x64xf32>
    %56 = tpu.matmul %54, %55, %cst_32 {dimension_numbers = #tpu.dot_dimension_numbers<[1], [0], [0], [1], [0, 0, 1, 1], [], []>} : vector<96x64xbf16>, vector<64x64xbf16>, vector<96x64xf32> -> vector<96x64xf32>
    %57 = arith.addf %53, %56 : vector<96x64xf32>
    %58 = vector.extract_strided_slice %20 {offsets = [16, 0], sizes = [96, 64], strides = [1, 1]} : vector<160x64xbf16> to vector<96x64xbf16>
    %c576 = arith.constant 576 : index
    %c0_33 = arith.constant 0 : index
    %59 = vector.load %arg4[%c576, %c0_33] : memref<1600x64xbf16, #tpu.memory_space<vmem>>, vector<64x64xbf16>
    %cst_34 = arith.constant dense<0.000000e+00> : vector<96x64xf32>
    %60 = tpu.matmul %58, %59, %cst_34 {dimension_numbers = #tpu.dot_dimension_numbers<[1], [0], [0], [1], [0, 0, 1, 1], [], []>} : vector<96x64xbf16>, vector<64x64xbf16>, vector<96x64xf32> -> vector<96x64xf32>
    %61 = arith.addf %57, %60 : vector<96x64xf32>
    %62 = vector.extract_strided_slice %20 {offsets = [24, 0], sizes = [96, 64], strides = [1, 1]} : vector<160x64xbf16> to vector<96x64xbf16>
    %c640 = arith.constant 640 : index
    %c0_35 = arith.constant 0 : index
    %63 = vector.load %arg4[%c640, %c0_35] : memref<1600x64xbf16, #tpu.memory_space<vmem>>, vector<64x64xbf16>
    %cst_36 = arith.constant dense<0.000000e+00> : vector<96x64xf32>
    %64 = tpu.matmul %62, %63, %cst_36 {dimension_numbers = #tpu.dot_dimension_numbers<[1], [0], [0], [1], [0, 0, 1, 1], [], []>} : vector<96x64xbf16>, vector<64x64xbf16>, vector<96x64xf32> -> vector<96x64xf32>
    %65 = arith.addf %61, %64 : vector<96x64xf32>
    %66 = vector.extract_strided_slice %20 {offsets = [25, 0], sizes = [96, 64], strides = [1, 1]} : vector<160x64xbf16> to vector<96x64xbf16>
    %c704 = arith.constant 704 : index
    %c0_37 = arith.constant 0 : index
    %67 = vector.load %arg4[%c704, %c0_37] : memref<1600x64xbf16, #tpu.memory_space<vmem>>, vector<64x64xbf16>
    %cst_38 = arith.constant dense<0.000000e+00> : vector<96x64xf32>
    %68 = tpu.matmul %66, %67, %cst_38 {dimension_numbers = #tpu.dot_dimension_numbers<[1], [0], [0], [1], [0, 0, 1, 1], [], []>} : vector<96x64xbf16>, vector<64x64xbf16>, vector<96x64xf32> -> vector<96x64xf32>
    %69 = arith.addf %65, %68 : vector<96x64xf32>
    %70 = vector.extract_strided_slice %20 {offsets = [26, 0], sizes = [96, 64], strides = [1, 1]} : vector<160x64xbf16> to vector<96x64xbf16>
    %c768 = arith.constant 768 : index
    %c0_39 = arith.constant 0 : index
    %71 = vector.load %arg4[%c768, %c0_39] : memref<1600x64xbf16, #tpu.memory_space<vmem>>, vector<64x64xbf16>
    %cst_40 = arith.constant dense<0.000000e+00> : vector<96x64xf32>
    %72 = tpu.matmul %70, %71, %cst_40 {dimension_numbers = #tpu.dot_dimension_numbers<[1], [0], [0], [1], [0, 0, 1, 1], [], []>} : vector<96x64xbf16>, vector<64x64xbf16>, vector<96x64xf32> -> vector<96x64xf32>
    %73 = arith.addf %69, %72 : vector<96x64xf32>
    %74 = vector.extract_strided_slice %20 {offsets = [27, 0], sizes = [96, 64], strides = [1, 1]} : vector<160x64xbf16> to vector<96x64xbf16>
    %c832 = arith.constant 832 : index
    %c0_41 = arith.constant 0 : index
    %75 = vector.load %arg4[%c832, %c0_41] : memref<1600x64xbf16, #tpu.memory_space<vmem>>, vector<64x64xbf16>
    %cst_42 = arith.constant dense<0.000000e+00> : vector<96x64xf32>
    %76 = tpu.matmul %74, %75, %cst_42 {dimension_numbers = #tpu.dot_dimension_numbers<[1], [0], [0], [1], [0, 0, 1, 1], [], []>} : vector<96x64xbf16>, vector<64x64xbf16>, vector<96x64xf32> -> vector<96x64xf32>
    %77 = arith.addf %73, %76 : vector<96x64xf32>
    %78 = vector.extract_strided_slice %20 {offsets = [28, 0], sizes = [96, 64], strides = [1, 1]} : vector<160x64xbf16> to vector<96x64xbf16>
    %c896 = arith.constant 896 : index
    %c0_43 = arith.constant 0 : index
    %79 = vector.load %arg4[%c896, %c0_43] : memref<1600x64xbf16, #tpu.memory_space<vmem>>, vector<64x64xbf16>
    %cst_44 = arith.constant dense<0.000000e+00> : vector<96x64xf32>
    %80 = tpu.matmul %78, %79, %cst_44 {dimension_numbers = #tpu.dot_dimension_numbers<[1], [0], [0], [1], [0, 0, 1, 1], [], []>} : vector<96x64xbf16>, vector<64x64xbf16>, vector<96x64xf32> -> vector<96x64xf32>
    %81 = arith.addf %77, %80 : vector<96x64xf32>
    %82 = vector.extract_strided_slice %20 {offsets = [36, 0], sizes = [96, 64], strides = [1, 1]} : vector<160x64xbf16> to vector<96x64xbf16>
    %c960 = arith.constant 960 : index
    %c0_45 = arith.constant 0 : index
    %83 = vector.load %arg4[%c960, %c0_45] : memref<1600x64xbf16, #tpu.memory_space<vmem>>, vector<64x64xbf16>
    %cst_46 = arith.constant dense<0.000000e+00> : vector<96x64xf32>
    %84 = tpu.matmul %82, %83, %cst_46 {dimension_numbers = #tpu.dot_dimension_numbers<[1], [0], [0], [1], [0, 0, 1, 1], [], []>} : vector<96x64xbf16>, vector<64x64xbf16>, vector<96x64xf32> -> vector<96x64xf32>
    %85 = arith.addf %81, %84 : vector<96x64xf32>
    %86 = vector.extract_strided_slice %20 {offsets = [37, 0], sizes = [96, 64], strides = [1, 1]} : vector<160x64xbf16> to vector<96x64xbf16>
    %c1024 = arith.constant 1024 : index
    %c0_47 = arith.constant 0 : index
    %87 = vector.load %arg4[%c1024, %c0_47] : memref<1600x64xbf16, #tpu.memory_space<vmem>>, vector<64x64xbf16>
    %cst_48 = arith.constant dense<0.000000e+00> : vector<96x64xf32>
    %88 = tpu.matmul %86, %87, %cst_48 {dimension_numbers = #tpu.dot_dimension_numbers<[1], [0], [0], [1], [0, 0, 1, 1], [], []>} : vector<96x64xbf16>, vector<64x64xbf16>, vector<96x64xf32> -> vector<96x64xf32>
    %89 = arith.addf %85, %88 : vector<96x64xf32>
    %90 = vector.extract_strided_slice %20 {offsets = [38, 0], sizes = [96, 64], strides = [1, 1]} : vector<160x64xbf16> to vector<96x64xbf16>
    %c1088 = arith.constant 1088 : index
    %c0_49 = arith.constant 0 : index
    %91 = vector.load %arg4[%c1088, %c0_49] : memref<1600x64xbf16, #tpu.memory_space<vmem>>, vector<64x64xbf16>
    %cst_50 = arith.constant dense<0.000000e+00> : vector<96x64xf32>
    %92 = tpu.matmul %90, %91, %cst_50 {dimension_numbers = #tpu.dot_dimension_numbers<[1], [0], [0], [1], [0, 0, 1, 1], [], []>} : vector<96x64xbf16>, vector<64x64xbf16>, vector<96x64xf32> -> vector<96x64xf32>
    %93 = arith.addf %89, %92 : vector<96x64xf32>
    %94 = vector.extract_strided_slice %20 {offsets = [39, 0], sizes = [96, 64], strides = [1, 1]} : vector<160x64xbf16> to vector<96x64xbf16>
    %c1152 = arith.constant 1152 : index
    %c0_51 = arith.constant 0 : index
    %95 = vector.load %arg4[%c1152, %c0_51] : memref<1600x64xbf16, #tpu.memory_space<vmem>>, vector<64x64xbf16>
    %cst_52 = arith.constant dense<0.000000e+00> : vector<96x64xf32>
    %96 = tpu.matmul %94, %95, %cst_52 {dimension_numbers = #tpu.dot_dimension_numbers<[1], [0], [0], [1], [0, 0, 1, 1], [], []>} : vector<96x64xbf16>, vector<64x64xbf16>, vector<96x64xf32> -> vector<96x64xf32>
    %97 = arith.addf %93, %96 : vector<96x64xf32>
    %98 = vector.extract_strided_slice %20 {offsets = [40, 0], sizes = [96, 64], strides = [1, 1]} : vector<160x64xbf16> to vector<96x64xbf16>
    %c1216 = arith.constant 1216 : index
    %c0_53 = arith.constant 0 : index
    %99 = vector.load %arg4[%c1216, %c0_53] : memref<1600x64xbf16, #tpu.memory_space<vmem>>, vector<64x64xbf16>
    %cst_54 = arith.constant dense<0.000000e+00> : vector<96x64xf32>
    %100 = tpu.matmul %98, %99, %cst_54 {dimension_numbers = #tpu.dot_dimension_numbers<[1], [0], [0], [1], [0, 0, 1, 1], [], []>} : vector<96x64xbf16>, vector<64x64xbf16>, vector<96x64xf32> -> vector<96x64xf32>
    %101 = arith.addf %97, %100 : vector<96x64xf32>
    %102 = vector.extract_strided_slice %20 {offsets = [48, 0], sizes = [96, 64], strides = [1, 1]} : vector<160x64xbf16> to vector<96x64xbf16>
    %c1280 = arith.constant 1280 : index
    %c0_55 = arith.constant 0 : index
    %103 = vector.load %arg4[%c1280, %c0_55] : memref<1600x64xbf16, #tpu.memory_space<vmem>>, vector<64x64xbf16>
    %cst_56 = arith.constant dense<0.000000e+00> : vector<96x64xf32>
    %104 = tpu.matmul %102, %103, %cst_56 {dimension_numbers = #tpu.dot_dimension_numbers<[1], [0], [0], [1], [0, 0, 1, 1], [], []>} : vector<96x64xbf16>, vector<64x64xbf16>, vector<96x64xf32> -> vector<96x64xf32>
    %105 = arith.addf %101, %104 : vector<96x64xf32>
    %106 = vector.extract_strided_slice %20 {offsets = [49, 0], sizes = [96, 64], strides = [1, 1]} : vector<160x64xbf16> to vector<96x64xbf16>
    %c1344 = arith.constant 1344 : index
    %c0_57 = arith.constant 0 : index
    %107 = vector.load %arg4[%c1344, %c0_57] : memref<1600x64xbf16, #tpu.memory_space<vmem>>, vector<64x64xbf16>
    %cst_58 = arith.constant dense<0.000000e+00> : vector<96x64xf32>
    %108 = tpu.matmul %106, %107, %cst_58 {dimension_numbers = #tpu.dot_dimension_numbers<[1], [0], [0], [1], [0, 0, 1, 1], [], []>} : vector<96x64xbf16>, vector<64x64xbf16>, vector<96x64xf32> -> vector<96x64xf32>
    %109 = arith.addf %105, %108 : vector<96x64xf32>
    %110 = vector.extract_strided_slice %20 {offsets = [50, 0], sizes = [96, 64], strides = [1, 1]} : vector<160x64xbf16> to vector<96x64xbf16>
    %c1408 = arith.constant 1408 : index
    %c0_59 = arith.constant 0 : index
    %111 = vector.load %arg4[%c1408, %c0_59] : memref<1600x64xbf16, #tpu.memory_space<vmem>>, vector<64x64xbf16>
    %cst_60 = arith.constant dense<0.000000e+00> : vector<96x64xf32>
    %112 = tpu.matmul %110, %111, %cst_60 {dimension_numbers = #tpu.dot_dimension_numbers<[1], [0], [0], [1], [0, 0, 1, 1], [], []>} : vector<96x64xbf16>, vector<64x64xbf16>, vector<96x64xf32> -> vector<96x64xf32>
    %113 = arith.addf %109, %112 : vector<96x64xf32>
    %114 = vector.extract_strided_slice %20 {offsets = [51, 0], sizes = [96, 64], strides = [1, 1]} : vector<160x64xbf16> to vector<96x64xbf16>
    %c1472 = arith.constant 1472 : index
    %c0_61 = arith.constant 0 : index
    %115 = vector.load %arg4[%c1472, %c0_61] : memref<1600x64xbf16, #tpu.memory_space<vmem>>, vector<64x64xbf16>
    %cst_62 = arith.constant dense<0.000000e+00> : vector<96x64xf32>
    %116 = tpu.matmul %114, %115, %cst_62 {dimension_numbers = #tpu.dot_dimension_numbers<[1], [0], [0], [1], [0, 0, 1, 1], [], []>} : vector<96x64xbf16>, vector<64x64xbf16>, vector<96x64xf32> -> vector<96x64xf32>
    %117 = arith.addf %113, %116 : vector<96x64xf32>
    %118 = vector.extract_strided_slice %20 {offsets = [52, 0], sizes = [96, 64], strides = [1, 1]} : vector<160x64xbf16> to vector<96x64xbf16>
    %c1536 = arith.constant 1536 : index
    %c0_63 = arith.constant 0 : index
    %119 = vector.load %arg4[%c1536, %c0_63] : memref<1600x64xbf16, #tpu.memory_space<vmem>>, vector<64x64xbf16>
    %cst_64 = arith.constant dense<0.000000e+00> : vector<96x64xf32>
    %120 = tpu.matmul %118, %119, %cst_64 {dimension_numbers = #tpu.dot_dimension_numbers<[1], [0], [0], [1], [0, 0, 1, 1], [], []>} : vector<96x64xbf16>, vector<64x64xbf16>, vector<96x64xf32> -> vector<96x64xf32>
    %121 = arith.addf %117, %120 : vector<96x64xf32>
    %122 = vector.extract_strided_slice %121 {offsets = [0, 0], sizes = [95, 64], strides = [1, 1]} : vector<96x64xf32> to vector<95x64xf32>
    %123 = vector.extract_strided_slice %121 {offsets = [1, 0], sizes = [95, 64], strides = [1, 1]} : vector<96x64xf32> to vector<95x64xf32>
    %124 = arith.maximumf %122, %123 : vector<95x64xf32>
    %125 = vector.extract_strided_slice %124 {offsets = [0, 0], sizes = [83, 64], strides = [1, 1]} : vector<95x64xf32> to vector<83x64xf32>
    %126 = vector.extract_strided_slice %124 {offsets = [12, 0], sizes = [83, 64], strides = [1, 1]} : vector<95x64xf32> to vector<83x64xf32>
    %127 = arith.maximumf %125, %126 : vector<83x64xf32>
    %c0_65 = arith.constant 0 : index
    %c0_66 = arith.constant 0 : index
    %128 = vector.load %arg5[%c0_65, %c0_66] : memref<1x64xf32, #tpu.memory_space<vmem>>, vector<1x64xf32>
    %129 = vector.broadcast %128 : vector<1x64xf32> to vector<83x64xf32>
    %130 = arith.addf %127, %129 : vector<83x64xf32>
    %cst_67 = arith.constant 0.000000e+00 : f32
    %131 = vector.broadcast %cst_67 : f32 to vector<83x64xf32>
    %132 = arith.maximumf %130, %131 : vector<83x64xf32>
    %133 = arith.truncf %132 : vector<83x64xf32> to vector<83x64xbf16>
    %c0_68 = arith.constant 0 : index
    %c0_69 = arith.constant 0 : index
    %134 = vector.load %arg7[%c0_68, %c0_69] : memref<1x256xf32, #tpu.memory_space<vmem>>, vector<1x256xf32>
    %135 = vector.extract_strided_slice %133 {offsets = [0, 0], sizes = [1, 64], strides = [1, 1]} : vector<83x64xbf16> to vector<1x64xbf16>
    %c0_70 = arith.constant 0 : index
    %c0_71 = arith.constant 0 : index
    %136 = vector.load %arg6[%c0_70, %c0_71] : memref<1024x256xbf16, #tpu.memory_space<vmem>>, vector<64x256xbf16>
    %cst_72 = arith.constant dense<0.000000e+00> : vector<1x256xf32>
    %137 = tpu.matmul %135, %136, %cst_72 {dimension_numbers = #tpu.dot_dimension_numbers<[1], [0], [0], [1], [0, 0, 1, 1], [], []>} : vector<1x64xbf16>, vector<64x256xbf16>, vector<1x256xf32> -> vector<1x256xf32>
    %138 = arith.addf %134, %137 : vector<1x256xf32>
    %139 = vector.extract_strided_slice %133 {offsets = [2, 0], sizes = [1, 64], strides = [1, 1]} : vector<83x64xbf16> to vector<1x64xbf16>
    %c64_73 = arith.constant 64 : index
    %c0_74 = arith.constant 0 : index
    %140 = vector.load %arg6[%c64_73, %c0_74] : memref<1024x256xbf16, #tpu.memory_space<vmem>>, vector<64x256xbf16>
    %cst_75 = arith.constant dense<0.000000e+00> : vector<1x256xf32>
    %141 = tpu.matmul %139, %140, %cst_75 {dimension_numbers = #tpu.dot_dimension_numbers<[1], [0], [0], [1], [0, 0, 1, 1], [], []>} : vector<1x64xbf16>, vector<64x256xbf16>, vector<1x256xf32> -> vector<1x256xf32>
    %142 = arith.addf %138, %141 : vector<1x256xf32>
    %143 = vector.extract_strided_slice %133 {offsets = [4, 0], sizes = [1, 64], strides = [1, 1]} : vector<83x64xbf16> to vector<1x64xbf16>
    %c128_76 = arith.constant 128 : index
    %c0_77 = arith.constant 0 : index
    %144 = vector.load %arg6[%c128_76, %c0_77] : memref<1024x256xbf16, #tpu.memory_space<vmem>>, vector<64x256xbf16>
    %cst_78 = arith.constant dense<0.000000e+00> : vector<1x256xf32>
    %145 = tpu.matmul %143, %144, %cst_78 {dimension_numbers = #tpu.dot_dimension_numbers<[1], [0], [0], [1], [0, 0, 1, 1], [], []>} : vector<1x64xbf16>, vector<64x256xbf16>, vector<1x256xf32> -> vector<1x256xf32>
    %146 = arith.addf %142, %145 : vector<1x256xf32>
    %147 = vector.extract_strided_slice %133 {offsets = [6, 0], sizes = [1, 64], strides = [1, 1]} : vector<83x64xbf16> to vector<1x64xbf16>
    %c192_79 = arith.constant 192 : index
    %c0_80 = arith.constant 0 : index
    %148 = vector.load %arg6[%c192_79, %c0_80] : memref<1024x256xbf16, #tpu.memory_space<vmem>>, vector<64x256xbf16>
    %cst_81 = arith.constant dense<0.000000e+00> : vector<1x256xf32>
    %149 = tpu.matmul %147, %148, %cst_81 {dimension_numbers = #tpu.dot_dimension_numbers<[1], [0], [0], [1], [0, 0, 1, 1], [], []>} : vector<1x64xbf16>, vector<64x256xbf16>, vector<1x256xf32> -> vector<1x256xf32>
    %150 = arith.addf %146, %149 : vector<1x256xf32>
    %151 = vector.extract_strided_slice %133 {offsets = [24, 0], sizes = [1, 64], strides = [1, 1]} : vector<83x64xbf16> to vector<1x64xbf16>
    %c256_82 = arith.constant 256 : index
    %c0_83 = arith.constant 0 : index
    %152 = vector.load %arg6[%c256_82, %c0_83] : memref<1024x256xbf16, #tpu.memory_space<vmem>>, vector<64x256xbf16>
    %cst_84 = arith.constant dense<0.000000e+00> : vector<1x256xf32>
    %153 = tpu.matmul %151, %152, %cst_84 {dimension_numbers = #tpu.dot_dimension_numbers<[1], [0], [0], [1], [0, 0, 1, 1], [], []>} : vector<1x64xbf16>, vector<64x256xbf16>, vector<1x256xf32> -> vector<1x256xf32>
    %154 = arith.addf %150, %153 : vector<1x256xf32>
    %155 = vector.extract_strided_slice %133 {offsets = [26, 0], sizes = [1, 64], strides = [1, 1]} : vector<83x64xbf16> to vector<1x64xbf16>
    %c320_85 = arith.constant 320 : index
    %c0_86 = arith.constant 0 : index
    %156 = vector.load %arg6[%c320_85, %c0_86] : memref<1024x256xbf16, #tpu.memory_space<vmem>>, vector<64x256xbf16>
    %cst_87 = arith.constant dense<0.000000e+00> : vector<1x256xf32>
    %157 = tpu.matmul %155, %156, %cst_87 {dimension_numbers = #tpu.dot_dimension_numbers<[1], [0], [0], [1], [0, 0, 1, 1], [], []>} : vector<1x64xbf16>, vector<64x256xbf16>, vector<1x256xf32> -> vector<1x256xf32>
    %158 = arith.addf %154, %157 : vector<1x256xf32>
    %159 = vector.extract_strided_slice %133 {offsets = [28, 0], sizes = [1, 64], strides = [1, 1]} : vector<83x64xbf16> to vector<1x64xbf16>
    %c384_88 = arith.constant 384 : index
    %c0_89 = arith.constant 0 : index
    %160 = vector.load %arg6[%c384_88, %c0_89] : memref<1024x256xbf16, #tpu.memory_space<vmem>>, vector<64x256xbf16>
    %cst_90 = arith.constant dense<0.000000e+00> : vector<1x256xf32>
    %161 = tpu.matmul %159, %160, %cst_90 {dimension_numbers = #tpu.dot_dimension_numbers<[1], [0], [0], [1], [0, 0, 1, 1], [], []>} : vector<1x64xbf16>, vector<64x256xbf16>, vector<1x256xf32> -> vector<1x256xf32>
    %162 = arith.addf %158, %161 : vector<1x256xf32>
    %163 = vector.extract_strided_slice %133 {offsets = [30, 0], sizes = [1, 64], strides = [1, 1]} : vector<83x64xbf16> to vector<1x64xbf16>
    %c448_91 = arith.constant 448 : index
    %c0_92 = arith.constant 0 : index
    %164 = vector.load %arg6[%c448_91, %c0_92] : memref<1024x256xbf16, #tpu.memory_space<vmem>>, vector<64x256xbf16>
    %cst_93 = arith.constant dense<0.000000e+00> : vector<1x256xf32>
    %165 = tpu.matmul %163, %164, %cst_93 {dimension_numbers = #tpu.dot_dimension_numbers<[1], [0], [0], [1], [0, 0, 1, 1], [], []>} : vector<1x64xbf16>, vector<64x256xbf16>, vector<1x256xf32> -> vector<1x256xf32>
    %166 = arith.addf %162, %165 : vector<1x256xf32>
    %167 = vector.extract_strided_slice %133 {offsets = [48, 0], sizes = [1, 64], strides = [1, 1]} : vector<83x64xbf16> to vector<1x64xbf16>
    %c512_94 = arith.constant 512 : index
    %c0_95 = arith.constant 0 : index
    %168 = vector.load %arg6[%c512_94, %c0_95] : memref<1024x256xbf16, #tpu.memory_space<vmem>>, vector<64x256xbf16>
    %cst_96 = arith.constant dense<0.000000e+00> : vector<1x256xf32>
    %169 = tpu.matmul %167, %168, %cst_96 {dimension_numbers = #tpu.dot_dimension_numbers<[1], [0], [0], [1], [0, 0, 1, 1], [], []>} : vector<1x64xbf16>, vector<64x256xbf16>, vector<1x256xf32> -> vector<1x256xf32>
    %170 = arith.addf %166, %169 : vector<1x256xf32>
    %171 = vector.extract_strided_slice %133 {offsets = [50, 0], sizes = [1, 64], strides = [1, 1]} : vector<83x64xbf16> to vector<1x64xbf16>
    %c576_97 = arith.constant 576 : index
    %c0_98 = arith.constant 0 : index
    %172 = vector.load %arg6[%c576_97, %c0_98] : memref<1024x256xbf16, #tpu.memory_space<vmem>>, vector<64x256xbf16>
    %cst_99 = arith.constant dense<0.000000e+00> : vector<1x256xf32>
    %173 = tpu.matmul %171, %172, %cst_99 {dimension_numbers = #tpu.dot_dimension_numbers<[1], [0], [0], [1], [0, 0, 1, 1], [], []>} : vector<1x64xbf16>, vector<64x256xbf16>, vector<1x256xf32> -> vector<1x256xf32>
    %174 = arith.addf %170, %173 : vector<1x256xf32>
    %175 = vector.extract_strided_slice %133 {offsets = [52, 0], sizes = [1, 64], strides = [1, 1]} : vector<83x64xbf16> to vector<1x64xbf16>
    %c640_100 = arith.constant 640 : index
    %c0_101 = arith.constant 0 : index
    %176 = vector.load %arg6[%c640_100, %c0_101] : memref<1024x256xbf16, #tpu.memory_space<vmem>>, vector<64x256xbf16>
    %cst_102 = arith.constant dense<0.000000e+00> : vector<1x256xf32>
    %177 = tpu.matmul %175, %176, %cst_102 {dimension_numbers = #tpu.dot_dimension_numbers<[1], [0], [0], [1], [0, 0, 1, 1], [], []>} : vector<1x64xbf16>, vector<64x256xbf16>, vector<1x256xf32> -> vector<1x256xf32>
    %178 = arith.addf %174, %177 : vector<1x256xf32>
    %179 = vector.extract_strided_slice %133 {offsets = [54, 0], sizes = [1, 64], strides = [1, 1]} : vector<83x64xbf16> to vector<1x64xbf16>
    %c704_103 = arith.constant 704 : index
    %c0_104 = arith.constant 0 : index
    %180 = vector.load %arg6[%c704_103, %c0_104] : memref<1024x256xbf16, #tpu.memory_space<vmem>>, vector<64x256xbf16>
    %cst_105 = arith.constant dense<0.000000e+00> : vector<1x256xf32>
    %181 = tpu.matmul %179, %180, %cst_105 {dimension_numbers = #tpu.dot_dimension_numbers<[1], [0], [0], [1], [0, 0, 1, 1], [], []>} : vector<1x64xbf16>, vector<64x256xbf16>, vector<1x256xf32> -> vector<1x256xf32>
    %182 = arith.addf %178, %181 : vector<1x256xf32>
    %183 = vector.extract_strided_slice %133 {offsets = [72, 0], sizes = [1, 64], strides = [1, 1]} : vector<83x64xbf16> to vector<1x64xbf16>
    %c768_106 = arith.constant 768 : index
    %c0_107 = arith.constant 0 : index
    %184 = vector.load %arg6[%c768_106, %c0_107] : memref<1024x256xbf16, #tpu.memory_space<vmem>>, vector<64x256xbf16>
    %cst_108 = arith.constant dense<0.000000e+00> : vector<1x256xf32>
    %185 = tpu.matmul %183, %184, %cst_108 {dimension_numbers = #tpu.dot_dimension_numbers<[1], [0], [0], [1], [0, 0, 1, 1], [], []>} : vector<1x64xbf16>, vector<64x256xbf16>, vector<1x256xf32> -> vector<1x256xf32>
    %186 = arith.addf %182, %185 : vector<1x256xf32>
    %187 = vector.extract_strided_slice %133 {offsets = [74, 0], sizes = [1, 64], strides = [1, 1]} : vector<83x64xbf16> to vector<1x64xbf16>
    %c832_109 = arith.constant 832 : index
    %c0_110 = arith.constant 0 : index
    %188 = vector.load %arg6[%c832_109, %c0_110] : memref<1024x256xbf16, #tpu.memory_space<vmem>>, vector<64x256xbf16>
    %cst_111 = arith.constant dense<0.000000e+00> : vector<1x256xf32>
    %189 = tpu.matmul %187, %188, %cst_111 {dimension_numbers = #tpu.dot_dimension_numbers<[1], [0], [0], [1], [0, 0, 1, 1], [], []>} : vector<1x64xbf16>, vector<64x256xbf16>, vector<1x256xf32> -> vector<1x256xf32>
    %190 = arith.addf %186, %189 : vector<1x256xf32>
    %191 = vector.extract_strided_slice %133 {offsets = [76, 0], sizes = [1, 64], strides = [1, 1]} : vector<83x64xbf16> to vector<1x64xbf16>
    %c896_112 = arith.constant 896 : index
    %c0_113 = arith.constant 0 : index
    %192 = vector.load %arg6[%c896_112, %c0_113] : memref<1024x256xbf16, #tpu.memory_space<vmem>>, vector<64x256xbf16>
    %cst_114 = arith.constant dense<0.000000e+00> : vector<1x256xf32>
    %193 = tpu.matmul %191, %192, %cst_114 {dimension_numbers = #tpu.dot_dimension_numbers<[1], [0], [0], [1], [0, 0, 1, 1], [], []>} : vector<1x64xbf16>, vector<64x256xbf16>, vector<1x256xf32> -> vector<1x256xf32>
    %194 = arith.addf %190, %193 : vector<1x256xf32>
    %195 = vector.extract_strided_slice %133 {offsets = [78, 0], sizes = [1, 64], strides = [1, 1]} : vector<83x64xbf16> to vector<1x64xbf16>
    %c960_115 = arith.constant 960 : index
    %c0_116 = arith.constant 0 : index
    %196 = vector.load %arg6[%c960_115, %c0_116] : memref<1024x256xbf16, #tpu.memory_space<vmem>>, vector<64x256xbf16>
    %cst_117 = arith.constant dense<0.000000e+00> : vector<1x256xf32>
    %197 = tpu.matmul %195, %196, %cst_117 {dimension_numbers = #tpu.dot_dimension_numbers<[1], [0], [0], [1], [0, 0, 1, 1], [], []>} : vector<1x64xbf16>, vector<64x256xbf16>, vector<1x256xf32> -> vector<1x256xf32>
    %198 = arith.addf %194, %197 : vector<1x256xf32>
    %199 = vector.extract_strided_slice %198 {offsets = [0, 0], sizes = [1, 128], strides = [1, 1]} : vector<1x256xf32> to vector<1x128xf32>
    %cst_118 = arith.constant 0.000000e+00 : f32
    %200 = vector.broadcast %cst_118 : f32 to vector<1x128xf32>
    %201 = arith.maximumf %199, %200 : vector<1x128xf32>
    %202 = arith.truncf %201 : vector<1x128xf32> to vector<1x128xbf16>
    %c0_119 = arith.constant 0 : index
    %c0_120 = arith.constant 0 : index
    %203 = vector.load %arg8[%c0_119, %c0_120] : memref<128x128xbf16, #tpu.memory_space<vmem>>, vector<128x128xbf16>
    %cst_121 = arith.constant dense<0.000000e+00> : vector<1x128xf32>
    %204 = tpu.matmul %202, %203, %cst_121 {dimension_numbers = #tpu.dot_dimension_numbers<[1], [0], [0], [1], [0, 0, 1, 1], [], []>} : vector<1x128xbf16>, vector<128x128xbf16>, vector<1x128xf32> -> vector<1x128xf32>
    %c0_122 = arith.constant 0 : index
    %c0_123 = arith.constant 0 : index
    %205 = vector.load %arg9[%c0_122, %c0_123] : memref<1x128xf32, #tpu.memory_space<vmem>>, vector<1x128xf32>
    %206 = arith.addf %204, %205 : vector<1x128xf32>
    %cst_124 = arith.constant 0.000000e+00 : f32
    %207 = vector.broadcast %cst_124 : f32 to vector<1x128xf32>
    %208 = arith.maximumf %206, %207 : vector<1x128xf32>
    %209 = arith.truncf %208 : vector<1x128xf32> to vector<1x128xbf16>
    %c0_125 = arith.constant 0 : index
    %c0_126 = arith.constant 0 : index
    %210 = vector.load %arg10[%c0_125, %c0_126] : memref<128x128xbf16, #tpu.memory_space<vmem>>, vector<128x128xbf16>
    %cst_127 = arith.constant dense<0.000000e+00> : vector<1x128xf32>
    %211 = tpu.matmul %209, %210, %cst_127 {dimension_numbers = #tpu.dot_dimension_numbers<[1], [0], [0], [1], [0, 0, 1, 1], [], []>} : vector<1x128xbf16>, vector<128x128xbf16>, vector<1x128xf32> -> vector<1x128xf32>
    %c0_128 = arith.constant 0 : index
    %c0_129 = arith.constant 0 : index
    %212 = vector.load %arg11[%c0_128, %c0_129] : memref<1x128xf32, #tpu.memory_space<vmem>>, vector<1x128xf32>
    %213 = arith.addf %211, %212 : vector<1x128xf32>
    %cst_130 = arith.constant dense<0xFF800000> : vector<1xf32>
    %214 = vector.multi_reduction <maximumf>, %213, %cst_130 [1] : vector<1x128xf32> to vector<1xf32>
    %215 = vector.shape_cast %214 : vector<1xf32> to vector<1x1xf32>
    %216 = vector.broadcast %215 : vector<1x1xf32> to vector<1x128xf32>
    %217 = arith.subf %213, %216 : vector<1x128xf32>
    %218 = math.exp %217 : vector<1x128xf32>
    %cst_131 = arith.constant dense<0.000000e+00> : vector<1xf32>
    %219 = vector.multi_reduction <add>, %218, %cst_131 [1] : vector<1x128xf32> to vector<1xf32>
    %220 = vector.shape_cast %219 : vector<1xf32> to vector<1x1xf32>
    %221 = math.log %220 : vector<1x1xf32>
    %222 = arith.addf %215, %221 : vector<1x1xf32>
    %223 = vector.broadcast %222 : vector<1x1xf32> to vector<1x128xf32>
    %224 = arith.subf %213, %223 : vector<1x128xf32>
    %c0_132 = arith.constant 0 : index
    %c0_133 = arith.constant 0 : index
    %c0_134 = arith.constant 0 : index
    %225 = vector.load %arg14[%c0_132, %c0_133, %c0_134] : memref<1x1x128xf32, #tpu.memory_space<vmem>>, vector<1x1x128xf32>
    %226 = vector.shape_cast %225 : vector<1x1x128xf32> to vector<1x128xf32>
    %227 = vector.shape_cast %224 : vector<1x128xf32> to vector<1x1x128xf32>
    tpu.vector_store %arg14[%c0_132, %c0_133, %c0_134], %227 {strides = array<i32>} : memref<1x1x128xf32, #tpu.memory_space<vmem>>, vector<1x1x128xf32>,
    %228 = vector.extract_strided_slice %198 {offsets = [0, 128], sizes = [1, 128], strides = [1, 1]} : vector<1x256xf32> to vector<1x128xf32>
    %cst_135 = arith.constant 0.000000e+00 : f32
    %229 = vector.broadcast %cst_135 : f32 to vector<1x128xf32>
    %230 = arith.maximumf %228, %229 : vector<1x128xf32>
    %231 = arith.truncf %230 : vector<1x128xf32> to vector<1x128xbf16>
    %c0_136 = arith.constant 0 : index
    %c0_137 = arith.constant 0 : index
    %232 = vector.load %arg12[%c0_136, %c0_137] : memref<128x128xbf16, #tpu.memory_space<vmem>>, vector<128x128xbf16>
    %cst_138 = arith.constant dense<0.000000e+00> : vector<1x128xf32>
    %233 = tpu.matmul %231, %232, %cst_138 {dimension_numbers = #tpu.dot_dimension_numbers<[1], [0], [0], [1], [0, 0, 1, 1], [], []>} : vector<1x128xbf16>, vector<128x128xbf16>, vector<1x128xf32> -> vector<1x128xf32>
    %c0_139 = arith.constant 0 : index
    %c0_140 = arith.constant 0 : index
    %234 = vector.load %arg13[%c0_139, %c0_140] : memref<1x128xf32, #tpu.memory_space<vmem>>, vector<1x128xf32>
    %235 = arith.addf %233, %234 : vector<1x128xf32>
    %cst_141 = arith.constant dense<0xFF800000> : vector<1xf32>
    %236 = vector.multi_reduction <maximumf>, %235, %cst_141 [1] : vector<1x128xf32> to vector<1xf32>
    %237 = vector.shape_cast %236 : vector<1xf32> to vector<1x1xf32>
    %238 = vector.broadcast %237 : vector<1x1xf32> to vector<1x128xf32>
    %239 = arith.subf %235, %238 : vector<1x128xf32>
    %240 = math.exp %239 : vector<1x128xf32>
    %cst_142 = arith.constant dense<0.000000e+00> : vector<1xf32>
    %241 = vector.multi_reduction <add>, %240, %cst_142 [1] : vector<1x128xf32> to vector<1xf32>
    %242 = vector.shape_cast %241 : vector<1xf32> to vector<1x1xf32>
    %243 = math.log %242 : vector<1x1xf32>
    %244 = arith.addf %237, %243 : vector<1x1xf32>
    %245 = vector.broadcast %244 : vector<1x1xf32> to vector<1x128xf32>
    %246 = arith.subf %235, %245 : vector<1x128xf32>
    %c0_143 = arith.constant 0 : index
    %c0_144 = arith.constant 0 : index
    %c0_145 = arith.constant 0 : index
    %247 = vector.load %arg15[%c0_143, %c0_144, %c0_145] : memref<1x1x128xf32, #tpu.memory_space<vmem>>, vector<1x1x128xf32>
    %248 = vector.shape_cast %247 : vector<1x1x128xf32> to vector<1x128xf32>
    %249 = vector.shape_cast %246 : vector<1x128xf32> to vector<1x1x128xf32>
    tpu.vector_store %arg15[%c0_143, %c0_144, %c0_145], %249 {strides = array<i32>} : memref<1x1x128xf32, #tpu.memory_space<vmem>>, vector<1x1x128xf32>,
    return
  }
  func.func @transform_0(%arg0: i32) -> (i32, i32, i32) {
    %c0_i32 = arith.constant 0 : i32
    %c0_i32_0 = arith.constant 0 : i32
    %c0_i32_1 = arith.constant 0 : i32
    return %arg0, %c0_i32, %c0_i32_0 : i32, i32, i32
  }
  func.func @transform_1(%arg0: i32) -> (i32, i32) {
    %c0_i32 = arith.constant 0 : i32
    %c0_i32_0 = arith.constant 0 : i32
    %c0_i32_1 = arith.constant 0 : i32
    return %c0_i32, %c0_i32_0 : i32, i32
  }
  func.func @transform_2(%arg0: i32) -> (i32, i32) {
    %c0_i32 = arith.constant 0 : i32
    %c0_i32_0 = arith.constant 0 : i32
    %c0_i32_1 = arith.constant 0 : i32
    return %c0_i32, %c0_i32_0 : i32, i32
  }
  func.func @transform_3(%arg0: i32) -> (i32, i32) {
    %c0_i32 = arith.constant 0 : i32
    %c0_i32_0 = arith.constant 0 : i32
    %c0_i32_1 = arith.constant 0 : i32
    return %c0_i32, %c0_i32_0 : i32, i32
  }
  func.func @transform_4(%arg0: i32) -> (i32, i32) {
    %c0_i32 = arith.constant 0 : i32
    %c0_i32_0 = arith.constant 0 : i32
    %c0_i32_1 = arith.constant 0 : i32
    return %c0_i32, %c0_i32_0 : i32, i32
  }
  func.func @transform_5(%arg0: i32) -> (i32, i32) {
    %c0_i32 = arith.constant 0 : i32
    %c0_i32_0 = arith.constant 0 : i32
    %c0_i32_1 = arith.constant 0 : i32
    return %c0_i32, %c0_i32_0 : i32, i32
  }
  func.func @transform_6(%arg0: i32) -> (i32, i32) {
    %c0_i32 = arith.constant 0 : i32
    %c0_i32_0 = arith.constant 0 : i32
    %c0_i32_1 = arith.constant 0 : i32
    return %c0_i32, %c0_i32_0 : i32, i32
  }
  func.func @transform_7(%arg0: i32) -> (i32, i32) {
    %c0_i32 = arith.constant 0 : i32
    %c0_i32_0 = arith.constant 0 : i32
    %c0_i32_1 = arith.constant 0 : i32
    return %c0_i32, %c0_i32_0 : i32, i32
  }
  func.func @transform_8(%arg0: i32) -> (i32, i32) {
    %c0_i32 = arith.constant 0 : i32
    %c0_i32_0 = arith.constant 0 : i32
    %c0_i32_1 = arith.constant 0 : i32
    return %c0_i32, %c0_i32_0 : i32, i32
  }
  func.func @transform_9(%arg0: i32) -> (i32, i32) {
    %c0_i32 = arith.constant 0 : i32
    %c0_i32_0 = arith.constant 0 : i32
    %c0_i32_1 = arith.constant 0 : i32
    return %c0_i32, %c0_i32_0 : i32, i32
  }
  func.func @transform_10(%arg0: i32) -> (i32, i32) {
    %c0_i32 = arith.constant 0 : i32
    %c0_i32_0 = arith.constant 0 : i32
    %c0_i32_1 = arith.constant 0 : i32
    return %c0_i32, %c0_i32_0 : i32, i32
  }
  func.func @transform_11(%arg0: i32) -> (i32, i32) {
    %c0_i32 = arith.constant 0 : i32
    %c0_i32_0 = arith.constant 0 : i32
    %c0_i32_1 = arith.constant 0 : i32
    return %c0_i32, %c0_i32_0 : i32, i32
  }
  func.func @transform_12(%arg0: i32) -> (i32, i32) {
    %c0_i32 = arith.constant 0 : i32
    %c0_i32_0 = arith.constant 0 : i32
    %c0_i32_1 = arith.constant 0 : i32
    return %c0_i32, %c0_i32_0 : i32, i32
  }
  func.func @transform_13(%arg0: i32) -> (i32, i32, i32) {
    %c0_i32 = arith.constant 0 : i32
    %c0_i32_0 = arith.constant 0 : i32
    %c0_i32_1 = arith.constant 0 : i32
    return %arg0, %c0_i32, %c0_i32_0 : i32, i32, i32
  }
  func.func @transform_14(%arg0: i32) -> (i32, i32, i32) {
    %c0_i32 = arith.constant 0 : i32
    %c0_i32_0 = arith.constant 0 : i32
    %c0_i32_1 = arith.constant 0 : i32
    return %arg0, %c0_i32, %c0_i32_0 : i32, i32, i32
  }
}

</mosaic_0001>

<llo_original>
// kernel: _lambda_.1
$region0: #{_lambda_.1}
  #allocation0 [shape = 'u32[]', space=smem, size = 0x4, offset = 0x4, fixed_abs, tag = 'smem constant byte address 0x4 - core index']
  #allocation1 [shape = 'u32[72,128]{1,0:T(1,128)}', space=vmem, size = 0x9000, scoped, tag = 'internal scratch']
  #allocation2 [shape = 'bf16[160,64]{1,0:T(8,128)(2,1)}', space=vmem, size = 0xa000, scoped, tag = 'scratch operand']
  %s0 = inlined_call_operand.vmem [shape: bf16[2,576,32], index: 0, kind: input, shape index: {}]
  %s1 = inlined_call_operand.vmem [shape: bf16[32,64], index: 1, kind: input, shape index: {}]
  %s2 = inlined_call_operand.vmem [shape: f32[1,64], index: 2, kind: input, shape index: {}]
  %s3 = inlined_call_operand.vmem [shape: bf16[1600,64], index: 3, kind: input, shape index: {}]
  %s4 = inlined_call_operand.vmem [shape: f32[1,64], index: 4, kind: input, shape index: {}]
  %s5 = inlined_call_operand.vmem [shape: bf16[1024,256], index: 5, kind: input, shape index: {}]
  %s6 = inlined_call_operand.vmem [shape: f32[1,256], index: 6, kind: input, shape index: {}]
  %s7 = inlined_call_operand.vmem [shape: bf16[128,128], index: 7, kind: input, shape index: {}]
  %s8 = inlined_call_operand.vmem [shape: f32[1,128], index: 8, kind: input, shape index: {}]
  %s9 = inlined_call_operand.vmem [shape: bf16[128,128], index: 9, kind: input, shape index: {}]
  %s10 = inlined_call_operand.vmem [shape: f32[1,128], index: 10, kind: input, shape index: {}]
  %s11 = inlined_call_operand.vmem [shape: bf16[128,128], index: 11, kind: input, shape index: {}]
  %s12 = inlined_call_operand.vmem [shape: f32[1,128], index: 12, kind: input, shape index: {}]
  %s13 = inlined_call_operand.hbm [shape: f32[2,1,128], index: 13, kind: output, shape index: {0}]
  %s14 = inlined_call_operand.hbm [shape: f32[2,1,128], index: 14, kind: output, shape index: {1}]
  %15 = xla_tuple %s13, %s14
  %s16 = sld [smem:[#allocation0]]
  $region93: #{_lambda_.1} parent=0
    _
  %s18 = ssub.s32 1, %s16
  %s19 = scalar_select 0, %s18, %s16
  $region1: #{_lambda_.1} parent=0
    #allocation3 [shape = 'u8[1024]{0}', space=vmem, size = 0x400, scoped, tag = 'output window, operand 0']
    #allocation4 [shape = 's32[2]{0}', space=sflag, size = 0x8, scoped, tag = 'scoped memory for _lambda_.1']
    #allocation5 [shape = 'u8[1024]{0}', space=vmem, size = 0x400, scoped, tag = 'output window, operand 1']
    #allocation6 [shape = 's32[2]{0}', space=sflag, size = 0x8, scoped, tag = 'scoped memory for _lambda_.1']
    %20 = vsyncpa [#allocation4], 0
    %s21 = scalar_lea.sflag [#allocation4], 1
    %22 = vsyncpa %s21, 0
    %23 = vsyncpa [#allocation6], 0
    %s24 = scalar_lea.sflag [#allocation6], 1
    %25 = vsyncpa %s24, 0
    loop: start=0, step=1, limit=4
    $region2: #{_lambda_.1} parent=1 // loop_pre_header
      _
    $region3: #{_lambda_.1} parent=1 // loop_header
      %s27 = sphi 0, %s31
      %p28 = scmp.ge.s32.totalorder %s27, 4
      %s37 = sphi 0, %s39
      %s40 = sphi 0, %s37
      %s41 = sphi 0, %s40
      %s57 = sphi 0, %s41
      %s61 = sphi 0, %s61
      %s63 = sphi 0, %s61
      %s64 = sphi 0, %s63
      %s78 = sphi 0, %s64
      %s82 = sphi 0, %s82
      %s84 = sphi 0, %s82
      %s85 = sphi 0, %s84
      %s99 = sphi 0, %s85
      %s103 = sphi 0, %s103
      %s105 = sphi 0, %s103
      %s106 = sphi 0, %s105
      %s120 = sphi 0, %s106
      %s124 = sphi 0, %s124
      %s126 = sphi 0, %s124
      %s127 = sphi 0, %s126
      %s141 = sphi 0, %s127
      %s145 = sphi 0, %s145
      %s147 = sphi 0, %s145
      %s148 = sphi 0, %s147
      %s162 = sphi 0, %s148
      %s166 = sphi 0, %s166
      %s168 = sphi 0, %s166
      %s169 = sphi 0, %s168
      %s183 = sphi 0, %s169
      %s187 = sphi 0, %s187
      %s189 = sphi 0, %s187
      %s190 = sphi 0, %s189
      %s204 = sphi 0, %s190
      %s208 = sphi 0, %s208
      %s210 = sphi 0, %s208
      %s211 = sphi 0, %s210
      %s225 = sphi 0, %s211
      %s229 = sphi 0, %s229
      %s231 = sphi 0, %s229
      %s232 = sphi 0, %s231
      %s246 = sphi 0, %s232
      %s250 = sphi 0, %s250
      %s252 = sphi 0, %s250
      %s253 = sphi 0, %s252
      %s267 = sphi 0, %s253
      %s271 = sphi 0, %s271
      %s273 = sphi 0, %s271
      %s274 = sphi 0, %s273
      %s288 = sphi 0, %s274
      %s292 = sphi 0, %s292
      %s294 = sphi 0, %s292
      %s295 = sphi 0, %s294
      %s309 = sphi 0, %s295
      %s315 = sphi 0, %s317
      %s318 = sphi 0, %s315
      %s319 = sphi 0, %s318
      %s335 = sphi 0, %s319
      %s341 = sphi 0, %s343
      %s344 = sphi 0, %s341
      %s345 = sphi 0, %s344
      %s361 = sphi 0, %s345
    $region4: #{_lambda_.1} parent=1 // loop_header_branch
      %30 = sbr.rel (%p28) target = $region8
    $region5: #{_lambda_.1} parent=1 // loop_body
      %s32 = ssub.s32 %s27, 1
      %s33 = ssub.s32 %s27, 2
      %s34 = sadd.s32 %s27, 1
      %s35 = ssub.s32 %s27, %s34
      %p36 = scmp.eq.s32.totalorder %s35, 0
      %s38 = sadd.s32 %s37, 1
      %s39 = scalar_select %p36, %s37, %s38
      %p42 = pneg %p36
      %p43 = scmp.eq.s32.totalorder %s27, 1
      %p44 = por %p42, %p43
      %p45 = scmp.ne.s32.totalorder %s37, %s40
      %p46 = scmp.eq.s32.totalorder %s27, 0
      %p47 = por %p45, %p46
      %p48 = scmp.ne.s32.totalorder %s37, %s40
      %p49 = scmp.eq.s32.totalorder %s32, 1
      %p50 = por %p48, %p49
      %p51 = scmp.ne.s32.totalorder %s40, %s41
      %p52 = scmp.eq.s32.totalorder %s32, 0
      %p53 = por %p51, %p52
      %p54 = scmp.ne.s32.totalorder %s40, %s41
      %p55 = scmp.eq.s32.totalorder %s33, 1
      %p56 = por %p54, %p55
      %p58 = scmp.ne.s32.totalorder %s41, %s57
      %p59 = scmp.eq.s32.totalorder %s33, 0
      %p60 = por %p58, %p59
      %s62 = sadd.s32 %s61, 1
      %p65 = scmp.eq.s32.totalorder %s27, 1
      %p66 = scmp.ne.s32.totalorder %s61, %s63
      %p67 = scmp.eq.s32.totalorder %s27, 0
      %p68 = por %p66, %p67
      %p69 = scmp.ne.s32.totalorder %s61, %s63
      %p70 = scmp.eq.s32.totalorder %s32, 1
      %p71 = por %p69, %p70
      %p72 = scmp.ne.s32.totalorder %s63, %s64
      %p73 = scmp.eq.s32.totalorder %s32, 0
      %p74 = por %p72, %p73
      %p75 = scmp.ne.s32.totalorder %s63, %s64
      %p76 = scmp.eq.s32.totalorder %s33, 1
      %p77 = por %p75, %p76
      %p79 = scmp.ne.s32.totalorder %s64, %s78
      %p80 = scmp.eq.s32.totalorder %s33, 0
      %p81 = por %p79, %p80
      %s83 = sadd.s32 %s82, 1
      %p86 = scmp.eq.s32.totalorder %s27, 1
      %p87 = scmp.ne.s32.totalorder %s82, %s84
      %p88 = scmp.eq.s32.totalorder %s27, 0
      %p89 = por %p87, %p88
      %p90 = scmp.ne.s32.totalorder %s82, %s84
      %p91 = scmp.eq.s32.totalorder %s32, 1
      %p92 = por %p90, %p91
      %p93 = scmp.ne.s32.totalorder %s84, %s85
      %p94 = scmp.eq.s32.totalorder %s32, 0
      %p95 = por %p93, %p94
      %p96 = scmp.ne.s32.totalorder %s84, %s85
      %p97 = scmp.eq.s32.totalorder %s33, 1
      %p98 = por %p96, %p97
      %p100 = scmp.ne.s32.totalorder %s85, %s99
      %p101 = scmp.eq.s32.totalorder %s33, 0
      %p102 = por %p100, %p101
      %s104 = sadd.s32 %s103, 1
      %p107 = scmp.eq.s32.totalorder %s27, 1
      %p108 = scmp.ne.s32.totalorder %s103, %s105
      %p109 = scmp.eq.s32.totalorder %s27, 0
      %p110 = por %p108, %p109
      %p111 = scmp.ne.s32.totalorder %s103, %s105
      %p112 = scmp.eq.s32.totalorder %s32, 1
      %p113 = por %p111, %p112
      %p114 = scmp.ne.s32.totalorder %s105, %s106
      %p115 = scmp.eq.s32.totalorder %s32, 0
      %p116 = por %p114, %p115
      %p117 = scmp.ne.s32.totalorder %s105, %s106
      %p118 = scmp.eq.s32.totalorder %s33, 1
      %p119 = por %p117, %p118
      %p121 = scmp.ne.s32.totalorder %s106, %s120
      %p122 = scmp.eq.s32.totalorder %s33, 0
      %p123 = por %p121, %p122
      %s125 = sadd.s32 %s124, 1
      %p128 = scmp.eq.s32.totalorder %s27, 1
      %p129 = scmp.ne.s32.totalorder %s124, %s126
      %p130 = scmp.eq.s32.totalorder %s27, 0
      %p131 = por %p129, %p130
      %p132 = scmp.ne.s32.totalorder %s124, %s126
      %p133 = scmp.eq.s32.totalorder %s32, 1
      %p134 = por %p132, %p133
      %p135 = scmp.ne.s32.totalorder %s126, %s127
      %p136 = scmp.eq.s32.totalorder %s32, 0
      %p137 = por %p135, %p136
      %p138 = scmp.ne.s32.totalorder %s126, %s127
      %p139 = scmp.eq.s32.totalorder %s33, 1
      %p140 = por %p138, %p139
      %p142 = scmp.ne.s32.totalorder %s127, %s141
      %p143 = scmp.eq.s32.totalorder %s33, 0
      %p144 = por %p142, %p143
      %s146 = sadd.s32 %s145, 1
      %p149 = scmp.eq.s32.totalorder %s27, 1
      %p150 = scmp.ne.s32.totalorder %s145, %s147
      %p151 = scmp.eq.s32.totalorder %s27, 0
      %p152 = por %p150, %p151
      %p153 = scmp.ne.s32.totalorder %s145, %s147
      %p154 = scmp.eq.s32.totalorder %s32, 1
      %p155 = por %p153, %p154
      %p156 = scmp.ne.s32.totalorder %s147, %s148
      %p157 = scmp.eq.s32.totalorder %s32, 0
      %p158 = por %p156, %p157
      %p159 = scmp.ne.s32.totalorder %s147, %s148
      %p160 = scmp.eq.s32.totalorder %s33, 1
      %p161 = por %p159, %p160
      %p163 = scmp.ne.s32.totalorder %s148, %s162
      %p164 = scmp.eq.s32.totalorder %s33, 0
      %p165 = por %p163, %p164
      %s167 = sadd.s32 %s166, 1
      %p170 = scmp.eq.s32.totalorder %s27, 1
      %p171 = scmp.ne.s32.totalorder %s166, %s168
      %p172 = scmp.eq.s32.totalorder %s27, 0
      %p173 = por %p171, %p172
      %p174 = scmp.ne.s32.totalorder %s166, %s168
      %p175 = scmp.eq.s32.totalorder %s32, 1
      %p176 = por %p174, %p175
      %p177 = scmp.ne.s32.totalorder %s168, %s169
      %p178 = scmp.eq.s32.totalorder %s32, 0
      %p179 = por %p177, %p178
      %p180 = scmp.ne.s32.totalorder %s168, %s169
      %p181 = scmp.eq.s32.totalorder %s33, 1
      %p182 = por %p180, %p181
      %p184 = scmp.ne.s32.totalorder %s169, %s183
      %p185 = scmp.eq.s32.totalorder %s33, 0
      %p186 = por %p184, %p185
      %s188 = sadd.s32 %s187, 1
      %p191 = scmp.eq.s32.totalorder %s27, 1
      %p192 = scmp.ne.s32.totalorder %s187, %s189
      %p193 = scmp.eq.s32.totalorder %s27, 0
      %p194 = por %p192, %p193
      %p195 = scmp.ne.s32.totalorder %s187, %s189
      %p196 = scmp.eq.s32.totalorder %s32, 1
      %p197 = por %p195, %p196
      %p198 = scmp.ne.s32.totalorder %s189, %s190
      %p199 = scmp.eq.s32.totalorder %s32, 0
      %p200 = por %p198, %p199
      %p201 = scmp.ne.s32.totalorder %s189, %s190
      %p202 = scmp.eq.s32.totalorder %s33, 1
      %p203 = por %p201, %p202
      %p205 = scmp.ne.s32.totalorder %s190, %s204
      %p206 = scmp.eq.s32.totalorder %s33, 0
      %p207 = por %p205, %p206
      %s209 = sadd.s32 %s208, 1
      %p212 = scmp.eq.s32.totalorder %s27, 1
      %p213 = scmp.ne.s32.totalorder %s208, %s210
      %p214 = scmp.eq.s32.totalorder %s27, 0
      %p215 = por %p213, %p214
      %p216 = scmp.ne.s32.totalorder %s208, %s210
      %p217 = scmp.eq.s32.totalorder %s32, 1
      %p218 = por %p216, %p217
      %p219 = scmp.ne.s32.totalorder %s210, %s211
      %p220 = scmp.eq.s32.totalorder %s32, 0
      %p221 = por %p219, %p220
      %p222 = scmp.ne.s32.totalorder %s210, %s211
      %p223 = scmp.eq.s32.totalorder %s33, 1
      %p224 = por %p222, %p223
      %p226 = scmp.ne.s32.totalorder %s211, %s225
      %p227 = scmp.eq.s32.totalorder %s33, 0
      %p228 = por %p226, %p227
      %s230 = sadd.s32 %s229, 1
      %p233 = scmp.eq.s32.totalorder %s27, 1
      %p234 = scmp.ne.s32.totalorder %s229, %s231
      %p235 = scmp.eq.s32.totalorder %s27, 0
      %p236 = por %p234, %p235
      %p237 = scmp.ne.s32.totalorder %s229, %s231
      %p238 = scmp.eq.s32.totalorder %s32, 1
      %p239 = por %p237, %p238
      %p240 = scmp.ne.s32.totalorder %s231, %s232
      %p241 = scmp.eq.s32.totalorder %s32, 0
      %p242 = por %p240, %p241
      %p243 = scmp.ne.s32.totalorder %s231, %s232
      %p244 = scmp.eq.s32.totalorder %s33, 1
      %p245 = por %p243, %p244
      %p247 = scmp.ne.s32.totalorder %s232, %s246
      %p248 = scmp.eq.s32.totalorder %s33, 0
      %p249 = por %p247, %p248
      %s251 = sadd.s32 %s250, 1
      %p254 = scmp.eq.s32.totalorder %s27, 1
      %p255 = scmp.ne.s32.totalorder %s250, %s252
      %p256 = scmp.eq.s32.totalorder %s27, 0
      %p257 = por %p255, %p256
      %p258 = scmp.ne.s32.totalorder %s250, %s252
      %p259 = scmp.eq.s32.totalorder %s32, 1
      %p260 = por %p258, %p259
      %p261 = scmp.ne.s32.totalorder %s252, %s253
      %p262 = scmp.eq.s32.totalorder %s32, 0
      %p263 = por %p261, %p262
      %p264 = scmp.ne.s32.totalorder %s252, %s253
      %p265 = scmp.eq.s32.totalorder %s33, 1
      %p266 = por %p264, %p265
      %p268 = scmp.ne.s32.totalorder %s253, %s267
      %p269 = scmp.eq.s32.totalorder %s33, 0
      %p270 = por %p268, %p269
      %s272 = sadd.s32 %s271, 1
      %p275 = scmp.eq.s32.totalorder %s27, 1
      %p276 = scmp.ne.s32.totalorder %s271, %s273
      %p277 = scmp.eq.s32.totalorder %s27, 0
      %p278 = por %p276, %p277
      %p279 = scmp.ne.s32.totalorder %s271, %s273
      %p280 = scmp.eq.s32.totalorder %s32, 1
      %p281 = por %p279, %p280
      %p282 = scmp.ne.s32.totalorder %s273, %s274
      %p283 = scmp.eq.s32.totalorder %s32, 0
      %p284 = por %p282, %p283
      %p285 = scmp.ne.s32.totalorder %s273, %s274
      %p286 = scmp.eq.s32.totalorder %s33, 1
      %p287 = por %p285, %p286
      %p289 = scmp.ne.s32.totalorder %s274, %s288
      %p290 = scmp.eq.s32.totalorder %s33, 0
      %p291 = por %p289, %p290
      %s293 = sadd.s32 %s292, 1
      %p296 = scmp.eq.s32.totalorder %s27, 1
      %p297 = scmp.ne.s32.totalorder %s292, %s294
      %p298 = scmp.eq.s32.totalorder %s27, 0
      %p299 = por %p297, %p298
      %p300 = scmp.ne.s32.totalorder %s292, %s294
      %p301 = scmp.eq.s32.totalorder %s32, 1
      %p302 = por %p300, %p301
      %p303 = scmp.ne.s32.totalorder %s294, %s295
      %p304 = scmp.eq.s32.totalorder %s32, 0
      %p305 = por %p303, %p304
      %p306 = scmp.ne.s32.totalorder %s294, %s295
      %p307 = scmp.eq.s32.totalorder %s33, 1
      %p308 = por %p306, %p307
      %p310 = scmp.ne.s32.totalorder %s295, %s309
      %p311 = scmp.eq.s32.totalorder %s33, 0
      %p312 = por %p310, %p311
      %s313 = ssub.s32 %s27, %s34
      %p314 = scmp.eq.s32.totalorder %s313, 0
      %s316 = sadd.s32 %s315, 1
      %s317 = scalar_select %p314, %s315, %s316
      %p320 = pneg %p314
      %p321 = scmp.eq.s32.totalorder %s27, 1
      %p322 = por %p320, %p321
      %p323 = scmp.ne.s32.totalorder %s315, %s318
      %p324 = scmp.eq.s32.totalorder %s27, 0
      %p325 = por %p323, %p324
      %p326 = scmp.ne.s32.totalorder %s315, %s318
      %p327 = scmp.eq.s32.totalorder %s32, 1
      %p328 = por %p326, %p327
      %p329 = scmp.ne.s32.totalorder %s318, %s319
      %p330 = scmp.eq.s32.totalorder %s32, 0
      %p331 = por %p329, %p330
      %p332 = scmp.ne.s32.totalorder %s318, %s319
      %p333 = scmp.eq.s32.totalorder %s33, 1
      %p334 = por %p332, %p333
      %p336 = scmp.ne.s32.totalorder %s319, %s335
      %p337 = scmp.eq.s32.totalorder %s33, 0
      %p338 = por %p336, %p337
      %s339 = ssub.s32 %s27, %s34
      %p340 = scmp.eq.s32.totalorder %s339, 0
      %s342 = sadd.s32 %s341, 1
      %s343 = scalar_select %p340, %s341, %s342
      %p346 = pneg %p340
      %p347 = scmp.eq.s32.totalorder %s27, 1
      %p348 = por %p346, %p347
      %p349 = scmp.ne.s32.totalorder %s341, %s344
      %p350 = scmp.eq.s32.totalorder %s27, 0
      %p351 = por %p349, %p350
      %p352 = scmp.ne.s32.totalorder %s341, %s344
      %p353 = scmp.eq.s32.totalorder %s32, 1
      %p354 = por %p352, %p353
      %p355 = scmp.ne.s32.totalorder %s344, %s345
      %p356 = scmp.eq.s32.totalorder %s32, 0
      %p357 = por %p355, %p356
      %p358 = scmp.ne.s32.totalorder %s344, %s345
      %p359 = scmp.eq.s32.totalorder %s33, 1
      %p360 = por %p358, %p359
      %p362 = scmp.ne.s32.totalorder %s345, %s361
      %p363 = scmp.eq.s32.totalorder %s33, 0
      %p364 = por %p362, %p363
      %p365 = scmp.le.s32.totalorder 1, %s27
      %p366 = scmp.lt.s32.totalorder %s27, 3
      %p367 = pnand %p365, %p366
      %p368 = pneg %p367
      // Predicated region
      $region9: #{_lambda_.1} parent=5 // pred_check
        _
      $region10: #{_lambda_.1} parent=5 // pred_check_branch
        %370 = sbr.rel (%p367) target = $region12
      $region11: #{_lambda_.1} parent=5 // pred_region
        %s371 = ssub.s32 %s27, 1
        // Predicated region
        $region13: #{_lambda_.1} parent=11 // pred_check
          %p372 = pneg %p74
        $region14: #{_lambda_.1} parent=11 // pred_check_branch
          %374 = sbr.rel (%p372) target = $region16
        $region15: #{_lambda_.1} parent=11 // pred_region
          _
        $region16: #{_lambda_.1} parent=11 // pred_fallthru
          _
        // Predicated region
        $region17: #{_lambda_.1} parent=11 // pred_check
          %p375 = pneg %p95
        $region18: #{_lambda_.1} parent=11 // pred_check_branch
          %377 = sbr.rel (%p375) target = $region20
        $region19: #{_lambda_.1} parent=11 // pred_region
          _
        $region20: #{_lambda_.1} parent=11 // pred_fallthru
          _
        // Predicated region
        $region21: #{_lambda_.1} parent=11 // pred_check
          %p378 = pneg %p116
        $region22: #{_lambda_.1} parent=11 // pred_check_branch
          %380 = sbr.rel (%p378) target = $region24
        $region23: #{_lambda_.1} parent=11 // pred_region
          _
        $region24: #{_lambda_.1} parent=11 // pred_fallthru
          _
        // Predicated region
        $region25: #{_lambda_.1} parent=11 // pred_check
          %p381 = pneg %p137
        $region26: #{_lambda_.1} parent=11 // pred_check_branch
          %383 = sbr.rel (%p381) target = $region28
        $region27: #{_lambda_.1} parent=11 // pred_region
          _
        $region28: #{_lambda_.1} parent=11 // pred_fallthru
          _
        // Predicated region
        $region29: #{_lambda_.1} parent=11 // pred_check
          %p384 = pneg %p158
        $region30: #{_lambda_.1} parent=11 // pred_check_branch
          %386 = sbr.rel (%p384) target = $region32
        $region31: #{_lambda_.1} parent=11 // pred_region
          _
        $region32: #{_lambda_.1} parent=11 // pred_fallthru
          _
        // Predicated region
        $region33: #{_lambda_.1} parent=11 // pred_check
          %p387 = pneg %p179
        $region34: #{_lambda_.1} parent=11 // pred_check_branch
          %389 = sbr.rel (%p387) target = $region36
        $region35: #{_lambda_.1} parent=11 // pred_region
          _
        $region36: #{_lambda_.1} parent=11 // pred_fallthru
          _
        // Predicated region
        $region37: #{_lambda_.1} parent=11 // pred_check
          %p390 = pneg %p200
        $region38: #{_lambda_.1} parent=11 // pred_check_branch
          %392 = sbr.rel (%p390) target = $region40
        $region39: #{_lambda_.1} parent=11 // pred_region
          _
        $region40: #{_lambda_.1} parent=11 // pred_fallthru
          _
        // Predicated region
        $region41: #{_lambda_.1} parent=11 // pred_check
          %p393 = pneg %p221
        $region42: #{_lambda_.1} parent=11 // pred_check_branch
          %395 = sbr.rel (%p393) target = $region44
        $region43: #{_lambda_.1} parent=11 // pred_region
          _
        $region44: #{_lambda_.1} parent=11 // pred_fallthru
          _
        // Predicated region
        $region45: #{_lambda_.1} parent=11 // pred_check
          %p396 = pneg %p242
        $region46: #{_lambda_.1} parent=11 // pred_check_branch
          %398 = sbr.rel (%p396) target = $region48
        $region47: #{_lambda_.1} parent=11 // pred_region
          _
        $region48: #{_lambda_.1} parent=11 // pred_fallthru
          _
        // Predicated region
        $region49: #{_lambda_.1} parent=11 // pred_check
          %p399 = pneg %p263
        $region50: #{_lambda_.1} parent=11 // pred_check_branch
          %401 = sbr.rel (%p399) target = $region52
        $region51: #{_lambda_.1} parent=11 // pred_region
          _
        $region52: #{_lambda_.1} parent=11 // pred_fallthru
          _
        // Predicated region
        $region53: #{_lambda_.1} parent=11 // pred_check
          %p402 = pneg %p284
        $region54: #{_lambda_.1} parent=11 // pred_check_branch
          %404 = sbr.rel (%p402) target = $region56
        $region55: #{_lambda_.1} parent=11 // pred_region
          _
        $region56: #{_lambda_.1} parent=11 // pred_fallthru
          _
        // Predicated region
        $region57: #{_lambda_.1} parent=11 // pred_check
          %p405 = pneg %p305
        $region58: #{_lambda_.1} parent=11 // pred_check_branch
          %407 = sbr.rel (%p405) target = $region60
        $region59: #{_lambda_.1} parent=11 // pred_region
          _
        $region60: #{_lambda_.1} parent=11 // pred_fallthru
          _
      $region12: #{_lambda_.1} parent=5 // pred_fallthru
        _
      %p408 = scmp.lt.s32.totalorder %s27, 2
      // Predicated region
      $region61: #{_lambda_.1} parent=5 // pred_check
        %p409 = pneg %p408
      $region62: #{_lambda_.1} parent=5 // pred_check_branch
        %411 = sbr.rel (%p409) target = $region64
      $region63: #{_lambda_.1} parent=5 // pred_region
        // Predicated region
        $region65: #{_lambda_.1} parent=63 // pred_check
          %p412 = pneg %p47
        $region66: #{_lambda_.1} parent=63 // pred_check_branch
          %414 = sbr.rel (%p412) target = $region68
        $region67: #{_lambda_.1} parent=63 // pred_region
          %p415 = scmp.lt.s32.totalorder %s27, 1
          %s416 = scalar_select %p415, %s27, 1
          %s417 = smul.addr %s416, 72
          %s418 = smul.addr %s417, 4
          %s419 = scalar_lea.vmem %s0, %s418
        $region68: #{_lambda_.1} parent=63 // pred_fallthru
          _
      $region64: #{_lambda_.1} parent=5 // pred_fallthru
        _
      %p420 = scmp.le.s32.totalorder 1, %s27
      %p421 = scmp.lt.s32.totalorder %s27, 3
      %p422 = pnand %p420, %p421
      %p423 = pneg %p422
      // Predicated region
      $region69: #{_lambda_.1} parent=5 // pred_check
        _
      $region70: #{_lambda_.1} parent=5 // pred_check_branch
        %425 = sbr.rel (%p422) target = $region72
      $region71: #{_lambda_.1} parent=5 // pred_region
        %s426 = ssub.s32 %s27, 1
        %p427 = scmp.lt.s32.totalorder %s32, 1
        %s428 = scalar_select %p427, %s32, 1
        %s429 = smul.addr %s428, 72
        %s430 = smul.addr %s429, 4
        %s431 = scalar_lea.vmem %s0, %s430
        %p432 = pneg %p53
        %p433 = pneg %p50
        %p434 = pneg %p74
        %p435 = pneg %p71
        %p436 = pneg %p95
        %p437 = pneg %p92
        %p438 = pneg %p116
        %p439 = pneg %p113
        %p440 = pneg %p137
        %p441 = pneg %p134
        %p442 = pneg %p158
        %p443 = pneg %p155
        %p444 = pneg %p179
        %p445 = pneg %p176
        %p446 = pneg %p200
        %p447 = pneg %p197
        %p448 = pneg %p221
        %p449 = pneg %p218
        %p450 = pneg %p242
        %p451 = pneg %p239
        %p452 = pneg %p263
        %p453 = pneg %p260
        %p454 = pneg %p284
        %p455 = pneg %p281
        %p456 = pneg %p305
        %p457 = pneg %p302
        %p458 = pneg %p331
        %p459 = pneg %p328
        %s460 = sand.u32 %s318, 1
        %s461 = scalar_lea.sflag [#allocation4], %s460
        %s462 = sand.u32 %s318, 1
        %s463 = scalar_lea.vmem [#allocation3], %s462
        %p464 = pneg %p357
        %p465 = pneg %p354
        %s466 = sand.u32 %s344, 1
        %s467 = scalar_lea.sflag [#allocation6], %s466
        %s468 = sand.u32 %s344, 1
        %s469 = scalar_lea.vmem [#allocation5], %s468
        %p470 = scmp.lt.s32.totalorder %s32, 1
        %s471 = scalar_select %p470, %s32, 1
        %s472 = smul.addr %s471, 72
        %s473 = smul.addr %s472, 4
        %s474 = scalar_lea.vmem %s0, %s473
        %v476 = vld [vmem:[%s474] sm:$0xf]
        %v477 = vld [vmem:[%s474 + $0x4] sm:$0xf]
        %v478 = vld [vmem:[%s474 + $0x8] sm:$0xf]
        %v479 = vld [vmem:[%s474 + $0xc] sm:$0xf]
        %v480 = vld [vmem:[%s474 + $0x10] sm:$0xf]
        %v481 = vld [vmem:[%s474 + $0x14] sm:$0xf]
        %v482 = vld [vmem:[%s474 + $0x18] sm:$0xf]
        %v483 = vld [vmem:[%s474 + $0x1c] sm:$0xf]
        %v484 = vld [vmem:[%s474 + $0x20] sm:$0xf]
        %v485 = vld [vmem:[%s474 + $0x24] sm:$0xf]
        %v486 = vld [vmem:[%s474 + $0x28] sm:$0xf]
        %v487 = vld [vmem:[%s474 + $0x2c] sm:$0xf]
        %v488 = vld [vmem:[%s474 + $0x30] sm:$0xf]
        %v489 = vld [vmem:[%s474 + $0x34] sm:$0xf]
        %v490 = vld [vmem:[%s474 + $0x38] sm:$0xf]
        %v491 = vld [vmem:[%s474 + $0x3c] sm:$0xf]
        %v492 = vld [vmem:[%s474 + $0x40] sm:$0xf]
        %v493 = vld [vmem:[%s474 + $0x44] sm:$0xf]
        %v494 = vld [vmem:[%s474 + $0x48] sm:$0xf]
        %v495 = vld [vmem:[%s474 + $0x4c] sm:$0xf]
        %v496 = vld [vmem:[%s474 + $0x50] sm:$0xf]
        %v497 = vld [vmem:[%s474 + $0x54] sm:$0xf]
        %v498 = vld [vmem:[%s474 + $0x58] sm:$0xf]
        %v499 = vld [vmem:[%s474 + $0x5c] sm:$0xf]
        %v500 = vld [vmem:[%s474 + $0x60] sm:$0xf]
        %v501 = vld [vmem:[%s474 + $0x64] sm:$0xf]
        %v502 = vld [vmem:[%s474 + $0x68] sm:$0xf]
        %v503 = vld [vmem:[%s474 + $0x6c] sm:$0xf]
        %v504 = vld [vmem:[%s474 + $0x70] sm:$0xf]
        %v505 = vld [vmem:[%s474 + $0x74] sm:$0xf]
        %v506 = vld [vmem:[%s474 + $0x78] sm:$0xf]
        %v507 = vld [vmem:[%s474 + $0x7c] sm:$0xf]
        %v508 = vld [vmem:[%s474 + $0x80] sm:$0xf]
        %v509 = vld [vmem:[%s474 + $0x84] sm:$0xf]
        %v510 = vld [vmem:[%s474 + $0x88] sm:$0xf]
        %v511 = vld [vmem:[%s474 + $0x8c] sm:$0xf]
        %v512 = vld [vmem:[%s474 + $0x90] sm:$0xf]
        %v513 = vld [vmem:[%s474 + $0x94] sm:$0xf]
        %v514 = vld [vmem:[%s474 + $0x98] sm:$0xf]
        %v515 = vld [vmem:[%s474 + $0x9c] sm:$0xf]
        %v516 = vld [vmem:[%s474 + $0xa0] sm:$0xf]
        %v517 = vld [vmem:[%s474 + $0xa4] sm:$0xf]
        %v518 = vld [vmem:[%s474 + $0xa8] sm:$0xf]
        %v519 = vld [vmem:[%s474 + $0xac] sm:$0xf]
        %v520 = vld [vmem:[%s474 + $0xb0] sm:$0xf]
        %v521 = vld [vmem:[%s474 + $0xb4] sm:$0xf]
        %v522 = vld [vmem:[%s474 + $0xb8] sm:$0xf]
        %v523 = vld [vmem:[%s474 + $0xbc] sm:$0xf]
        %v524 = vld [vmem:[%s474 + $0xc0] sm:$0xf]
        %v525 = vld [vmem:[%s474 + $0xc4] sm:$0xf]
        %v526 = vld [vmem:[%s474 + $0xc8] sm:$0xf]
        %v527 = vld [vmem:[%s474 + $0xcc] sm:$0xf]
        %v528 = vld [vmem:[%s474 + $0xd0] sm:$0xf]
        %v529 = vld [vmem:[%s474 + $0xd4] sm:$0xf]
        %v530 = vld [vmem:[%s474 + $0xd8] sm:$0xf]
        %v531 = vld [vmem:[%s474 + $0xdc] sm:$0xf]
        %v532 = vld [vmem:[%s474 + $0xe0] sm:$0xf]
        %v533 = vld [vmem:[%s474 + $0xe4] sm:$0xf]
        %v534 = vld [vmem:[%s474 + $0xe8] sm:$0xf]
        %v535 = vld [vmem:[%s474 + $0xec] sm:$0xf]
        %v536 = vld [vmem:[%s474 + $0xf0] sm:$0xf]
        %v537 = vld [vmem:[%s474 + $0xf4] sm:$0xf]
        %v538 = vld [vmem:[%s474 + $0xf8] sm:$0xf]
        %v539 = vld [vmem:[%s474 + $0xfc] sm:$0xf]
        %v540 = vld [vmem:[%s474 + $0x100] sm:$0xf]
        %v541 = vld [vmem:[%s474 + $0x104] sm:$0xf]
        %v542 = vld [vmem:[%s474 + $0x108] sm:$0xf]
        %v543 = vld [vmem:[%s474 + $0x10c] sm:$0xf]
        %v544 = vld [vmem:[%s474 + $0x110] sm:$0xf]
        %v545 = vld [vmem:[%s474 + $0x114] sm:$0xf]
        %v546 = vld [vmem:[%s474 + $0x118] sm:$0xf]
        %v547 = vld [vmem:[%s474 + $0x11c] sm:$0xf]
        %v548 = vld [vmem:[%s1] sm:$0xf]
        %v549 = vld [vmem:[%s1 + $0x4] sm:$0xf]
        %v550 = vld [vmem:[%s1 + $0x8] sm:$0xf]
        %v551 = vld [vmem:[%s1 + $0xc] sm:$0xf]
        %v624 = vunpack.c.l.b16 %v476
        %v625 = vunpack.c.l.b16 %v477
        %v626 = vunpack.c.l.b16 %v478
        %v627 = vunpack.c.l.b16 %v479
        %v628 = vunpack.c.l.b16 %v480
        %v629 = vunpack.c.l.b16 %v481
        %v630 = vunpack.c.l.b16 %v482
        %v631 = vunpack.c.l.b16 %v483
        %v632 = vunpack.c.l.b16 %v484
        %v633 = vunpack.c.l.b16 %v485
        %v634 = vunpack.c.l.b16 %v486
        %v635 = vunpack.c.l.b16 %v487
        %v636 = vunpack.c.l.b16 %v488
        %v637 = vunpack.c.l.b16 %v489
        %v638 = vunpack.c.l.b16 %v490
        %v639 = vunpack.c.l.b16 %v491
        %v640 = vunpack.c.l.b16 %v492
        %v641 = vunpack.c.l.b16 %v493
        %v642 = vunpack.c.l.b16 %v494
        %v643 = vunpack.c.l.b16 %v495
        %v644 = vunpack.c.l.b16 %v496
        %v645 = vunpack.c.l.b16 %v497
        %v646 = vunpack.c.l.b16 %v498
        %v647 = vunpack.c.l.b16 %v499
        %v648 = vunpack.c.l.b16 %v500
        %v649 = vunpack.c.l.b16 %v501
        %v650 = vunpack.c.l.b16 %v502
        %v651 = vunpack.c.l.b16 %v503
        %v652 = vunpack.c.l.b16 %v504
        %v653 = vunpack.c.l.b16 %v505
        %v654 = vunpack.c.l.b16 %v506
        %v655 = vunpack.c.l.b16 %v507
        %v656 = vunpack.c.l.b16 %v508
        %v657 = vunpack.c.l.b16 %v509
        %v658 = vunpack.c.l.b16 %v510
        %v659 = vunpack.c.l.b16 %v511
        %v660 = vunpack.c.l.b16 %v512
        %v661 = vunpack.c.l.b16 %v513
        %v662 = vunpack.c.l.b16 %v514
        %v663 = vunpack.c.l.b16 %v515
        %v664 = vunpack.c.l.b16 %v516
        %v665 = vunpack.c.l.b16 %v517
        %v666 = vunpack.c.l.b16 %v518
        %v667 = vunpack.c.l.b16 %v519
        %v668 = vunpack.c.l.b16 %v520
        %v669 = vunpack.c.l.b16 %v521
        %v670 = vunpack.c.l.b16 %v522
        %v671 = vunpack.c.l.b16 %v523
        %v672 = vunpack.c.l.b16 %v524
        %v673 = vunpack.c.l.b16 %v525
        %v674 = vunpack.c.l.b16 %v526
        %v675 = vunpack.c.l.b16 %v527
        %v676 = vunpack.c.l.b16 %v528
        %v677 = vunpack.c.l.b16 %v529
        %v678 = vunpack.c.l.b16 %v530
        %v679 = vunpack.c.l.b16 %v531
        %v680 = vunpack.c.l.b16 %v532
        %v681 = vunpack.c.l.b16 %v533
        %v682 = vunpack.c.l.b16 %v534
        %v683 = vunpack.c.l.b16 %v535
        %v684 = vunpack.c.l.b16 %v536
        %v685 = vunpack.c.l.b16 %v537
        %v686 = vunpack.c.l.b16 %v538
        %v687 = vunpack.c.l.b16 %v539
        %v688 = vunpack.c.l.b16 %v540
        %v689 = vunpack.c.l.b16 %v541
        %v690 = vunpack.c.l.b16 %v542
        %v691 = vunpack.c.l.b16 %v543
        %v692 = vunpack.c.l.b16 %v544
        %v693 = vunpack.c.l.b16 %v545
        %v694 = vunpack.c.l.b16 %v546
        %v695 = vunpack.c.l.b16 %v547
        %v696 = vpack.c.b16 %v625, %v624
        %v697 = vpack.c.b16 %v627, %v626
        %v698 = vpack.c.b16 %v629, %v628
        %v699 = vpack.c.b16 %v631, %v630
        %v700 = vpack.c.b16 %v633, %v632
        %v701 = vpack.c.b16 %v635, %v634
        %v702 = vpack.c.b16 %v637, %v636
        %v703 = vpack.c.b16 %v639, %v638
        %v704 = vpack.c.b16 %v641, %v640
        %v705 = vpack.c.b16 %v643, %v642
        %v706 = vpack.c.b16 %v645, %v644
        %v707 = vpack.c.b16 %v647, %v646
        %v708 = vpack.c.b16 %v649, %v648
        %v709 = vpack.c.b16 %v651, %v650
        %v710 = vpack.c.b16 %v653, %v652
        %v711 = vpack.c.b16 %v655, %v654
        %v712 = vpack.c.b16 %v657, %v656
        %v713 = vpack.c.b16 %v659, %v658
        %v714 = vpack.c.b16 %v661, %v660
        %v715 = vpack.c.b16 %v663, %v662
        %v716 = vpack.c.b16 %v665, %v664
        %v717 = vpack.c.b16 %v667, %v666
        %v718 = vpack.c.b16 %v669, %v668
        %v719 = vpack.c.b16 %v671, %v670
        %v720 = vpack.c.b16 %v673, %v672
        %v721 = vpack.c.b16 %v675, %v674
        %v722 = vpack.c.b16 %v677, %v676
        %v723 = vpack.c.b16 %v679, %v678
        %v724 = vpack.c.b16 %v681, %v680
        %v725 = vpack.c.b16 %v683, %v682
        %v726 = vpack.c.b16 %v685, %v684
        %v727 = vpack.c.b16 %v687, %v686
        %v728 = vpack.c.b16 %v689, %v688
        %v729 = vpack.c.b16 %v691, %v690
        %v730 = vpack.c.b16 %v693, %v692
        %v731 = vpack.c.b16 %v695, %v694
        %v736 = vunpack.c.l.b16 %v548
        %v737 = vunpack.c.l.b16 %v549
        %v738 = vunpack.c.l.b16 %v550
        %v739 = vunpack.c.l.b16 %v551
        %v740 = vpack.c.b16 %v737, %v736
        %v741 = vpack.c.b16 %v739, %v738
        %vm744 = vcmask 261120
        %v746 = vsel %vm744, %v696, 0
        %v749 = vsel %vm744, %v697, 0
        %v752 = vsel %vm744, %v698, 0
        %v755 = vsel %vm744, %v699, 0
        %v758 = vsel %vm744, %v700, 0
        %v761 = vsel %vm744, %v701, 0
        %v764 = vsel %vm744, %v702, 0
        %v767 = vsel %vm744, %v703, 0
        %v770 = vsel %vm744, %v704, 0
        %v773 = vsel %vm744, %v705, 0
        %v776 = vsel %vm744, %v706, 0
        %v779 = vsel %vm744, %v707, 0
        %v782 = vsel %vm744, %v708, 0
        %v785 = vsel %vm744, %v709, 0
        %v788 = vsel %vm744, %v710, 0
        %v791 = vsel %vm744, %v711, 0
        %v794 = vsel %vm744, %v712, 0
        %v797 = vsel %vm744, %v713, 0
        %v800 = vsel %vm744, %v714, 0
        %v803 = vsel %vm744, %v715, 0
        %v806 = vsel %vm744, %v716, 0
        %v809 = vsel %vm744, %v717, 0
        %v812 = vsel %vm744, %v718, 0
        %v815 = vsel %vm744, %v719, 0
        %v818 = vsel %vm744, %v720, 0
        %v821 = vsel %vm744, %v721, 0
        %v824 = vsel %vm744, %v722, 0
        %v827 = vsel %vm744, %v723, 0
        %v830 = vsel %vm744, %v724, 0
        %v833 = vsel %vm744, %v725, 0
        %v836 = vsel %vm744, %v726, 0
        %v839 = vsel %vm744, %v727, 0
        %v842 = vsel %vm744, %v728, 0
        %v845 = vsel %vm744, %v729, 0
        %v848 = vsel %vm744, %v730, 0
        %v851 = vsel %vm744, %v731, 0
        %853 = vmatpush.bf16.msra.mxu0 0
        %854 = vmatpush.bf16.msra.mxu0 0
        %855 = vmatpush.bf16.msra.mxu0 0
        %856 = vmatpush.bf16.msra.mxu0 0
        %857 = vmatpush.bf16.msra.mxu0 0
        %858 = vmatpush.bf16.msra.mxu0 0
        %859 = vmatpush.bf16.msra.mxu0 %v741
        %860 = vmatpush.bf16.msra.mxu0 %v740
        %861 = vmatmul.bf16.gmra.mxu0 %v746
        %v862 = vpop.f32.mrf.mxu0
        %v863 = vadd.f32 0.0, %v862
        %v864 = vpop.f32.mrf.mxu0
        %v865 = vadd.f32 0.0, %v864
        %866 = vmatmul.bf16.gmra.mxu0 %v749
        %v867 = vpop.f32.mrf.mxu0
        %v868 = vadd.f32 0.0, %v867
        %v869 = vpop.f32.mrf.mxu0
        %v870 = vadd.f32 0.0, %v869
        %871 = vmatmul.bf16.gmra.mxu0 %v752
        %v872 = vpop.f32.mrf.mxu0
        %v873 = vadd.f32 0.0, %v872
        %v874 = vpop.f32.mrf.mxu0
        %v875 = vadd.f32 0.0, %v874
        %876 = vmatmul.bf16.gmra.mxu0 %v755
        %v877 = vpop.f32.mrf.mxu0
        %v878 = vadd.f32 0.0, %v877
        %v879 = vpop.f32.mrf.mxu0
        %v880 = vadd.f32 0.0, %v879
        %881 = vmatmul.bf16.gmra.mxu0 %v758
        %v882 = vpop.f32.mrf.mxu0
        %v883 = vadd.f32 0.0, %v882
        %v884 = vpop.f32.mrf.mxu0
        %v885 = vadd.f32 0.0, %v884
        %886 = vmatmul.bf16.gmra.mxu0 %v761
        %v887 = vpop.f32.mrf.mxu0
        %v888 = vadd.f32 0.0, %v887
        %v889 = vpop.f32.mrf.mxu0
        %v890 = vadd.f32 0.0, %v889
        %891 = vmatmul.bf16.gmra.mxu0 %v764
        %v892 = vpop.f32.mrf.mxu0
        %v893 = vadd.f32 0.0, %v892
        %v894 = vpop.f32.mrf.mxu0
        %v895 = vadd.f32 0.0, %v894
        %896 = vmatmul.bf16.gmra.mxu0 %v767
        %v897 = vpop.f32.mrf.mxu0
        %v898 = vadd.f32 0.0, %v897
        %v899 = vpop.f32.mrf.mxu0
        %v900 = vadd.f32 0.0, %v899
        %901 = vmatmul.bf16.gmra.mxu0 %v770
        %v902 = vpop.f32.mrf.mxu0
        %v903 = vadd.f32 0.0, %v902
        %v904 = vpop.f32.mrf.mxu0
        %v905 = vadd.f32 0.0, %v904
        %906 = vmatmul.bf16.gmra.mxu0 %v773
        %v907 = vpop.f32.mrf.mxu0
        %v908 = vadd.f32 0.0, %v907
        %v909 = vpop.f32.mrf.mxu0
        %v910 = vadd.f32 0.0, %v909
        %911 = vmatmul.bf16.gmra.mxu0 %v776
        %v912 = vpop.f32.mrf.mxu0
        %v913 = vadd.f32 0.0, %v912
        %v914 = vpop.f32.mrf.mxu0
        %v915 = vadd.f32 0.0, %v914
        %916 = vmatmul.bf16.gmra.mxu0 %v779
        %v917 = vpop.f32.mrf.mxu0
        %v918 = vadd.f32 0.0, %v917
        %v919 = vpop.f32.mrf.mxu0
        %v920 = vadd.f32 0.0, %v919
        %921 = vmatmul.bf16.gmra.mxu0 %v782
        %v922 = vpop.f32.mrf.mxu0
        %v923 = vadd.f32 0.0, %v922
        %v924 = vpop.f32.mrf.mxu0
        %v925 = vadd.f32 0.0, %v924
        %926 = vmatmul.bf16.gmra.mxu0 %v785
        %v927 = vpop.f32.mrf.mxu0
        %v928 = vadd.f32 0.0, %v927
        %v929 = vpop.f32.mrf.mxu0
        %v930 = vadd.f32 0.0, %v929
        %931 = vmatmul.bf16.gmra.mxu0 %v788
        %v932 = vpop.f32.mrf.mxu0
        %v933 = vadd.f32 0.0, %v932
        %v934 = vpop.f32.mrf.mxu0
        %v935 = vadd.f32 0.0, %v934
        %936 = vmatmul.bf16.gmra.mxu0 %v791
        %v937 = vpop.f32.mrf.mxu0
        %v938 = vadd.f32 0.0, %v937
        %v939 = vpop.f32.mrf.mxu0
        %v940 = vadd.f32 0.0, %v939
        %941 = vmatmul.bf16.gmra.mxu0 %v794
        %v942 = vpop.f32.mrf.mxu0
        %v943 = vadd.f32 0.0, %v942
        %v944 = vpop.f32.mrf.mxu0
        %v945 = vadd.f32 0.0, %v944
        %946 = vmatmul.bf16.gmra.mxu0 %v797
        %v947 = vpop.f32.mrf.mxu0
        %v948 = vadd.f32 0.0, %v947
        %v949 = vpop.f32.mrf.mxu0
        %v950 = vadd.f32 0.0, %v949
        %951 = vmatmul.bf16.gmra.mxu0 %v800
        %v952 = vpop.f32.mrf.mxu0
        %v953 = vadd.f32 0.0, %v952
        %v954 = vpop.f32.mrf.mxu0
        %v955 = vadd.f32 0.0, %v954
        %956 = vmatmul.bf16.gmra.mxu0 %v803
        %v957 = vpop.f32.mrf.mxu0
        %v958 = vadd.f32 0.0, %v957
        %v959 = vpop.f32.mrf.mxu0
        %v960 = vadd.f32 0.0, %v959
        %961 = vmatmul.bf16.gmra.mxu0 %v806
        %v962 = vpop.f32.mrf.mxu0
        %v963 = vadd.f32 0.0, %v962
        %v964 = vpop.f32.mrf.mxu0
        %v965 = vadd.f32 0.0, %v964
        %966 = vmatmul.bf16.gmra.mxu0 %v809
        %v967 = vpop.f32.mrf.mxu0
        %v968 = vadd.f32 0.0, %v967
        %v969 = vpop.f32.mrf.mxu0
        %v970 = vadd.f32 0.0, %v969
        %971 = vmatmul.bf16.gmra.mxu0 %v812
        %v972 = vpop.f32.mrf.mxu0
        %v973 = vadd.f32 0.0, %v972
        %v974 = vpop.f32.mrf.mxu0
        %v975 = vadd.f32 0.0, %v974
        %976 = vmatmul.bf16.gmra.mxu0 %v815
        %v977 = vpop.f32.mrf.mxu0
        %v978 = vadd.f32 0.0, %v977
        %v979 = vpop.f32.mrf.mxu0
        %v980 = vadd.f32 0.0, %v979
        %981 = vmatmul.bf16.gmra.mxu0 %v818
        %v982 = vpop.f32.mrf.mxu0
        %v983 = vadd.f32 0.0, %v982
        %v984 = vpop.f32.mrf.mxu0
        %v985 = vadd.f32 0.0, %v984
        %986 = vmatmul.bf16.gmra.mxu0 %v821
        %v987 = vpop.f32.mrf.mxu0
        %v988 = vadd.f32 0.0, %v987
        %v989 = vpop.f32.mrf.mxu0
        %v990 = vadd.f32 0.0, %v989
        %991 = vmatmul.bf16.gmra.mxu0 %v824
        %v992 = vpop.f32.mrf.mxu0
        %v993 = vadd.f32 0.0, %v992
        %v994 = vpop.f32.mrf.mxu0
        %v995 = vadd.f32 0.0, %v994
        %996 = vmatmul.bf16.gmra.mxu0 %v827
        %v997 = vpop.f32.mrf.mxu0
        %v998 = vadd.f32 0.0, %v997
        %v999 = vpop.f32.mrf.mxu0
        %v1000 = vadd.f32 0.0, %v999
        %1001 = vmatmul.bf16.gmra.mxu0 %v830
        %v1002 = vpop.f32.mrf.mxu0
        %v1003 = vadd.f32 0.0, %v1002
        %v1004 = vpop.f32.mrf.mxu0
        %v1005 = vadd.f32 0.0, %v1004
        %1006 = vmatmul.bf16.gmra.mxu0 %v833
        %v1007 = vpop.f32.mrf.mxu0
        %v1008 = vadd.f32 0.0, %v1007
        %v1009 = vpop.f32.mrf.mxu0
        %v1010 = vadd.f32 0.0, %v1009
        %1011 = vmatmul.bf16.gmra.mxu0 %v836
        %v1012 = vpop.f32.mrf.mxu0
        %v1013 = vadd.f32 0.0, %v1012
        %v1014 = vpop.f32.mrf.mxu0
        %v1015 = vadd.f32 0.0, %v1014
        %1016 = vmatmul.bf16.gmra.mxu0 %v839
        %v1017 = vpop.f32.mrf.mxu0
        %v1018 = vadd.f32 0.0, %v1017
        %v1019 = vpop.f32.mrf.mxu0
        %v1020 = vadd.f32 0.0, %v1019
        %1021 = vmatmul.bf16.gmra.mxu0 %v842
        %v1022 = vpop.f32.mrf.mxu0
        %v1023 = vadd.f32 0.0, %v1022
        %v1024 = vpop.f32.mrf.mxu0
        %v1025 = vadd.f32 0.0, %v1024
        %1026 = vmatmul.bf16.gmra.mxu0 %v845
        %v1027 = vpop.f32.mrf.mxu0
        %v1028 = vadd.f32 0.0, %v1027
        %v1029 = vpop.f32.mrf.mxu0
        %v1030 = vadd.f32 0.0, %v1029
        %1031 = vmatmul.bf16.gmra.mxu0 %v848
        %v1032 = vpop.f32.mrf.mxu0
        %v1033 = vadd.f32 0.0, %v1032
        %v1034 = vpop.f32.mrf.mxu0
        %v1035 = vadd.f32 0.0, %v1034
        %1036 = vmatmul.bf16.gmra.mxu0 %v851
        %v1037 = vpop.f32.mrf.mxu0
        %v1038 = vadd.f32 0.0, %v1037
        %v1039 = vpop.f32.mrf.mxu0
        %v1040 = vadd.f32 0.0, %v1039
        %1041 = vdwg.mxu0
        %v1042 = vmax.f32 %v863, %v908
        %v1043 = vmax.f32 %v865, %v910
        %v1044 = vmax.f32 %v868, %v913
        %v1045 = vmax.f32 %v870, %v915
        %v1046 = vmax.f32 %v873, %v918
        %v1047 = vmax.f32 %v875, %v920
        %v1048 = vmax.f32 %v878, %v923
        %v1049 = vmax.f32 %v880, %v925
        %v1050 = vmax.f32 %v883, %v928
        %v1051 = vmax.f32 %v885, %v930
        %v1052 = vmax.f32 %v888, %v933
        %v1053 = vmax.f32 %v890, %v935
        %v1054 = vmax.f32 %v893, %v938
        %v1055 = vmax.f32 %v895, %v940
        %v1056 = vmax.f32 %v898, %v943
        %v1057 = vmax.f32 %v900, %v945
        %v1058 = vmax.f32 %v903, %v948
        %v1059 = vmax.f32 %v905, %v950
        %v1060 = vmax.f32 %v953, %v998
        %v1061 = vmax.f32 %v955, %v1000
        %v1062 = vmax.f32 %v958, %v1003
        %v1063 = vmax.f32 %v960, %v1005
        %v1064 = vmax.f32 %v963, %v1008
        %v1065 = vmax.f32 %v965, %v1010
        %v1066 = vmax.f32 %v968, %v1013
        %v1067 = vmax.f32 %v970, %v1015
        %v1068 = vmax.f32 %v973, %v1018
        %v1069 = vmax.f32 %v975, %v1020
        %v1070 = vmax.f32 %v978, %v1023
        %v1071 = vmax.f32 %v980, %v1025
        %v1072 = vmax.f32 %v983, %v1028
        %v1073 = vmax.f32 %v985, %v1030
        %v1074 = vmax.f32 %v988, %v1033
        %v1075 = vmax.f32 %v990, %v1035
        %v1076 = vmax.f32 %v993, %v1038
        %v1077 = vmax.f32 %v995, %v1040
        %v1078 = vmax.f32 %v1042, %v1060
        %v1079 = vmax.f32 %v1043, %v1061
        %v1080 = vmax.f32 %v1044, %v1062
        %v1081 = vmax.f32 %v1045, %v1063
        %v1082 = vmax.f32 %v1046, %v1064
        %v1083 = vmax.f32 %v1047, %v1065
        %v1084 = vmax.f32 %v1048, %v1066
        %v1085 = vmax.f32 %v1049, %v1067
        %v1086 = vmax.f32 %v1050, %v1068
        %v1087 = vmax.f32 %v1051, %v1069
        %v1088 = vmax.f32 %v1052, %v1070
        %v1089 = vmax.f32 %v1053, %v1071
        %v1090 = vmax.f32 %v1054, %v1072
        %v1091 = vmax.f32 %v1055, %v1073
        %v1092 = vmax.f32 %v1056, %v1074
        %v1093 = vmax.f32 %v1057, %v1075
        %v1094 = vmax.f32 %v1058, %v1076
        %v1095 = vmax.f32 %v1059, %v1077
        %v1096 = vld [vmem:[%s2] sm:$0x1]
        %v1098 = vperm.slane %v1096, 0
        %v1100 = vadd.f32 %v1078, %v1098
        %v1101 = vadd.f32 %v1079, %v1098
        %v1102 = vadd.f32 %v1080, %v1098
        %v1103 = vadd.f32 %v1081, %v1098
        %v1104 = vadd.f32 %v1082, %v1098
        %v1105 = vadd.f32 %v1083, %v1098
        %v1106 = vadd.f32 %v1084, %v1098
        %v1107 = vadd.f32 %v1085, %v1098
        %v1108 = vadd.f32 %v1086, %v1098
        %v1109 = vadd.f32 %v1087, %v1098
        %v1110 = vadd.f32 %v1088, %v1098
        %v1111 = vadd.f32 %v1089, %v1098
        %v1112 = vadd.f32 %v1090, %v1098
        %v1113 = vadd.f32 %v1091, %v1098
        %v1114 = vadd.f32 %v1092, %v1098
        %v1115 = vadd.f32 %v1093, %v1098
        %v1116 = vadd.f32 %v1094, %v1098
        %v1117 = vadd.f32 %v1095, %v1098
        %v1118 = vmax.f32 %v1100, 0.0
        %v1119 = vmax.f32 %v1101, 0.0
        %v1120 = vmax.f32 %v1102, 0.0
        %v1121 = vmax.f32 %v1103, 0.0
        %v1122 = vmax.f32 %v1104, 0.0
        %v1123 = vmax.f32 %v1105, 0.0
        %v1124 = vmax.f32 %v1106, 0.0
        %v1125 = vmax.f32 %v1107, 0.0
        %v1126 = vmax.f32 %v1108, 0.0
        %v1127 = vmax.f32 %v1109, 0.0
        %v1128 = vmax.f32 %v1110, 0.0
        %v1129 = vmax.f32 %v1111, 0.0
        %v1130 = vmax.f32 %v1112, 0.0
        %v1131 = vmax.f32 %v1113, 0.0
        %v1132 = vmax.f32 %v1114, 0.0
        %v1133 = vmax.f32 %v1115, 0.0
        %v1134 = vmax.f32 %v1116, 0.0
        %v1135 = vmax.f32 %v1117, 0.0
        %v1136 = vpack.c.bf16 %v1118, %v1118
        %v1137 = vpack.c.bf16 %v1119, %v1119
        %v1138 = vpack.c.bf16 %v1120, %v1120
        %v1139 = vpack.c.bf16 %v1121, %v1121
        %v1140 = vpack.c.bf16 %v1122, %v1122
        %v1141 = vpack.c.bf16 %v1123, %v1123
        %v1142 = vpack.c.bf16 %v1124, %v1124
        %v1143 = vpack.c.bf16 %v1125, %v1125
        %v1144 = vpack.c.bf16 %v1126, %v1126
        %v1145 = vpack.c.bf16 %v1127, %v1127
        %v1146 = vpack.c.bf16 %v1128, %v1128
        %v1147 = vpack.c.bf16 %v1129, %v1129
        %v1148 = vpack.c.bf16 %v1130, %v1130
        %v1149 = vpack.c.bf16 %v1131, %v1131
        %v1150 = vpack.c.bf16 %v1132, %v1132
        %v1151 = vpack.c.bf16 %v1133, %v1133
        %v1152 = vpack.c.bf16 %v1134, %v1134
        %v1153 = vpack.c.bf16 %v1135, %v1135
        %vm1154 = vcmask 519168
        %1155 = vst.msk [vmem:[#allocation2] sm:$0xf] %vm1154, %v1136
        %1156 = vst.msk [vmem:[#allocation2 + $0x4] sm:$0xf] %vm1154, %v1137
        %1157 = vst.msk [vmem:[#allocation2 + $0x8] sm:$0xf] %vm1154, %v1138
        %1158 = vst.msk [vmem:[#allocation2 + $0xc] sm:$0xf] %vm1154, %v1139
        %1159 = vst.msk [vmem:[#allocation2 + $0x10] sm:$0xf] %vm1154, %v1140
        %1160 = vst.msk [vmem:[#allocation2 + $0x14] sm:$0xf] %vm1154, %v1141
        %1161 = vst.msk [vmem:[#allocation2 + $0x18] sm:$0xf] %vm1154, %v1142
        %1162 = vst.msk [vmem:[#allocation2 + $0x1c] sm:$0xf] %vm1154, %v1143
        %1163 = vst.msk [vmem:[#allocation2 + $0x20] sm:$0xf] %vm1154, %v1144
        %1164 = vst.msk [vmem:[#allocation2 + $0x24] sm:$0xf] %vm1154, %v1145
        %1165 = vst.msk [vmem:[#allocation2 + $0x28] sm:$0xf] %vm1154, %v1146
        %1166 = vst.msk [vmem:[#allocation2 + $0x2c] sm:$0xf] %vm1154, %v1147
        %1167 = vst.msk [vmem:[#allocation2 + $0x30] sm:$0xf] %vm1154, %v1148
        %1168 = vst.msk [vmem:[#allocation2 + $0x34] sm:$0xf] %vm1154, %v1149
        %1169 = vst.msk [vmem:[#allocation2 + $0x38] sm:$0xf] %vm1154, %v1150
        %1170 = vst.msk [vmem:[#allocation2 + $0x3c] sm:$0xf] %vm1154, %v1151
        %1171 = vst.msk [vmem:[#allocation2 + $0x40] sm:$0xf] %vm1154, %v1152
        %1172 = vst.msk [vmem:[#allocation2 + $0x44] sm:$0xf] %vm1154, %v1153
        %1173 = vst.msk [vmem:[#allocation2 + $0x48] sm:$0xf] %vm1154, 0
        %1174 = vst.msk [vmem:[#allocation2 + $0x4c] sm:$0xf] %vm1154, 0
        %v1175 = vld [vmem:[#allocation2] sm:$0xf]
        %v1176 = vld [vmem:[#allocation2 + $0x4] sm:$0xf]
        %v1177 = vld [vmem:[#allocation2 + $0x8] sm:$0xf]
        %v1178 = vld [vmem:[#allocation2 + $0xc] sm:$0xf]
        %v1179 = vld [vmem:[#allocation2 + $0x10] sm:$0xf]
        %v1180 = vld [vmem:[#allocation2 + $0x14] sm:$0xf]
        %v1181 = vld [vmem:[#allocation2 + $0x18] sm:$0xf]
        %v1182 = vld [vmem:[#allocation2 + $0x1c] sm:$0xf]
        %v1183 = vld [vmem:[#allocation2 + $0x20] sm:$0xf]
        %v1184 = vld [vmem:[#allocation2 + $0x24] sm:$0xf]
        %v1185 = vld [vmem:[#allocation2 + $0x28] sm:$0xf]
        %v1186 = vld [vmem:[#allocation2 + $0x2c] sm:$0xf]
        %v1187 = vld [vmem:[#allocation2 + $0x30] sm:$0xf]
        %v1188 = vld [vmem:[#allocation2 + $0x34] sm:$0xf]
        %v1189 = vld [vmem:[#allocation2 + $0x38] sm:$0xf]
        %v1190 = vld [vmem:[#allocation2 + $0x3c] sm:$0xf]
        %v1191 = vld [vmem:[#allocation2 + $0x40] sm:$0xf]
        %v1192 = vld [vmem:[#allocation2 + $0x44] sm:$0xf]
        %v1193 = vld [vmem:[#allocation2 + $0x48] sm:$0xf]
        %v1194 = vld [vmem:[%s3] sm:$0xf]
        %v1195 = vld [vmem:[%s3 + $0x4] sm:$0xf]
        %v1196 = vld [vmem:[%s3 + $0x8] sm:$0xf]
        %v1197 = vld [vmem:[%s3 + $0xc] sm:$0xf]
        %v1198 = vld [vmem:[%s3 + $0x10] sm:$0xf]
        %v1199 = vld [vmem:[%s3 + $0x14] sm:$0xf]
        %v1200 = vld [vmem:[%s3 + $0x18] sm:$0xf]
        %v1201 = vld [vmem:[%s3 + $0x1c] sm:$0xf]
        %v1202 = vld [vmem:[%s3 + $0x20] sm:$0xf]
        %v1203 = vld [vmem:[%s3 + $0x24] sm:$0xf]
        %v1204 = vld [vmem:[%s3 + $0x28] sm:$0xf]
        %v1205 = vld [vmem:[%s3 + $0x2c] sm:$0xf]
        %v1206 = vld [vmem:[%s3 + $0x30] sm:$0xf]
        %v1207 = vld [vmem:[%s3 + $0x34] sm:$0xf]
        %v1208 = vld [vmem:[%s3 + $0x38] sm:$0xf]
        %v1209 = vld [vmem:[%s3 + $0x3c] sm:$0xf]
        %v1223 = vunpack.c.l.b16 %v1175
        %v1224 = vunpack.c.l.b16 %v1176
        %v1225 = vunpack.c.l.b16 %v1177
        %v1226 = vunpack.c.l.b16 %v1178
        %v1227 = vunpack.c.l.b16 %v1179
        %v1228 = vunpack.c.l.b16 %v1180
        %v1229 = vunpack.c.l.b16 %v1181
        %v1230 = vunpack.c.l.b16 %v1182
        %v1231 = vunpack.c.l.b16 %v1183
        %v1232 = vunpack.c.l.b16 %v1184
        %v1233 = vunpack.c.l.b16 %v1185
        %v1234 = vunpack.c.l.b16 %v1186
        %v1235 = vunpack.c.l.b16 %v1187
        %v1236 = vpack.c.b16 %v1224, %v1223
        %v1237 = vpack.c.b16 %v1226, %v1225
        %v1238 = vpack.c.b16 %v1228, %v1227
        %v1239 = vpack.c.b16 %v1230, %v1229
        %v1240 = vpack.c.b16 %v1232, %v1231
        %v1241 = vpack.c.b16 %v1234, %v1233
        %v1242 = vpack.c.b16 %v1235, %v1235
        %vm1243 = vsmask.f32 7424
        %v1245 = vshrl.u32 %v1236, 16
        %v1247 = vshll.u32 %v1236, 16
        %v1249 = vrot.slane %v1247, 1
        %v1250 = vor.u32 %v1245, %v1249
        %v1252 = vshll.u32 %v1237, 16
        %v1254 = vrot.slane %v1252, 1
        %v1255 = vsel %vm1243, %v1250, %v1254
        %v1256 = vshrl.u32 %v1237, 16
        %v1258 = vor.u32 %v1256, %v1254
        %v1260 = vshll.u32 %v1238, 16
        %v1262 = vrot.slane %v1260, 1
        %v1263 = vsel %vm1243, %v1258, %v1262
        %v1264 = vshrl.u32 %v1238, 16
        %v1266 = vor.u32 %v1264, %v1262
        %v1268 = vshll.u32 %v1239, 16
        %v1270 = vrot.slane %v1268, 1
        %v1271 = vsel %vm1243, %v1266, %v1270
        %v1272 = vshrl.u32 %v1239, 16
        %v1274 = vor.u32 %v1272, %v1270
        %v1276 = vshll.u32 %v1240, 16
        %v1278 = vrot.slane %v1276, 1
        %v1279 = vsel %vm1243, %v1274, %v1278
        %v1280 = vshrl.u32 %v1240, 16
        %v1282 = vor.u32 %v1280, %v1278
        %v1284 = vshll.u32 %v1241, 16
        %v1286 = vrot.slane %v1284, 1
        %v1287 = vsel %vm1243, %v1282, %v1286
        %v1288 = vshrl.u32 %v1241, 16
        %v1290 = vor.u32 %v1288, %v1286
        %v1292 = vshll.u32 %v1242, 16
        %v1294 = vrot.slane %v1292, 1
        %v1295 = vsel %vm1243, %v1290, %v1294
        %v1304 = vunpack.c.l.b16 %v1202
        %v1305 = vunpack.c.l.b16 %v1203
        %v1306 = vunpack.c.l.b16 %v1204
        %v1307 = vunpack.c.l.b16 %v1205
        %v1308 = vunpack.c.l.b16 %v1206
        %v1309 = vunpack.c.l.b16 %v1207
        %v1310 = vunpack.c.l.b16 %v1208
        %v1311 = vunpack.c.l.b16 %v1209
        %v1312 = vpack.c.b16 %v1305, %v1304
        %v1313 = vpack.c.b16 %v1307, %v1306
        %v1314 = vpack.c.b16 %v1309, %v1308
        %v1315 = vpack.c.b16 %v1311, %v1310
        %vm1320 = vcmask 523264
        %v1322 = vsel %vm1320, %v1255, 0
        %v1325 = vsel %vm1320, %v1263, 0
        %v1328 = vsel %vm1320, %v1271, 0
        %v1331 = vsel %vm1320, %v1279, 0
        %v1334 = vsel %vm1320, %v1287, 0
        %v1337 = vsel %vm1320, %v1295, 0
        %1339 = vmatpush.bf16.msra.mxu0 0
        %1340 = vmatpush.bf16.msra.mxu0 0
        %1341 = vmatpush.bf16.msra.mxu0 0
        %1342 = vmatpush.bf16.msra.mxu0 0
        %1343 = vmatpush.bf16.msra.mxu0 %v1315
        %1344 = vmatpush.bf16.msra.mxu0 %v1314
        %1345 = vmatpush.bf16.msra.mxu0 %v1313
        %1346 = vmatpush.bf16.msra.mxu0 %v1312
        %1347 = vmatmul.bf16.gmra.mxu0 %v1322
        %v1348 = vpop.f32.mrf.mxu0
        %v1349 = vadd.f32 0.0, %v1348
        %v1350 = vpop.f32.mrf.mxu0
        %v1351 = vadd.f32 0.0, %v1350
        %1352 = vmatmul.bf16.gmra.mxu0 %v1325
        %v1353 = vpop.f32.mrf.mxu0
        %v1354 = vadd.f32 0.0, %v1353
        %v1355 = vpop.f32.mrf.mxu0
        %v1356 = vadd.f32 0.0, %v1355
        %1357 = vmatmul.bf16.gmra.mxu0 %v1328
        %v1358 = vpop.f32.mrf.mxu0
        %v1359 = vadd.f32 0.0, %v1358
        %v1360 = vpop.f32.mrf.mxu0
        %v1361 = vadd.f32 0.0, %v1360
        %1362 = vmatmul.bf16.gmra.mxu0 %v1331
        %v1363 = vpop.f32.mrf.mxu0
        %v1364 = vadd.f32 0.0, %v1363
        %v1365 = vpop.f32.mrf.mxu0
        %v1366 = vadd.f32 0.0, %v1365
        %1367 = vmatmul.bf16.gmra.mxu0 %v1334
        %v1368 = vpop.f32.mrf.mxu0
        %v1369 = vadd.f32 0.0, %v1368
        %v1370 = vpop.f32.mrf.mxu0
        %v1371 = vadd.f32 0.0, %v1370
        %1372 = vmatmul.bf16.gmra.mxu0 %v1337
        %v1373 = vpop.f32.mrf.mxu0
        %v1374 = vadd.f32 0.0, %v1373
        %v1375 = vpop.f32.mrf.mxu0
        %v1376 = vadd.f32 0.0, %v1375
        %1377 = vdwg.mxu0
        %v1386 = vunpack.c.l.b16 %v1194
        %v1387 = vunpack.c.l.b16 %v1195
        %v1388 = vunpack.c.l.b16 %v1196
        %v1389 = vunpack.c.l.b16 %v1197
        %v1390 = vunpack.c.l.b16 %v1198
        %v1391 = vunpack.c.l.b16 %v1199
        %v1392 = vunpack.c.l.b16 %v1200
        %v1393 = vunpack.c.l.b16 %v1201
        %v1394 = vpack.c.b16 %v1387, %v1386
        %v1395 = vpack.c.b16 %v1389, %v1388
        %v1396 = vpack.c.b16 %v1391, %v1390
        %v1397 = vpack.c.b16 %v1393, %v1392
        %v1402 = vsel %vm1320, %v1236, 0
        %v1404 = vsel %vm1320, %v1237, 0
        %v1406 = vsel %vm1320, %v1238, 0
        %v1408 = vsel %vm1320, %v1239, 0
        %v1410 = vsel %vm1320, %v1240, 0
        %v1412 = vsel %vm1320, %v1241, 0
        %1414 = vmatpush.bf16.msra.mxu0 0
        %1415 = vmatpush.bf16.msra.mxu0 0
        %1416 = vmatpush.bf16.msra.mxu0 0
        %1417 = vmatpush.bf16.msra.mxu0 0
        %1418 = vmatpush.bf16.msra.mxu0 %v1397
        %1419 = vmatpush.bf16.msra.mxu0 %v1396
        %1420 = vmatpush.bf16.msra.mxu0 %v1395
        %1421 = vmatpush.bf16.msra.mxu0 %v1394
        %1422 = vmatmul.bf16.gmra.mxu0 %v1402
        %v1423 = vpop.f32.mrf.mxu0
        %v1424 = vadd.f32 %v1349, %v1423
        %v1425 = vpop.f32.mrf.mxu0
        %v1426 = vadd.f32 %v1351, %v1425
        %1427 = vmatmul.bf16.gmra.mxu0 %v1404
        %v1428 = vpop.f32.mrf.mxu0
        %v1429 = vadd.f32 %v1354, %v1428
        %v1430 = vpop.f32.mrf.mxu0
        %v1431 = vadd.f32 %v1356, %v1430
        %1432 = vmatmul.bf16.gmra.mxu0 %v1406
        %v1433 = vpop.f32.mrf.mxu0
        %v1434 = vadd.f32 %v1359, %v1433
        %v1435 = vpop.f32.mrf.mxu0
        %v1436 = vadd.f32 %v1361, %v1435
        %1437 = vmatmul.bf16.gmra.mxu0 %v1408
        %v1438 = vpop.f32.mrf.mxu0
        %v1439 = vadd.f32 %v1364, %v1438
        %v1440 = vpop.f32.mrf.mxu0
        %v1441 = vadd.f32 %v1366, %v1440
        %1442 = vmatmul.bf16.gmra.mxu0 %v1410
        %v1443 = vpop.f32.mrf.mxu0
        %v1444 = vadd.f32 %v1369, %v1443
        %v1445 = vpop.f32.mrf.mxu0
        %v1446 = vadd.f32 %v1371, %v1445
        %1447 = vmatmul.bf16.gmra.mxu0 %v1412
        %v1448 = vpop.f32.mrf.mxu0
        %v1449 = vadd.f32 %v1374, %v1448
        %v1450 = vpop.f32.mrf.mxu0
        %v1451 = vadd.f32 %v1376, %v1450
        %1452 = vdwg.mxu0
        %v1453 = vld [vmem:[%s3 + $0x40] sm:$0xf]
        %v1454 = vld [vmem:[%s3 + $0x44] sm:$0xf]
        %v1455 = vld [vmem:[%s3 + $0x48] sm:$0xf]
        %v1456 = vld [vmem:[%s3 + $0x4c] sm:$0xf]
        %v1457 = vld [vmem:[%s3 + $0x50] sm:$0xf]
        %v1458 = vld [vmem:[%s3 + $0x54] sm:$0xf]
        %v1459 = vld [vmem:[%s3 + $0x58] sm:$0xf]
        %v1460 = vld [vmem:[%s3 + $0x5c] sm:$0xf]
        %vm1461 = vcmask 1046528
        %v1462 = vrot.slane %v1236, 1
        %v1463 = vrot.slane %v1237, 1
        %v1464 = vsel %vm1461, %v1462, %v1463
        %v1465 = vrot.slane %v1238, 1
        %v1466 = vsel %vm1461, %v1463, %v1465
        %v1467 = vrot.slane %v1239, 1
        %v1468 = vsel %vm1461, %v1465, %v1467
        %v1469 = vrot.slane %v1240, 1
        %v1470 = vsel %vm1461, %v1467, %v1469
        %v1471 = vrot.slane %v1241, 1
        %v1472 = vsel %vm1461, %v1469, %v1471
        %v1473 = vrot.slane %v1242, 1
        %v1474 = vsel %vm1461, %v1471, %v1473
        %v1483 = vunpack.c.l.b16 %v1453
        %v1484 = vunpack.c.l.b16 %v1454
        %v1485 = vunpack.c.l.b16 %v1455
        %v1486 = vunpack.c.l.b16 %v1456
        %v1487 = vunpack.c.l.b16 %v1457
        %v1488 = vunpack.c.l.b16 %v1458
        %v1489 = vunpack.c.l.b16 %v1459
        %v1490 = vunpack.c.l.b16 %v1460
        %v1491 = vpack.c.b16 %v1484, %v1483
        %v1492 = vpack.c.b16 %v1486, %v1485
        %v1493 = vpack.c.b16 %v1488, %v1487
        %v1494 = vpack.c.b16 %v1490, %v1489
        %v1500 = vsel %vm1320, %v1464, 0
        %v1503 = vsel %vm1320, %v1466, 0
        %v1506 = vsel %vm1320, %v1468, 0
        %v1509 = vsel %vm1320, %v1470, 0
        %v1512 = vsel %vm1320, %v1472, 0
        %v1515 = vsel %vm1320, %v1474, 0
        %1517 = vmatpush.bf16.msra.mxu0 0
        %1518 = vmatpush.bf16.msra.mxu0 0
        %1519 = vmatpush.bf16.msra.mxu0 0
        %1520 = vmatpush.bf16.msra.mxu0 0
        %1521 = vmatpush.bf16.msra.mxu0 %v1494
        %1522 = vmatpush.bf16.msra.mxu0 %v1493
        %1523 = vmatpush.bf16.msra.mxu0 %v1492
        %1524 = vmatpush.bf16.msra.mxu0 %v1491
        %1525 = vmatmul.bf16.gmra.mxu0 %v1500
        %v1526 = vpop.f32.mrf.mxu0
        %v1527 = vadd.f32 0.0, %v1526
        %v1528 = vpop.f32.mrf.mxu0
        %v1529 = vadd.f32 0.0, %v1528
        %1530 = vmatmul.bf16.gmra.mxu0 %v1503
        %v1531 = vpop.f32.mrf.mxu0
        %v1532 = vadd.f32 0.0, %v1531
        %v1533 = vpop.f32.mrf.mxu0
        %v1534 = vadd.f32 0.0, %v1533
        %1535 = vmatmul.bf16.gmra.mxu0 %v1506
        %v1536 = vpop.f32.mrf.mxu0
        %v1537 = vadd.f32 0.0, %v1536
        %v1538 = vpop.f32.mrf.mxu0
        %v1539 = vadd.f32 0.0, %v1538
        %1540 = vmatmul.bf16.gmra.mxu0 %v1509
        %v1541 = vpop.f32.mrf.mxu0
        %v1542 = vadd.f32 0.0, %v1541
        %v1543 = vpop.f32.mrf.mxu0
        %v1544 = vadd.f32 0.0, %v1543
        %1545 = vmatmul.bf16.gmra.mxu0 %v1512
        %v1546 = vpop.f32.mrf.mxu0
        %v1547 = vadd.f32 0.0, %v1546
        %v1548 = vpop.f32.mrf.mxu0
        %v1549 = vadd.f32 0.0, %v1548
        %1550 = vmatmul.bf16.gmra.mxu0 %v1515
        %v1551 = vpop.f32.mrf.mxu0
        %v1552 = vadd.f32 0.0, %v1551
        %v1553 = vpop.f32.mrf.mxu0
        %v1554 = vadd.f32 0.0, %v1553
        %1555 = vdwg.mxu0
        %v1556 = vadd.f32 %v1424, %v1527
        %v1557 = vadd.f32 %v1426, %v1529
        %v1558 = vadd.f32 %v1429, %v1532
        %v1559 = vadd.f32 %v1431, %v1534
        %v1560 = vadd.f32 %v1434, %v1537
        %v1561 = vadd.f32 %v1436, %v1539
        %v1562 = vadd.f32 %v1439, %v1542
        %v1563 = vadd.f32 %v1441, %v1544
        %v1564 = vadd.f32 %v1444, %v1547
        %v1565 = vadd.f32 %v1446, %v1549
        %v1566 = vadd.f32 %v1449, %v1552
        %v1567 = vadd.f32 %v1451, %v1554
        %v1568 = vld [vmem:[%s3 + $0x60] sm:$0xf]
        %v1569 = vld [vmem:[%s3 + $0x64] sm:$0xf]
        %v1570 = vld [vmem:[%s3 + $0x68] sm:$0xf]
        %v1571 = vld [vmem:[%s3 + $0x6c] sm:$0xf]
        %v1572 = vld [vmem:[%s3 + $0x70] sm:$0xf]
        %v1573 = vld [vmem:[%s3 + $0x74] sm:$0xf]
        %v1574 = vld [vmem:[%s3 + $0x78] sm:$0xf]
        %v1575 = vld [vmem:[%s3 + $0x7c] sm:$0xf]
        %vm1576 = vsmask.f32 6400
        %v1577 = vrot.slane %v1245, 1
        %v1578 = vrot.slane %v1247, 2
        %v1579 = vor.u32 %v1577, %v1578
        %v1580 = vrot.slane %v1256, 1
        %v1581 = vrot.slane %v1252, 2
        %v1582 = vor.u32 %v1580, %v1581
        %v1583 = vsel %vm1576, %v1579, %v1582
        %v1584 = vrot.slane %v1264, 1
        %v1585 = vrot.slane %v1260, 2
        %v1586 = vor.u32 %v1584, %v1585
        %v1587 = vsel %vm1576, %v1582, %v1586
        %v1588 = vrot.slane %v1272, 1
        %v1589 = vrot.slane %v1268, 2
        %v1590 = vor.u32 %v1588, %v1589
        %v1591 = vsel %vm1576, %v1586, %v1590
        %v1592 = vrot.slane %v1280, 1
        %v1593 = vrot.slane %v1276, 2
        %v1594 = vor.u32 %v1592, %v1593
        %v1595 = vsel %vm1576, %v1590, %v1594
        %v1596 = vrot.slane %v1288, 1
        %v1597 = vrot.slane %v1284, 2
        %v1598 = vor.u32 %v1596, %v1597
        %v1599 = vsel %vm1576, %v1594, %v1598
        %v1600 = vshrl.u32 %v1242, 16
        %v1602 = vrot.slane %v1600, 1
        %v1603 = vrot.slane %v1292, 2
        %v1604 = vor.u32 %v1602, %v1603
        %v1605 = vsel %vm1576, %v1598, %v1604
        %v1614 = vunpack.c.l.b16 %v1568
        %v1615 = vunpack.c.l.b16 %v1569
        %v1616 = vunpack.c.l.b16 %v1570
        %v1617 = vunpack.c.l.b16 %v1571
        %v1618 = vunpack.c.l.b16 %v1572
        %v1619 = vunpack.c.l.b16 %v1573
        %v1620 = vunpack.c.l.b16 %v1574
        %v1621 = vunpack.c.l.b16 %v1575
        %v1622 = vpack.c.b16 %v1615, %v1614
        %v1623 = vpack.c.b16 %v1617, %v1616
        %v1624 = vpack.c.b16 %v1619, %v1618
        %v1625 = vpack.c.b16 %v1621, %v1620
        %v1631 = vsel %vm1320, %v1583, 0
        %v1634 = vsel %vm1320, %v1587, 0
        %v1637 = vsel %vm1320, %v1591, 0
        %v1640 = vsel %vm1320, %v1595, 0
        %v1643 = vsel %vm1320, %v1599, 0
        %v1646 = vsel %vm1320, %v1605, 0
        %1648 = vmatpush.bf16.msra.mxu0 0
        %1649 = vmatpush.bf16.msra.mxu0 0
        %1650 = vmatpush.bf16.msra.mxu0 0
        %1651 = vmatpush.bf16.msra.mxu0 0
        %1652 = vmatpush.bf16.msra.mxu0 %v1625
        %1653 = vmatpush.bf16.msra.mxu0 %v1624
        %1654 = vmatpush.bf16.msra.mxu0 %v1623
        %1655 = vmatpush.bf16.msra.mxu0 %v1622
        %1656 = vmatmul.bf16.gmra.mxu0 %v1631
        %v1657 = vpop.f32.mrf.mxu0
        %v1658 = vadd.f32 0.0, %v1657
        %v1659 = vpop.f32.mrf.mxu0
        %v1660 = vadd.f32 0.0, %v1659
        %1661 = vmatmul.bf16.gmra.mxu0 %v1634
        %v1662 = vpop.f32.mrf.mxu0
        %v1663 = vadd.f32 0.0, %v1662
        %v1664 = vpop.f32.mrf.mxu0
        %v1665 = vadd.f32 0.0, %v1664
        %1666 = vmatmul.bf16.gmra.mxu0 %v1637
        %v1667 = vpop.f32.mrf.mxu0
        %v1668 = vadd.f32 0.0, %v1667
        %v1669 = vpop.f32.mrf.mxu0
        %v1670 = vadd.f32 0.0, %v1669
        %1671 = vmatmul.bf16.gmra.mxu0 %v1640
        %v1672 = vpop.f32.mrf.mxu0
        %v1673 = vadd.f32 0.0, %v1672
        %v1674 = vpop.f32.mrf.mxu0
        %v1675 = vadd.f32 0.0, %v1674
        %1676 = vmatmul.bf16.gmra.mxu0 %v1643
        %v1677 = vpop.f32.mrf.mxu0
        %v1678 = vadd.f32 0.0, %v1677
        %v1679 = vpop.f32.mrf.mxu0
        %v1680 = vadd.f32 0.0, %v1679
        %1681 = vmatmul.bf16.gmra.mxu0 %v1646
        %v1682 = vpop.f32.mrf.mxu0
        %v1683 = vadd.f32 0.0, %v1682
        %v1684 = vpop.f32.mrf.mxu0
        %v1685 = vadd.f32 0.0, %v1684
        %1686 = vdwg.mxu0
        %v1687 = vadd.f32 %v1556, %v1658
        %v1688 = vadd.f32 %v1557, %v1660
        %v1689 = vadd.f32 %v1558, %v1663
        %v1690 = vadd.f32 %v1559, %v1665
        %v1691 = vadd.f32 %v1560, %v1668
        %v1692 = vadd.f32 %v1561, %v1670
        %v1693 = vadd.f32 %v1562, %v1673
        %v1694 = vadd.f32 %v1563, %v1675
        %v1695 = vadd.f32 %v1564, %v1678
        %v1696 = vadd.f32 %v1565, %v1680
        %v1697 = vadd.f32 %v1566, %v1683
        %v1698 = vadd.f32 %v1567, %v1685
        %v1699 = vld [vmem:[%s3 + $0x80] sm:$0xf]
        %v1700 = vld [vmem:[%s3 + $0x84] sm:$0xf]
        %v1701 = vld [vmem:[%s3 + $0x88] sm:$0xf]
        %v1702 = vld [vmem:[%s3 + $0x8c] sm:$0xf]
        %v1703 = vld [vmem:[%s3 + $0x90] sm:$0xf]
        %v1704 = vld [vmem:[%s3 + $0x94] sm:$0xf]
        %v1705 = vld [vmem:[%s3 + $0x98] sm:$0xf]
        %v1706 = vld [vmem:[%s3 + $0x9c] sm:$0xf]
        %vm1707 = vcmask 1045504
        %v1708 = vrot.slane %v1236, 2
        %v1709 = vrot.slane %v1237, 2
        %v1710 = vsel %vm1707, %v1708, %v1709
        %v1711 = vrot.slane %v1238, 2
        %v1712 = vsel %vm1707, %v1709, %v1711
        %v1713 = vrot.slane %v1239, 2
        %v1714 = vsel %vm1707, %v1711, %v1713
        %v1715 = vrot.slane %v1240, 2
        %v1716 = vsel %vm1707, %v1713, %v1715
        %v1717 = vrot.slane %v1241, 2
        %v1718 = vsel %vm1707, %v1715, %v1717
        %v1719 = vrot.slane %v1242, 2
        %v1720 = vsel %vm1707, %v1717, %v1719
        %v1729 = vunpack.c.l.b16 %v1699
        %v1730 = vunpack.c.l.b16 %v1700
        %v1731 = vunpack.c.l.b16 %v1701
        %v1732 = vunpack.c.l.b16 %v1702
        %v1733 = vunpack.c.l.b16 %v1703
        %v1734 = vunpack.c.l.b16 %v1704
        %v1735 = vunpack.c.l.b16 %v1705
        %v1736 = vunpack.c.l.b16 %v1706
        %v1737 = vpack.c.b16 %v1730, %v1729
        %v1738 = vpack.c.b16 %v1732, %v1731
        %v1739 = vpack.c.b16 %v1734, %v1733
        %v1740 = vpack.c.b16 %v1736, %v1735
        %v1746 = vsel %vm1320, %v1710, 0
        %v1749 = vsel %vm1320, %v1712, 0
        %v1752 = vsel %vm1320, %v1714, 0
        %v1755 = vsel %vm1320, %v1716, 0
        %v1758 = vsel %vm1320, %v1718, 0
        %v1761 = vsel %vm1320, %v1720, 0
        %1763 = vmatpush.bf16.msra.mxu0 0
        %1764 = vmatpush.bf16.msra.mxu0 0
        %1765 = vmatpush.bf16.msra.mxu0 0
        %1766 = vmatpush.bf16.msra.mxu0 0
        %1767 = vmatpush.bf16.msra.mxu0 %v1740
        %1768 = vmatpush.bf16.msra.mxu0 %v1739
        %1769 = vmatpush.bf16.msra.mxu0 %v1738
        %1770 = vmatpush.bf16.msra.mxu0 %v1737
        %1771 = vmatmul.bf16.gmra.mxu0 %v1746
        %v1772 = vpop.f32.mrf.mxu0
        %v1773 = vadd.f32 0.0, %v1772
        %v1774 = vpop.f32.mrf.mxu0
        %v1775 = vadd.f32 0.0, %v1774
        %1776 = vmatmul.bf16.gmra.mxu0 %v1749
        %v1777 = vpop.f32.mrf.mxu0
        %v1778 = vadd.f32 0.0, %v1777
        %v1779 = vpop.f32.mrf.mxu0
        %v1780 = vadd.f32 0.0, %v1779
        %1781 = vmatmul.bf16.gmra.mxu0 %v1752
        %v1782 = vpop.f32.mrf.mxu0
        %v1783 = vadd.f32 0.0, %v1782
        %v1784 = vpop.f32.mrf.mxu0
        %v1785 = vadd.f32 0.0, %v1784
        %1786 = vmatmul.bf16.gmra.mxu0 %v1755
        %v1787 = vpop.f32.mrf.mxu0
        %v1788 = vadd.f32 0.0, %v1787
        %v1789 = vpop.f32.mrf.mxu0
        %v1790 = vadd.f32 0.0, %v1789
        %1791 = vmatmul.bf16.gmra.mxu0 %v1758
        %v1792 = vpop.f32.mrf.mxu0
        %v1793 = vadd.f32 0.0, %v1792
        %v1794 = vpop.f32.mrf.mxu0
        %v1795 = vadd.f32 0.0, %v1794
        %1796 = vmatmul.bf16.gmra.mxu0 %v1761
        %v1797 = vpop.f32.mrf.mxu0
        %v1798 = vadd.f32 0.0, %v1797
        %v1799 = vpop.f32.mrf.mxu0
        %v1800 = vadd.f32 0.0, %v1799
        %1801 = vdwg.mxu0
        %v1802 = vadd.f32 %v1687, %v1773
        %v1803 = vadd.f32 %v1688, %v1775
        %v1804 = vadd.f32 %v1689, %v1778
        %v1805 = vadd.f32 %v1690, %v1780
        %v1806 = vadd.f32 %v1691, %v1783
        %v1807 = vadd.f32 %v1692, %v1785
        %v1808 = vadd.f32 %v1693, %v1788
        %v1809 = vadd.f32 %v1694, %v1790
        %v1810 = vadd.f32 %v1695, %v1793
        %v1811 = vadd.f32 %v1696, %v1795
        %v1812 = vadd.f32 %v1697, %v1798
        %v1813 = vadd.f32 %v1698, %v1800
        %v1814 = vld [vmem:[%s3 + $0xa0] sm:$0xf]
        %v1815 = vld [vmem:[%s3 + $0xa4] sm:$0xf]
        %v1816 = vld [vmem:[%s3 + $0xa8] sm:$0xf]
        %v1817 = vld [vmem:[%s3 + $0xac] sm:$0xf]
        %v1818 = vld [vmem:[%s3 + $0xb0] sm:$0xf]
        %v1819 = vld [vmem:[%s3 + $0xb4] sm:$0xf]
        %v1820 = vld [vmem:[%s3 + $0xb8] sm:$0xf]
        %v1821 = vld [vmem:[%s3 + $0xbc] sm:$0xf]
        %v1823 = vunpack.c.l.b16 %v1188
        %v1824 = vpack.c.b16 %v1225, %v1224
        %v1825 = vpack.c.b16 %v1227, %v1226
        %v1826 = vpack.c.b16 %v1229, %v1228
        %v1827 = vpack.c.b16 %v1231, %v1230
        %v1828 = vpack.c.b16 %v1233, %v1232
        %v1829 = vpack.c.b16 %v1235, %v1234
        %v1830 = vpack.c.b16 %v1823, %v1823
        %v1831 = vrot.slane %v1824, 2
        %v1832 = vrot.slane %v1825, 2
        %v1833 = vsel %vm1707, %v1831, %v1832
        %v1834 = vrot.slane %v1826, 2
        %v1835 = vsel %vm1707, %v1832, %v1834
        %v1836 = vrot.slane %v1827, 2
        %v1837 = vsel %vm1707, %v1834, %v1836
        %v1838 = vrot.slane %v1828, 2
        %v1839 = vsel %vm1707, %v1836, %v1838
        %v1840 = vrot.slane %v1829, 2
        %v1841 = vsel %vm1707, %v1838, %v1840
        %v1842 = vrot.slane %v1830, 2
        %v1843 = vsel %vm1707, %v1840, %v1842
        %v1852 = vunpack.c.l.b16 %v1814
        %v1853 = vunpack.c.l.b16 %v1815
        %v1854 = vunpack.c.l.b16 %v1816
        %v1855 = vunpack.c.l.b16 %v1817
        %v1856 = vunpack.c.l.b16 %v1818
        %v1857 = vunpack.c.l.b16 %v1819
        %v1858 = vunpack.c.l.b16 %v1820
        %v1859 = vunpack.c.l.b16 %v1821
        %v1860 = vpack.c.b16 %v1853, %v1852
        %v1861 = vpack.c.b16 %v1855, %v1854
        %v1862 = vpack.c.b16 %v1857, %v1856
        %v1863 = vpack.c.b16 %v1859, %v1858
        %v1869 = vsel %vm1320, %v1833, 0
        %v1872 = vsel %vm1320, %v1835, 0
        %v1875 = vsel %vm1320, %v1837, 0
        %v1878 = vsel %vm1320, %v1839, 0
        %v1881 = vsel %vm1320, %v1841, 0
        %v1884 = vsel %vm1320, %v1843, 0
        %1886 = vmatpush.bf16.msra.mxu0 0
        %1887 = vmatpush.bf16.msra.mxu0 0
        %1888 = vmatpush.bf16.msra.mxu0 0
        %1889 = vmatpush.bf16.msra.mxu0 0
        %1890 = vmatpush.bf16.msra.mxu0 %v1863
        %1891 = vmatpush.bf16.msra.mxu0 %v1862
        %1892 = vmatpush.bf16.msra.mxu0 %v1861
        %1893 = vmatpush.bf16.msra.mxu0 %v1860
        %1894 = vmatmul.bf16.gmra.mxu0 %v1869
        %v1895 = vpop.f32.mrf.mxu0
        %v1896 = vadd.f32 0.0, %v1895
        %v1897 = vpop.f32.mrf.mxu0
        %v1898 = vadd.f32 0.0, %v1897
        %1899 = vmatmul.bf16.gmra.mxu0 %v1872
        %v1900 = vpop.f32.mrf.mxu0
        %v1901 = vadd.f32 0.0, %v1900
        %v1902 = vpop.f32.mrf.mxu0
        %v1903 = vadd.f32 0.0, %v1902
        %1904 = vmatmul.bf16.gmra.mxu0 %v1875
        %v1905 = vpop.f32.mrf.mxu0
        %v1906 = vadd.f32 0.0, %v1905
        %v1907 = vpop.f32.mrf.mxu0
        %v1908 = vadd.f32 0.0, %v1907
        %1909 = vmatmul.bf16.gmra.mxu0 %v1878
        %v1910 = vpop.f32.mrf.mxu0
        %v1911 = vadd.f32 0.0, %v1910
        %v1912 = vpop.f32.mrf.mxu0
        %v1913 = vadd.f32 0.0, %v1912
        %1914 = vmatmul.bf16.gmra.mxu0 %v1881
        %v1915 = vpop.f32.mrf.mxu0
        %v1916 = vadd.f32 0.0, %v1915
        %v1917 = vpop.f32.mrf.mxu0
        %v1918 = vadd.f32 0.0, %v1917
        %1919 = vmatmul.bf16.gmra.mxu0 %v1884
        %v1920 = vpop.f32.mrf.mxu0
        %v1921 = vadd.f32 0.0, %v1920
        %v1922 = vpop.f32.mrf.mxu0
        %v1923 = vadd.f32 0.0, %v1922
        %1924 = vdwg.mxu0
        %v1925 = vadd.f32 %v1802, %v1896
        %v1926 = vadd.f32 %v1803, %v1898
        %v1927 = vadd.f32 %v1804, %v1901
        %v1928 = vadd.f32 %v1805, %v1903
        %v1929 = vadd.f32 %v1806, %v1906
        %v1930 = vadd.f32 %v1807, %v1908
        %v1931 = vadd.f32 %v1808, %v1911
        %v1932 = vadd.f32 %v1809, %v1913
        %v1933 = vadd.f32 %v1810, %v1916
        %v1934 = vadd.f32 %v1811, %v1918
        %v1935 = vadd.f32 %v1812, %v1921
        %v1936 = vadd.f32 %v1813, %v1923
        %v1937 = vld [vmem:[%s3 + $0xc0] sm:$0xf]
        %v1938 = vld [vmem:[%s3 + $0xc4] sm:$0xf]
        %v1939 = vld [vmem:[%s3 + $0xc8] sm:$0xf]
        %v1940 = vld [vmem:[%s3 + $0xcc] sm:$0xf]
        %v1941 = vld [vmem:[%s3 + $0xd0] sm:$0xf]
        %v1942 = vld [vmem:[%s3 + $0xd4] sm:$0xf]
        %v1943 = vld [vmem:[%s3 + $0xd8] sm:$0xf]
        %v1944 = vld [vmem:[%s3 + $0xdc] sm:$0xf]
        %vm1945 = vsmask.f32 5376
        %v1947 = vshrl.u32 %v1824, 16
        %v1949 = vrot.slane %v1947, 2
        %v1950 = vshll.u32 %v1824, 16
        %v1952 = vrot.slane %v1950, 3
        %v1953 = vor.u32 %v1949, %v1952
        %v1955 = vshrl.u32 %v1825, 16
        %v1957 = vrot.slane %v1955, 2
        %v1958 = vshll.u32 %v1825, 16
        %v1960 = vrot.slane %v1958, 3
        %v1961 = vor.u32 %v1957, %v1960
        %v1962 = vsel %vm1945, %v1953, %v1961
        %v1964 = vshrl.u32 %v1826, 16
        %v1966 = vrot.slane %v1964, 2
        %v1967 = vshll.u32 %v1826, 16
        %v1969 = vrot.slane %v1967, 3
        %v1970 = vor.u32 %v1966, %v1969
        %v1971 = vsel %vm1945, %v1961, %v1970
        %v1973 = vshrl.u32 %v1827, 16
        %v1975 = vrot.slane %v1973, 2
        %v1976 = vshll.u32 %v1827, 16
        %v1978 = vrot.slane %v1976, 3
        %v1979 = vor.u32 %v1975, %v1978
        %v1980 = vsel %vm1945, %v1970, %v1979
        %v1982 = vshrl.u32 %v1828, 16
        %v1984 = vrot.slane %v1982, 2
        %v1985 = vshll.u32 %v1828, 16
        %v1987 = vrot.slane %v1985, 3
        %v1988 = vor.u32 %v1984, %v1987
        %v1989 = vsel %vm1945, %v1979, %v1988
        %v1991 = vshrl.u32 %v1829, 16
        %v1993 = vrot.slane %v1991, 2
        %v1994 = vshll.u32 %v1829, 16
        %v1996 = vrot.slane %v1994, 3
        %v1997 = vor.u32 %v1993, %v1996
        %v1998 = vsel %vm1945, %v1988, %v1997
        %v2000 = vshrl.u32 %v1830, 16
        %v2002 = vrot.slane %v2000, 2
        %v2003 = vshll.u32 %v1830, 16
        %v2005 = vrot.slane %v2003, 3
        %v2006 = vor.u32 %v2002, %v2005
        %v2007 = vsel %vm1945, %v1997, %v2006
        %v2016 = vunpack.c.l.b16 %v1937
        %v2017 = vunpack.c.l.b16 %v1938
        %v2018 = vunpack.c.l.b16 %v1939
        %v2019 = vunpack.c.l.b16 %v1940
        %v2020 = vunpack.c.l.b16 %v1941
        %v2021 = vunpack.c.l.b16 %v1942
        %v2022 = vunpack.c.l.b16 %v1943
        %v2023 = vunpack.c.l.b16 %v1944
        %v2024 = vpack.c.b16 %v2017, %v2016
        %v2025 = vpack.c.b16 %v2019, %v2018
        %v2026 = vpack.c.b16 %v2021, %v2020
        %v2027 = vpack.c.b16 %v2023, %v2022
        %v2033 = vsel %vm1320, %v1962, 0
        %v2036 = vsel %vm1320, %v1971, 0
        %v2039 = vsel %vm1320, %v1980, 0
        %v2042 = vsel %vm1320, %v1989, 0
        %v2045 = vsel %vm1320, %v1998, 0
        %v2048 = vsel %vm1320, %v2007, 0
        %2050 = vmatpush.bf16.msra.mxu0 0
        %2051 = vmatpush.bf16.msra.mxu0 0
        %2052 = vmatpush.bf16.msra.mxu0 0
        %2053 = vmatpush.bf16.msra.mxu0 0
        %2054 = vmatpush.bf16.msra.mxu0 %v2027
        %2055 = vmatpush.bf16.msra.mxu0 %v2026
        %2056 = vmatpush.bf16.msra.mxu0 %v2025
        %2057 = vmatpush.bf16.msra.mxu0 %v2024
        %2058 = vmatmul.bf16.gmra.mxu0 %v2033
        %v2059 = vpop.f32.mrf.mxu0
        %v2060 = vadd.f32 0.0, %v2059
        %v2061 = vpop.f32.mrf.mxu0
        %v2062 = vadd.f32 0.0, %v2061
        %2063 = vmatmul.bf16.gmra.mxu0 %v2036
        %v2064 = vpop.f32.mrf.mxu0
        %v2065 = vadd.f32 0.0, %v2064
        %v2066 = vpop.f32.mrf.mxu0
        %v2067 = vadd.f32 0.0, %v2066
        %2068 = vmatmul.bf16.gmra.mxu0 %v2039
        %v2069 = vpop.f32.mrf.mxu0
        %v2070 = vadd.f32 0.0, %v2069
        %v2071 = vpop.f32.mrf.mxu0
        %v2072 = vadd.f32 0.0, %v2071
        %2073 = vmatmul.bf16.gmra.mxu0 %v2042
        %v2074 = vpop.f32.mrf.mxu0
        %v2075 = vadd.f32 0.0, %v2074
        %v2076 = vpop.f32.mrf.mxu0
        %v2077 = vadd.f32 0.0, %v2076
        %2078 = vmatmul.bf16.gmra.mxu0 %v2045
        %v2079 = vpop.f32.mrf.mxu0
        %v2080 = vadd.f32 0.0, %v2079
        %v2081 = vpop.f32.mrf.mxu0
        %v2082 = vadd.f32 0.0, %v2081
        %2083 = vmatmul.bf16.gmra.mxu0 %v2048
        %v2084 = vpop.f32.mrf.mxu0
        %v2085 = vadd.f32 0.0, %v2084
        %v2086 = vpop.f32.mrf.mxu0
        %v2087 = vadd.f32 0.0, %v2086
        %2088 = vdwg.mxu0
        %v2089 = vadd.f32 %v1925, %v2060
        %v2090 = vadd.f32 %v1926, %v2062
        %v2091 = vadd.f32 %v1927, %v2065
        %v2092 = vadd.f32 %v1928, %v2067
        %v2093 = vadd.f32 %v1929, %v2070
        %v2094 = vadd.f32 %v1930, %v2072
        %v2095 = vadd.f32 %v1931, %v2075
        %v2096 = vadd.f32 %v1932, %v2077
        %v2097 = vadd.f32 %v1933, %v2080
        %v2098 = vadd.f32 %v1934, %v2082
        %v2099 = vadd.f32 %v1935, %v2085
        %v2100 = vadd.f32 %v1936, %v2087
        %v2101 = vld [vmem:[%s3 + $0xe0] sm:$0xf]
        %v2102 = vld [vmem:[%s3 + $0xe4] sm:$0xf]
        %v2103 = vld [vmem:[%s3 + $0xe8] sm:$0xf]
        %v2104 = vld [vmem:[%s3 + $0xec] sm:$0xf]
        %v2105 = vld [vmem:[%s3 + $0xf0] sm:$0xf]
        %v2106 = vld [vmem:[%s3 + $0xf4] sm:$0xf]
        %v2107 = vld [vmem:[%s3 + $0xf8] sm:$0xf]
        %v2108 = vld [vmem:[%s3 + $0xfc] sm:$0xf]
        %vm2109 = vcmask 1044480
        %v2110 = vrot.slane %v1824, 3
        %v2111 = vrot.slane %v1825, 3
        %v2112 = vsel %vm2109, %v2110, %v2111
        %v2113 = vrot.slane %v1826, 3
        %v2114 = vsel %vm2109, %v2111, %v2113
        %v2115 = vrot.slane %v1827, 3
        %v2116 = vsel %vm2109, %v2113, %v2115
        %v2117 = vrot.slane %v1828, 3
        %v2118 = vsel %vm2109, %v2115, %v2117
        %v2119 = vrot.slane %v1829, 3
        %v2120 = vsel %vm2109, %v2117, %v2119
        %v2121 = vrot.slane %v1830, 3
        %v2122 = vsel %vm2109, %v2119, %v2121
        %v2131 = vunpack.c.l.b16 %v2101
        %v2132 = vunpack.c.l.b16 %v2102
        %v2133 = vunpack.c.l.b16 %v2103
        %v2134 = vunpack.c.l.b16 %v2104
        %v2135 = vunpack.c.l.b16 %v2105
        %v2136 = vunpack.c.l.b16 %v2106
        %v2137 = vunpack.c.l.b16 %v2107
        %v2138 = vunpack.c.l.b16 %v2108
        %v2139 = vpack.c.b16 %v2132, %v2131
        %v2140 = vpack.c.b16 %v2134, %v2133
        %v2141 = vpack.c.b16 %v2136, %v2135
        %v2142 = vpack.c.b16 %v2138, %v2137
        %v2148 = vsel %vm1320, %v2112, 0
        %v2151 = vsel %vm1320, %v2114, 0
        %v2154 = vsel %vm1320, %v2116, 0
        %v2157 = vsel %vm1320, %v2118, 0
        %v2160 = vsel %vm1320, %v2120, 0
        %v2163 = vsel %vm1320, %v2122, 0
        %2165 = vmatpush.bf16.msra.mxu0 0
        %2166 = vmatpush.bf16.msra.mxu0 0
        %2167 = vmatpush.bf16.msra.mxu0 0
        %2168 = vmatpush.bf16.msra.mxu0 0
        %2169 = vmatpush.bf16.msra.mxu0 %v2142
        %2170 = vmatpush.bf16.msra.mxu0 %v2141
        %2171 = vmatpush.bf16.msra.mxu0 %v2140
        %2172 = vmatpush.bf16.msra.mxu0 %v2139
        %2173 = vmatmul.bf16.gmra.mxu0 %v2148
        %v2174 = vpop.f32.mrf.mxu0
        %v2175 = vadd.f32 0.0, %v2174
        %v2176 = vpop.f32.mrf.mxu0
        %v2177 = vadd.f32 0.0, %v2176
        %2178 = vmatmul.bf16.gmra.mxu0 %v2151
        %v2179 = vpop.f32.mrf.mxu0
        %v2180 = vadd.f32 0.0, %v2179
        %v2181 = vpop.f32.mrf.mxu0
        %v2182 = vadd.f32 0.0, %v2181
        %2183 = vmatmul.bf16.gmra.mxu0 %v2154
        %v2184 = vpop.f32.mrf.mxu0
        %v2185 = vadd.f32 0.0, %v2184
        %v2186 = vpop.f32.mrf.mxu0
        %v2187 = vadd.f32 0.0, %v2186
        %2188 = vmatmul.bf16.gmra.mxu0 %v2157
        %v2189 = vpop.f32.mrf.mxu0
        %v2190 = vadd.f32 0.0, %v2189
        %v2191 = vpop.f32.mrf.mxu0
        %v2192 = vadd.f32 0.0, %v2191
        %2193 = vmatmul.bf16.gmra.mxu0 %v2160
        %v2194 = vpop.f32.mrf.mxu0
        %v2195 = vadd.f32 0.0, %v2194
        %v2196 = vpop.f32.mrf.mxu0
        %v2197 = vadd.f32 0.0, %v2196
        %2198 = vmatmul.bf16.gmra.mxu0 %v2163
        %v2199 = vpop.f32.mrf.mxu0
        %v2200 = vadd.f32 0.0, %v2199
        %v2201 = vpop.f32.mrf.mxu0
        %v2202 = vadd.f32 0.0, %v2201
        %2203 = vdwg.mxu0
        %v2204 = vadd.f32 %v2089, %v2175
        %v2205 = vadd.f32 %v2090, %v2177
        %v2206 = vadd.f32 %v2091, %v2180
        %v2207 = vadd.f32 %v2092, %v2182
        %v2208 = vadd.f32 %v2093, %v2185
        %v2209 = vadd.f32 %v2094, %v2187
        %v2210 = vadd.f32 %v2095, %v2190
        %v2211 = vadd.f32 %v2096, %v2192
        %v2212 = vadd.f32 %v2097, %v2195
        %v2213 = vadd.f32 %v2098, %v2197
        %v2214 = vadd.f32 %v2099, %v2200
        %v2215 = vadd.f32 %v2100, %v2202
        %v2216 = vld [vmem:[%s3 + $0x100] sm:$0xf]
        %v2217 = vld [vmem:[%s3 + $0x104] sm:$0xf]
        %v2218 = vld [vmem:[%s3 + $0x108] sm:$0xf]
        %v2219 = vld [vmem:[%s3 + $0x10c] sm:$0xf]
        %v2220 = vld [vmem:[%s3 + $0x110] sm:$0xf]
        %v2221 = vld [vmem:[%s3 + $0x114] sm:$0xf]
        %v2222 = vld [vmem:[%s3 + $0x118] sm:$0xf]
        %v2223 = vld [vmem:[%s3 + $0x11c] sm:$0xf]
        %vm2224 = vsmask.f32 4352
        %v2225 = vrot.slane %v1947, 3
        %v2226 = vrot.slane %v1950, 4
        %v2227 = vor.u32 %v2225, %v2226
        %v2228 = vrot.slane %v1955, 3
        %v2229 = vrot.slane %v1958, 4
        %v2230 = vor.u32 %v2228, %v2229
        %v2231 = vsel %vm2224, %v2227, %v2230
        %v2232 = vrot.slane %v1964, 3
        %v2233 = vrot.slane %v1967, 4
        %v2234 = vor.u32 %v2232, %v2233
        %v2235 = vsel %vm2224, %v2230, %v2234
        %v2236 = vrot.slane %v1973, 3
        %v2237 = vrot.slane %v1976, 4
        %v2238 = vor.u32 %v2236, %v2237
        %v2239 = vsel %vm2224, %v2234, %v2238
        %v2240 = vrot.slane %v1982, 3
        %v2241 = vrot.slane %v1985, 4
        %v2242 = vor.u32 %v2240, %v2241
        %v2243 = vsel %vm2224, %v2238, %v2242
        %v2244 = vrot.slane %v1991, 3
        %v2245 = vrot.slane %v1994, 4
        %v2246 = vor.u32 %v2244, %v2245
        %v2247 = vsel %vm2224, %v2242, %v2246
        %v2248 = vrot.slane %v2000, 3
        %v2249 = vrot.slane %v2003, 4
        %v2250 = vor.u32 %v2248, %v2249
        %v2251 = vsel %vm2224, %v2246, %v2250
        %v2260 = vunpack.c.l.b16 %v2216
        %v2261 = vunpack.c.l.b16 %v2217
        %v2262 = vunpack.c.l.b16 %v2218
        %v2263 = vunpack.c.l.b16 %v2219
        %v2264 = vunpack.c.l.b16 %v2220
        %v2265 = vunpack.c.l.b16 %v2221
        %v2266 = vunpack.c.l.b16 %v2222
        %v2267 = vunpack.c.l.b16 %v2223
        %v2268 = vpack.c.b16 %v2261, %v2260
        %v2269 = vpack.c.b16 %v2263, %v2262
        %v2270 = vpack.c.b16 %v2265, %v2264
        %v2271 = vpack.c.b16 %v2267, %v2266
        %v2277 = vsel %vm1320, %v2231, 0
        %v2280 = vsel %vm1320, %v2235, 0
        %v2283 = vsel %vm1320, %v2239, 0
        %v2286 = vsel %vm1320, %v2243, 0
        %v2289 = vsel %vm1320, %v2247, 0
        %v2292 = vsel %vm1320, %v2251, 0
        %2294 = vmatpush.bf16.msra.mxu0 0
        %2295 = vmatpush.bf16.msra.mxu0 0
        %2296 = vmatpush.bf16.msra.mxu0 0
        %2297 = vmatpush.bf16.msra.mxu0 0
        %2298 = vmatpush.bf16.msra.mxu0 %v2271
        %2299 = vmatpush.bf16.msra.mxu0 %v2270
        %2300 = vmatpush.bf16.msra.mxu0 %v2269
        %2301 = vmatpush.bf16.msra.mxu0 %v2268
        %2302 = vmatmul.bf16.gmra.mxu0 %v2277
        %v2303 = vpop.f32.mrf.mxu0
        %v2304 = vadd.f32 0.0, %v2303
        %v2305 = vpop.f32.mrf.mxu0
        %v2306 = vadd.f32 0.0, %v2305
        %2307 = vmatmul.bf16.gmra.mxu0 %v2280
        %v2308 = vpop.f32.mrf.mxu0
        %v2309 = vadd.f32 0.0, %v2308
        %v2310 = vpop.f32.mrf.mxu0
        %v2311 = vadd.f32 0.0, %v2310
        %2312 = vmatmul.bf16.gmra.mxu0 %v2283
        %v2313 = vpop.f32.mrf.mxu0
        %v2314 = vadd.f32 0.0, %v2313
        %v2315 = vpop.f32.mrf.mxu0
        %v2316 = vadd.f32 0.0, %v2315
        %2317 = vmatmul.bf16.gmra.mxu0 %v2286
        %v2318 = vpop.f32.mrf.mxu0
        %v2319 = vadd.f32 0.0, %v2318
        %v2320 = vpop.f32.mrf.mxu0
        %v2321 = vadd.f32 0.0, %v2320
        %2322 = vmatmul.bf16.gmra.mxu0 %v2289
        %v2323 = vpop.f32.mrf.mxu0
        %v2324 = vadd.f32 0.0, %v2323
        %v2325 = vpop.f32.mrf.mxu0
        %v2326 = vadd.f32 0.0, %v2325
        %2327 = vmatmul.bf16.gmra.mxu0 %v2292
        %v2328 = vpop.f32.mrf.mxu0
        %v2329 = vadd.f32 0.0, %v2328
        %v2330 = vpop.f32.mrf.mxu0
        %v2331 = vadd.f32 0.0, %v2330
        %2332 = vdwg.mxu0
        %v2333 = vadd.f32 %v2204, %v2304
        %v2334 = vadd.f32 %v2205, %v2306
        %v2335 = vadd.f32 %v2206, %v2309
        %v2336 = vadd.f32 %v2207, %v2311
        %v2337 = vadd.f32 %v2208, %v2314
        %v2338 = vadd.f32 %v2209, %v2316
        %v2339 = vadd.f32 %v2210, %v2319
        %v2340 = vadd.f32 %v2211, %v2321
        %v2341 = vadd.f32 %v2212, %v2324
        %v2342 = vadd.f32 %v2213, %v2326
        %v2343 = vadd.f32 %v2214, %v2329
        %v2344 = vadd.f32 %v2215, %v2331
        %v2345 = vld [vmem:[%s3 + $0x120] sm:$0xf]
        %v2346 = vld [vmem:[%s3 + $0x124] sm:$0xf]
        %v2347 = vld [vmem:[%s3 + $0x128] sm:$0xf]
        %v2348 = vld [vmem:[%s3 + $0x12c] sm:$0xf]
        %v2349 = vld [vmem:[%s3 + $0x130] sm:$0xf]
        %v2350 = vld [vmem:[%s3 + $0x134] sm:$0xf]
        %v2351 = vld [vmem:[%s3 + $0x138] sm:$0xf]
        %v2352 = vld [vmem:[%s3 + $0x13c] sm:$0xf]
        %v2353 = vpack.c.b16 %v1823, %v1235
        %v2362 = vunpack.c.l.b16 %v2345
        %v2363 = vunpack.c.l.b16 %v2346
        %v2364 = vunpack.c.l.b16 %v2347
        %v2365 = vunpack.c.l.b16 %v2348
        %v2366 = vunpack.c.l.b16 %v2349
        %v2367 = vunpack.c.l.b16 %v2350
        %v2368 = vunpack.c.l.b16 %v2351
        %v2369 = vunpack.c.l.b16 %v2352
        %v2370 = vpack.c.b16 %v2363, %v2362
        %v2371 = vpack.c.b16 %v2365, %v2364
        %v2372 = vpack.c.b16 %v2367, %v2366
        %v2373 = vpack.c.b16 %v2369, %v2368
        %v2379 = vsel %vm1320, %v2353, 0
        %2381 = vmatpush.bf16.msra.mxu0 0
        %2382 = vmatpush.bf16.msra.mxu0 0
        %2383 = vmatpush.bf16.msra.mxu0 0
        %2384 = vmatpush.bf16.msra.mxu0 0
        %2385 = vmatpush.bf16.msra.mxu0 %v2373
        %2386 = vmatpush.bf16.msra.mxu0 %v2372
        %2387 = vmatpush.bf16.msra.mxu0 %v2371
        %2388 = vmatpush.bf16.msra.mxu0 %v2370
        %2389 = vmatmul.bf16.gmra.mxu0 %v1404
        %v2390 = vpop.f32.mrf.mxu0
        %v2391 = vadd.f32 0.0, %v2390
        %v2392 = vpop.f32.mrf.mxu0
        %v2393 = vadd.f32 0.0, %v2392
        %2394 = vmatmul.bf16.gmra.mxu0 %v1406
        %v2395 = vpop.f32.mrf.mxu0
        %v2396 = vadd.f32 0.0, %v2395
        %v2397 = vpop.f32.mrf.mxu0
        %v2398 = vadd.f32 0.0, %v2397
        %2399 = vmatmul.bf16.gmra.mxu0 %v1408
        %v2400 = vpop.f32.mrf.mxu0
        %v2401 = vadd.f32 0.0, %v2400
        %v2402 = vpop.f32.mrf.mxu0
        %v2403 = vadd.f32 0.0, %v2402
        %2404 = vmatmul.bf16.gmra.mxu0 %v1410
        %v2405 = vpop.f32.mrf.mxu0
        %v2406 = vadd.f32 0.0, %v2405
        %v2407 = vpop.f32.mrf.mxu0
        %v2408 = vadd.f32 0.0, %v2407
        %2409 = vmatmul.bf16.gmra.mxu0 %v1412
        %v2410 = vpop.f32.mrf.mxu0
        %v2411 = vadd.f32 0.0, %v2410
        %v2412 = vpop.f32.mrf.mxu0
        %v2413 = vadd.f32 0.0, %v2412
        %2414 = vmatmul.bf16.gmra.mxu0 %v2379
        %v2415 = vpop.f32.mrf.mxu0
        %v2416 = vadd.f32 0.0, %v2415
        %v2417 = vpop.f32.mrf.mxu0
        %v2418 = vadd.f32 0.0, %v2417
        %2419 = vdwg.mxu0
        %v2420 = vadd.f32 %v2333, %v2391
        %v2421 = vadd.f32 %v2334, %v2393
        %v2422 = vadd.f32 %v2335, %v2396
        %v2423 = vadd.f32 %v2336, %v2398
        %v2424 = vadd.f32 %v2337, %v2401
        %v2425 = vadd.f32 %v2338, %v2403
        %v2426 = vadd.f32 %v2339, %v2406
        %v2427 = vadd.f32 %v2340, %v2408
        %v2428 = vadd.f32 %v2341, %v2411
        %v2429 = vadd.f32 %v2342, %v2413
        %v2430 = vadd.f32 %v2343, %v2416
        %v2431 = vadd.f32 %v2344, %v2418
        %v2432 = vld [vmem:[%s3 + $0x140] sm:$0xf]
        %v2433 = vld [vmem:[%s3 + $0x144] sm:$0xf]
        %v2434 = vld [vmem:[%s3 + $0x148] sm:$0xf]
        %v2435 = vld [vmem:[%s3 + $0x14c] sm:$0xf]
        %v2436 = vld [vmem:[%s3 + $0x150] sm:$0xf]
        %v2437 = vld [vmem:[%s3 + $0x154] sm:$0xf]
        %v2438 = vld [vmem:[%s3 + $0x158] sm:$0xf]
        %v2439 = vld [vmem:[%s3 + $0x15c] sm:$0xf]
        %v2441 = vunpack.c.l.b16 %v1189
        %v2442 = vpack.c.b16 %v2441, %v1823
        %v2451 = vunpack.c.l.b16 %v2432
        %v2452 = vunpack.c.l.b16 %v2433
        %v2453 = vunpack.c.l.b16 %v2434
        %v2454 = vunpack.c.l.b16 %v2435
        %v2455 = vunpack.c.l.b16 %v2436
        %v2456 = vunpack.c.l.b16 %v2437
        %v2457 = vunpack.c.l.b16 %v2438
        %v2458 = vunpack.c.l.b16 %v2439
        %v2459 = vpack.c.b16 %v2452, %v2451
        %v2460 = vpack.c.b16 %v2454, %v2453
        %v2461 = vpack.c.b16 %v2456, %v2455
        %v2462 = vpack.c.b16 %v2458, %v2457
        %v2467 = vsel %vm1320, %v1825, 0
        %v2469 = vsel %vm1320, %v1826, 0
        %v2471 = vsel %vm1320, %v1827, 0
        %v2473 = vsel %vm1320, %v1828, 0
        %v2475 = vsel %vm1320, %v1829, 0
        %v2478 = vsel %vm1320, %v2442, 0
        %2480 = vmatpush.bf16.msra.mxu0 0
        %2481 = vmatpush.bf16.msra.mxu0 0
        %2482 = vmatpush.bf16.msra.mxu0 0
        %2483 = vmatpush.bf16.msra.mxu0 0
        %2484 = vmatpush.bf16.msra.mxu0 %v2462
        %2485 = vmatpush.bf16.msra.mxu0 %v2461
        %2486 = vmatpush.bf16.msra.mxu0 %v2460
        %2487 = vmatpush.bf16.msra.mxu0 %v2459
        %2488 = vmatmul.bf16.gmra.mxu0 %v2467
        %v2489 = vpop.f32.mrf.mxu0
        %v2490 = vadd.f32 0.0, %v2489
        %v2491 = vpop.f32.mrf.mxu0
        %v2492 = vadd.f32 0.0, %v2491
        %2493 = vmatmul.bf16.gmra.mxu0 %v2469
        %v2494 = vpop.f32.mrf.mxu0
        %v2495 = vadd.f32 0.0, %v2494
        %v2496 = vpop.f32.mrf.mxu0
        %v2497 = vadd.f32 0.0, %v2496
        %2498 = vmatmul.bf16.gmra.mxu0 %v2471
        %v2499 = vpop.f32.mrf.mxu0
        %v2500 = vadd.f32 0.0, %v2499
        %v2501 = vpop.f32.mrf.mxu0
        %v2502 = vadd.f32 0.0, %v2501
        %2503 = vmatmul.bf16.gmra.mxu0 %v2473
        %v2504 = vpop.f32.mrf.mxu0
        %v2505 = vadd.f32 0.0, %v2504
        %v2506 = vpop.f32.mrf.mxu0
        %v2507 = vadd.f32 0.0, %v2506
        %2508 = vmatmul.bf16.gmra.mxu0 %v2475
        %v2509 = vpop.f32.mrf.mxu0
        %v2510 = vadd.f32 0.0, %v2509
        %v2511 = vpop.f32.mrf.mxu0
        %v2512 = vadd.f32 0.0, %v2511
        %2513 = vmatmul.bf16.gmra.mxu0 %v2478
        %v2514 = vpop.f32.mrf.mxu0
        %v2515 = vadd.f32 0.0, %v2514
        %v2516 = vpop.f32.mrf.mxu0
        %v2517 = vadd.f32 0.0, %v2516
        %2518 = vdwg.mxu0
        %v2519 = vadd.f32 %v2420, %v2490
        %v2520 = vadd.f32 %v2421, %v2492
        %v2521 = vadd.f32 %v2422, %v2495
        %v2522 = vadd.f32 %v2423, %v2497
        %v2523 = vadd.f32 %v2424, %v2500
        %v2524 = vadd.f32 %v2425, %v2502
        %v2525 = vadd.f32 %v2426, %v2505
        %v2526 = vadd.f32 %v2427, %v2507
        %v2527 = vadd.f32 %v2428, %v2510
        %v2528 = vadd.f32 %v2429, %v2512
        %v2529 = vadd.f32 %v2430, %v2515
        %v2530 = vadd.f32 %v2431, %v2517
        %v2531 = vld [vmem:[%s3 + $0x160] sm:$0xf]
        %v2532 = vld [vmem:[%s3 + $0x164] sm:$0xf]
        %v2533 = vld [vmem:[%s3 + $0x168] sm:$0xf]
        %v2534 = vld [vmem:[%s3 + $0x16c] sm:$0xf]
        %v2535 = vld [vmem:[%s3 + $0x170] sm:$0xf]
        %v2536 = vld [vmem:[%s3 + $0x174] sm:$0xf]
        %v2537 = vld [vmem:[%s3 + $0x178] sm:$0xf]
        %v2538 = vld [vmem:[%s3 + $0x17c] sm:$0xf]
        %v2540 = vunpack.c.l.b16 %v1190
        %v2541 = vpack.c.b16 %v2540, %v2540
        %v2542 = vrot.slane %v1958, 1
        %v2543 = vor.u32 %v1955, %v2542
        %v2544 = vrot.slane %v1967, 1
        %v2545 = vsel %vm1243, %v2543, %v2544
        %v2546 = vor.u32 %v1964, %v2544
        %v2547 = vrot.slane %v1976, 1
        %v2548 = vsel %vm1243, %v2546, %v2547
        %v2549 = vor.u32 %v1973, %v2547
        %v2550 = vrot.slane %v1985, 1
        %v2551 = vsel %vm1243, %v2549, %v2550
        %v2552 = vor.u32 %v1982, %v2550
        %v2553 = vrot.slane %v1994, 1
        %v2554 = vsel %vm1243, %v2552, %v2553
        %v2555 = vor.u32 %v1991, %v2553
        %v2556 = vshll.u32 %v2442, 16
        %v2558 = vrot.slane %v2556, 1
        %v2559 = vsel %vm1243, %v2555, %v2558
        %v2560 = vshrl.u32 %v2442, 16
        %v2562 = vor.u32 %v2560, %v2558
        %v2564 = vshll.u32 %v2541, 16
        %v2566 = vrot.slane %v2564, 1
        %v2567 = vsel %vm1243, %v2562, %v2566
        %v2576 = vunpack.c.l.b16 %v2531
        %v2577 = vunpack.c.l.b16 %v2532
        %v2578 = vunpack.c.l.b16 %v2533
        %v2579 = vunpack.c.l.b16 %v2534
        %v2580 = vunpack.c.l.b16 %v2535
        %v2581 = vunpack.c.l.b16 %v2536
        %v2582 = vunpack.c.l.b16 %v2537
        %v2583 = vunpack.c.l.b16 %v2538
        %v2584 = vpack.c.b16 %v2577, %v2576
        %v2585 = vpack.c.b16 %v2579, %v2578
        %v2586 = vpack.c.b16 %v2581, %v2580
        %v2587 = vpack.c.b16 %v2583, %v2582
        %v2593 = vsel %vm1320, %v2545, 0
        %v2596 = vsel %vm1320, %v2548, 0
        %v2599 = vsel %vm1320, %v2551, 0
        %v2602 = vsel %vm1320, %v2554, 0
        %v2605 = vsel %vm1320, %v2559, 0
        %v2608 = vsel %vm1320, %v2567, 0
        %2610 = vmatpush.bf16.msra.mxu0 0
        %2611 = vmatpush.bf16.msra.mxu0 0
        %2612 = vmatpush.bf16.msra.mxu0 0
        %2613 = vmatpush.bf16.msra.mxu0 0
        %2614 = vmatpush.bf16.msra.mxu0 %v2587
        %2615 = vmatpush.bf16.msra.mxu0 %v2586
        %2616 = vmatpush.bf16.msra.mxu0 %v2585
        %2617 = vmatpush.bf16.msra.mxu0 %v2584
        %2618 = vmatmul.bf16.gmra.mxu0 %v2593
        %v2619 = vpop.f32.mrf.mxu0
        %v2620 = vadd.f32 0.0, %v2619
        %v2621 = vpop.f32.mrf.mxu0
        %v2622 = vadd.f32 0.0, %v2621
        %2623 = vmatmul.bf16.gmra.mxu0 %v2596
        %v2624 = vpop.f32.mrf.mxu0
        %v2625 = vadd.f32 0.0, %v2624
        %v2626 = vpop.f32.mrf.mxu0
        %v2627 = vadd.f32 0.0, %v2626
        %2628 = vmatmul.bf16.gmra.mxu0 %v2599
        %v2629 = vpop.f32.mrf.mxu0
        %v2630 = vadd.f32 0.0, %v2629
        %v2631 = vpop.f32.mrf.mxu0
        %v2632 = vadd.f32 0.0, %v2631
        %2633 = vmatmul.bf16.gmra.mxu0 %v2602
        %v2634 = vpop.f32.mrf.mxu0
        %v2635 = vadd.f32 0.0, %v2634
        %v2636 = vpop.f32.mrf.mxu0
        %v2637 = vadd.f32 0.0, %v2636
        %2638 = vmatmul.bf16.gmra.mxu0 %v2605
        %v2639 = vpop.f32.mrf.mxu0
        %v2640 = vadd.f32 0.0, %v2639
        %v2641 = vpop.f32.mrf.mxu0
        %v2642 = vadd.f32 0.0, %v2641
        %2643 = vmatmul.bf16.gmra.mxu0 %v2608
        %v2644 = vpop.f32.mrf.mxu0
        %v2645 = vadd.f32 0.0, %v2644
        %v2646 = vpop.f32.mrf.mxu0
        %v2647 = vadd.f32 0.0, %v2646
        %2648 = vdwg.mxu0
        %v2649 = vadd.f32 %v2519, %v2620
        %v2650 = vadd.f32 %v2520, %v2622
        %v2651 = vadd.f32 %v2521, %v2625
        %v2652 = vadd.f32 %v2522, %v2627
        %v2653 = vadd.f32 %v2523, %v2630
        %v2654 = vadd.f32 %v2524, %v2632
        %v2655 = vadd.f32 %v2525, %v2635
        %v2656 = vadd.f32 %v2526, %v2637
        %v2657 = vadd.f32 %v2527, %v2640
        %v2658 = vadd.f32 %v2528, %v2642
        %v2659 = vadd.f32 %v2529, %v2645
        %v2660 = vadd.f32 %v2530, %v2647
        %v2661 = vld [vmem:[%s3 + $0x180] sm:$0xf]
        %v2662 = vld [vmem:[%s3 + $0x184] sm:$0xf]
        %v2663 = vld [vmem:[%s3 + $0x188] sm:$0xf]
        %v2664 = vld [vmem:[%s3 + $0x18c] sm:$0xf]
        %v2665 = vld [vmem:[%s3 + $0x190] sm:$0xf]
        %v2666 = vld [vmem:[%s3 + $0x194] sm:$0xf]
        %v2667 = vld [vmem:[%s3 + $0x198] sm:$0xf]
        %v2668 = vld [vmem:[%s3 + $0x19c] sm:$0xf]
        %v2669 = vrot.slane %v1825, 1
        %v2670 = vrot.slane %v1826, 1
        %v2671 = vsel %vm1461, %v2669, %v2670
        %v2672 = vrot.slane %v1827, 1
        %v2673 = vsel %vm1461, %v2670, %v2672
        %v2674 = vrot.slane %v1828, 1
        %v2675 = vsel %vm1461, %v2672, %v2674
        %v2676 = vrot.slane %v1829, 1
        %v2677 = vsel %vm1461, %v2674, %v2676
        %v2678 = vrot.slane %v2442, 1
        %v2679 = vsel %vm1461, %v2676, %v2678
        %v2680 = vrot.slane %v2541, 1
        %v2681 = vsel %vm1461, %v2678, %v2680
        %v2690 = vunpack.c.l.b16 %v2661
        %v2691 = vunpack.c.l.b16 %v2662
        %v2692 = vunpack.c.l.b16 %v2663
        %v2693 = vunpack.c.l.b16 %v2664
        %v2694 = vunpack.c.l.b16 %v2665
        %v2695 = vunpack.c.l.b16 %v2666
        %v2696 = vunpack.c.l.b16 %v2667
        %v2697 = vunpack.c.l.b16 %v2668
        %v2698 = vpack.c.b16 %v2691, %v2690
        %v2699 = vpack.c.b16 %v2693, %v2692
        %v2700 = vpack.c.b16 %v2695, %v2694
        %v2701 = vpack.c.b16 %v2697, %v2696
        %v2707 = vsel %vm1320, %v2671, 0
        %v2710 = vsel %vm1320, %v2673, 0
        %v2713 = vsel %vm1320, %v2675, 0
        %v2716 = vsel %vm1320, %v2677, 0
        %v2719 = vsel %vm1320, %v2679, 0
        %v2722 = vsel %vm1320, %v2681, 0
        %2724 = vmatpush.bf16.msra.mxu0 0
        %2725 = vmatpush.bf16.msra.mxu0 0
        %2726 = vmatpush.bf16.msra.mxu0 0
        %2727 = vmatpush.bf16.msra.mxu0 0
        %2728 = vmatpush.bf16.msra.mxu0 %v2701
        %2729 = vmatpush.bf16.msra.mxu0 %v2700
        %2730 = vmatpush.bf16.msra.mxu0 %v2699
        %2731 = vmatpush.bf16.msra.mxu0 %v2698
        %2732 = vmatmul.bf16.gmra.mxu0 %v2707
        %v2733 = vpop.f32.mrf.mxu0
        %v2734 = vadd.f32 0.0, %v2733
        %v2735 = vpop.f32.mrf.mxu0
        %v2736 = vadd.f32 0.0, %v2735
        %2737 = vmatmul.bf16.gmra.mxu0 %v2710
        %v2738 = vpop.f32.mrf.mxu0
        %v2739 = vadd.f32 0.0, %v2738
        %v2740 = vpop.f32.mrf.mxu0
        %v2741 = vadd.f32 0.0, %v2740
        %2742 = vmatmul.bf16.gmra.mxu0 %v2713
        %v2743 = vpop.f32.mrf.mxu0
        %v2744 = vadd.f32 0.0, %v2743
        %v2745 = vpop.f32.mrf.mxu0
        %v2746 = vadd.f32 0.0, %v2745
        %2747 = vmatmul.bf16.gmra.mxu0 %v2716
        %v2748 = vpop.f32.mrf.mxu0
        %v2749 = vadd.f32 0.0, %v2748
        %v2750 = vpop.f32.mrf.mxu0
        %v2751 = vadd.f32 0.0, %v2750
        %2752 = vmatmul.bf16.gmra.mxu0 %v2719
        %v2753 = vpop.f32.mrf.mxu0
        %v2754 = vadd.f32 0.0, %v2753
        %v2755 = vpop.f32.mrf.mxu0
        %v2756 = vadd.f32 0.0, %v2755
        %2757 = vmatmul.bf16.gmra.mxu0 %v2722
        %v2758 = vpop.f32.mrf.mxu0
        %v2759 = vadd.f32 0.0, %v2758
        %v2760 = vpop.f32.mrf.mxu0
        %v2761 = vadd.f32 0.0, %v2760
        %2762 = vdwg.mxu0
        %v2763 = vadd.f32 %v2649, %v2734
        %v2764 = vadd.f32 %v2650, %v2736
        %v2765 = vadd.f32 %v2651, %v2739
        %v2766 = vadd.f32 %v2652, %v2741
        %v2767 = vadd.f32 %v2653, %v2744
        %v2768 = vadd.f32 %v2654, %v2746
        %v2769 = vadd.f32 %v2655, %v2749
        %v2770 = vadd.f32 %v2656, %v2751
        %v2771 = vadd.f32 %v2657, %v2754
        %v2772 = vadd.f32 %v2658, %v2756
        %v2773 = vadd.f32 %v2659, %v2759
        %v2774 = vadd.f32 %v2660, %v2761
        %v2775 = vld [vmem:[%s3 + $0x1a0] sm:$0xf]
        %v2776 = vld [vmem:[%s3 + $0x1a4] sm:$0xf]
        %v2777 = vld [vmem:[%s3 + $0x1a8] sm:$0xf]
        %v2778 = vld [vmem:[%s3 + $0x1ac] sm:$0xf]
        %v2779 = vld [vmem:[%s3 + $0x1b0] sm:$0xf]
        %v2780 = vld [vmem:[%s3 + $0x1b4] sm:$0xf]
        %v2781 = vld [vmem:[%s3 + $0x1b8] sm:$0xf]
        %v2782 = vld [vmem:[%s3 + $0x1bc] sm:$0xf]
        %v2783 = vrot.slane %v1955, 1
        %v2784 = vrot.slane %v1958, 2
        %v2785 = vor.u32 %v2783, %v2784
        %v2786 = vrot.slane %v1964, 1
        %v2787 = vrot.slane %v1967, 2
        %v2788 = vor.u32 %v2786, %v2787
        %v2789 = vsel %vm1576, %v2785, %v2788
        %v2790 = vrot.slane %v1973, 1
        %v2791 = vrot.slane %v1976, 2
        %v2792 = vor.u32 %v2790, %v2791
        %v2793 = vsel %vm1576, %v2788, %v2792
        %v2794 = vrot.slane %v1982, 1
        %v2795 = vrot.slane %v1985, 2
        %v2796 = vor.u32 %v2794, %v2795
        %v2797 = vsel %vm1576, %v2792, %v2796
        %v2798 = vrot.slane %v1991, 1
        %v2799 = vrot.slane %v1994, 2
        %v2800 = vor.u32 %v2798, %v2799
        %v2801 = vsel %vm1576, %v2796, %v2800
        %v2802 = vrot.slane %v2560, 1
        %v2803 = vrot.slane %v2556, 2
        %v2804 = vor.u32 %v2802, %v2803
        %v2805 = vsel %vm1576, %v2800, %v2804
        %v2806 = vshrl.u32 %v2541, 16
        %v2808 = vrot.slane %v2806, 1
        %v2809 = vrot.slane %v2564, 2
        %v2810 = vor.u32 %v2808, %v2809
        %v2811 = vsel %vm1576, %v2804, %v2810
        %v2820 = vunpack.c.l.b16 %v2775
        %v2821 = vunpack.c.l.b16 %v2776
        %v2822 = vunpack.c.l.b16 %v2777
        %v2823 = vunpack.c.l.b16 %v2778
        %v2824 = vunpack.c.l.b16 %v2779
        %v2825 = vunpack.c.l.b16 %v2780
        %v2826 = vunpack.c.l.b16 %v2781
        %v2827 = vunpack.c.l.b16 %v2782
        %v2828 = vpack.c.b16 %v2821, %v2820
        %v2829 = vpack.c.b16 %v2823, %v2822
        %v2830 = vpack.c.b16 %v2825, %v2824
        %v2831 = vpack.c.b16 %v2827, %v2826
        %v2837 = vsel %vm1320, %v2789, 0
        %v2840 = vsel %vm1320, %v2793, 0
        %v2843 = vsel %vm1320, %v2797, 0
        %v2846 = vsel %vm1320, %v2801, 0
        %v2849 = vsel %vm1320, %v2805, 0
        %v2852 = vsel %vm1320, %v2811, 0
        %2854 = vmatpush.bf16.msra.mxu0 0
        %2855 = vmatpush.bf16.msra.mxu0 0
        %2856 = vmatpush.bf16.msra.mxu0 0
        %2857 = vmatpush.bf16.msra.mxu0 0
        %2858 = vmatpush.bf16.msra.mxu0 %v2831
        %2859 = vmatpush.bf16.msra.mxu0 %v2830
        %2860 = vmatpush.bf16.msra.mxu0 %v2829
        %2861 = vmatpush.bf16.msra.mxu0 %v2828
        %2862 = vmatmul.bf16.gmra.mxu0 %v2837
        %v2863 = vpop.f32.mrf.mxu0
        %v2864 = vadd.f32 0.0, %v2863
        %v2865 = vpop.f32.mrf.mxu0
        %v2866 = vadd.f32 0.0, %v2865
        %2867 = vmatmul.bf16.gmra.mxu0 %v2840
        %v2868 = vpop.f32.mrf.mxu0
        %v2869 = vadd.f32 0.0, %v2868
        %v2870 = vpop.f32.mrf.mxu0
        %v2871 = vadd.f32 0.0, %v2870
        %2872 = vmatmul.bf16.gmra.mxu0 %v2843
        %v2873 = vpop.f32.mrf.mxu0
        %v2874 = vadd.f32 0.0, %v2873
        %v2875 = vpop.f32.mrf.mxu0
        %v2876 = vadd.f32 0.0, %v2875
        %2877 = vmatmul.bf16.gmra.mxu0 %v2846
        %v2878 = vpop.f32.mrf.mxu0
        %v2879 = vadd.f32 0.0, %v2878
        %v2880 = vpop.f32.mrf.mxu0
        %v2881 = vadd.f32 0.0, %v2880
        %2882 = vmatmul.bf16.gmra.mxu0 %v2849
        %v2883 = vpop.f32.mrf.mxu0
        %v2884 = vadd.f32 0.0, %v2883
        %v2885 = vpop.f32.mrf.mxu0
        %v2886 = vadd.f32 0.0, %v2885
        %2887 = vmatmul.bf16.gmra.mxu0 %v2852
        %v2888 = vpop.f32.mrf.mxu0
        %v2889 = vadd.f32 0.0, %v2888
        %v2890 = vpop.f32.mrf.mxu0
        %v2891 = vadd.f32 0.0, %v2890
        %2892 = vdwg.mxu0
        %v2893 = vadd.f32 %v2763, %v2864
        %v2894 = vadd.f32 %v2764, %v2866
        %v2895 = vadd.f32 %v2765, %v2869
        %v2896 = vadd.f32 %v2766, %v2871
        %v2897 = vadd.f32 %v2767, %v2874
        %v2898 = vadd.f32 %v2768, %v2876
        %v2899 = vadd.f32 %v2769, %v2879
        %v2900 = vadd.f32 %v2770, %v2881
        %v2901 = vadd.f32 %v2771, %v2884
        %v2902 = vadd.f32 %v2772, %v2886
        %v2903 = vadd.f32 %v2773, %v2889
        %v2904 = vadd.f32 %v2774, %v2891
        %v2905 = vld [vmem:[%s3 + $0x1c0] sm:$0xf]
        %v2906 = vld [vmem:[%s3 + $0x1c4] sm:$0xf]
        %v2907 = vld [vmem:[%s3 + $0x1c8] sm:$0xf]
        %v2908 = vld [vmem:[%s3 + $0x1cc] sm:$0xf]
        %v2909 = vld [vmem:[%s3 + $0x1d0] sm:$0xf]
        %v2910 = vld [vmem:[%s3 + $0x1d4] sm:$0xf]
        %v2911 = vld [vmem:[%s3 + $0x1d8] sm:$0xf]
        %v2912 = vld [vmem:[%s3 + $0x1dc] sm:$0xf]
        %v2913 = vrot.slane %v2442, 2
        %v2914 = vsel %vm1707, %v1840, %v2913
        %v2915 = vrot.slane %v2541, 2
        %v2916 = vsel %vm1707, %v2913, %v2915
        %v2925 = vunpack.c.l.b16 %v2905
        %v2926 = vunpack.c.l.b16 %v2906
        %v2927 = vunpack.c.l.b16 %v2907
        %v2928 = vunpack.c.l.b16 %v2908
        %v2929 = vunpack.c.l.b16 %v2909
        %v2930 = vunpack.c.l.b16 %v2910
        %v2931 = vunpack.c.l.b16 %v2911
        %v2932 = vunpack.c.l.b16 %v2912
        %v2933 = vpack.c.b16 %v2926, %v2925
        %v2934 = vpack.c.b16 %v2928, %v2927
        %v2935 = vpack.c.b16 %v2930, %v2929
        %v2936 = vpack.c.b16 %v2932, %v2931
        %v2942 = vsel %vm1320, %v2914, 0
        %v2945 = vsel %vm1320, %v2916, 0
        %2947 = vmatpush.bf16.msra.mxu0 0
        %2948 = vmatpush.bf16.msra.mxu0 0
        %2949 = vmatpush.bf16.msra.mxu0 0
        %2950 = vmatpush.bf16.msra.mxu0 0
        %2951 = vmatpush.bf16.msra.mxu0 %v2936
        %2952 = vmatpush.bf16.msra.mxu0 %v2935
        %2953 = vmatpush.bf16.msra.mxu0 %v2934
        %2954 = vmatpush.bf16.msra.mxu0 %v2933
        %2955 = vmatmul.bf16.gmra.mxu0 %v1872
        %v2956 = vpop.f32.mrf.mxu0
        %v2957 = vadd.f32 0.0, %v2956
        %v2958 = vpop.f32.mrf.mxu0
        %v2959 = vadd.f32 0.0, %v2958
        %2960 = vmatmul.bf16.gmra.mxu0 %v1875
        %v2961 = vpop.f32.mrf.mxu0
        %v2962 = vadd.f32 0.0, %v2961
        %v2963 = vpop.f32.mrf.mxu0
        %v2964 = vadd.f32 0.0, %v2963
        %2965 = vmatmul.bf16.gmra.mxu0 %v1878
        %v2966 = vpop.f32.mrf.mxu0
        %v2967 = vadd.f32 0.0, %v2966
        %v2968 = vpop.f32.mrf.mxu0
        %v2969 = vadd.f32 0.0, %v2968
        %2970 = vmatmul.bf16.gmra.mxu0 %v1881
        %v2971 = vpop.f32.mrf.mxu0
        %v2972 = vadd.f32 0.0, %v2971
        %v2973 = vpop.f32.mrf.mxu0
        %v2974 = vadd.f32 0.0, %v2973
        %2975 = vmatmul.bf16.gmra.mxu0 %v2942
        %v2976 = vpop.f32.mrf.mxu0
        %v2977 = vadd.f32 0.0, %v2976
        %v2978 = vpop.f32.mrf.mxu0
        %v2979 = vadd.f32 0.0, %v2978
        %2980 = vmatmul.bf16.gmra.mxu0 %v2945
        %v2981 = vpop.f32.mrf.mxu0
        %v2982 = vadd.f32 0.0, %v2981
        %v2983 = vpop.f32.mrf.mxu0
        %v2984 = vadd.f32 0.0, %v2983
        %2985 = vdwg.mxu0
        %v2986 = vadd.f32 %v2893, %v2957
        %v2987 = vadd.f32 %v2894, %v2959
        %v2988 = vadd.f32 %v2895, %v2962
        %v2989 = vadd.f32 %v2896, %v2964
        %v2990 = vadd.f32 %v2897, %v2967
        %v2991 = vadd.f32 %v2898, %v2969
        %v2992 = vadd.f32 %v2899, %v2972
        %v2993 = vadd.f32 %v2900, %v2974
        %v2994 = vadd.f32 %v2901, %v2977
        %v2995 = vadd.f32 %v2902, %v2979
        %v2996 = vadd.f32 %v2903, %v2982
        %v2997 = vadd.f32 %v2904, %v2984
        %v2998 = vld [vmem:[%s3 + $0x1e0] sm:$0xf]
        %v2999 = vld [vmem:[%s3 + $0x1e4] sm:$0xf]
        %v3000 = vld [vmem:[%s3 + $0x1e8] sm:$0xf]
        %v3001 = vld [vmem:[%s3 + $0x1ec] sm:$0xf]
        %v3002 = vld [vmem:[%s3 + $0x1f0] sm:$0xf]
        %v3003 = vld [vmem:[%s3 + $0x1f4] sm:$0xf]
        %v3004 = vld [vmem:[%s3 + $0x1f8] sm:$0xf]
        %v3005 = vld [vmem:[%s3 + $0x1fc] sm:$0xf]
        %v3007 = vunpack.c.l.b16 %v1191
        %v3008 = vpack.c.b16 %v2540, %v2441
        %v3009 = vpack.c.b16 %v3007, %v3007
        %v3010 = vrot.slane %v2353, 2
        %v3011 = vsel %vm1707, %v1717, %v3010
        %v3012 = vrot.slane %v3008, 2
        %v3013 = vsel %vm1707, %v3010, %v3012
        %v3014 = vrot.slane %v3009, 2
        %v3015 = vsel %vm1707, %v3012, %v3014
        %v3024 = vunpack.c.l.b16 %v2998
        %v3025 = vunpack.c.l.b16 %v2999
        %v3026 = vunpack.c.l.b16 %v3000
        %v3027 = vunpack.c.l.b16 %v3001
        %v3028 = vunpack.c.l.b16 %v3002
        %v3029 = vunpack.c.l.b16 %v3003
        %v3030 = vunpack.c.l.b16 %v3004
        %v3031 = vunpack.c.l.b16 %v3005
        %v3032 = vpack.c.b16 %v3025, %v3024
        %v3033 = vpack.c.b16 %v3027, %v3026
        %v3034 = vpack.c.b16 %v3029, %v3028
        %v3035 = vpack.c.b16 %v3031, %v3030
        %v3041 = vsel %vm1320, %v3011, 0
        %v3044 = vsel %vm1320, %v3013, 0
        %v3047 = vsel %vm1320, %v3015, 0
        %3049 = vmatpush.bf16.msra.mxu0 0
        %3050 = vmatpush.bf16.msra.mxu0 0
        %3051 = vmatpush.bf16.msra.mxu0 0
        %3052 = vmatpush.bf16.msra.mxu0 0
        %3053 = vmatpush.bf16.msra.mxu0 %v3035
        %3054 = vmatpush.bf16.msra.mxu0 %v3034
        %3055 = vmatpush.bf16.msra.mxu0 %v3033
        %3056 = vmatpush.bf16.msra.mxu0 %v3032
        %3057 = vmatmul.bf16.gmra.mxu0 %v1752
        %v3058 = vpop.f32.mrf.mxu0
        %v3059 = vadd.f32 0.0, %v3058
        %v3060 = vpop.f32.mrf.mxu0
        %v3061 = vadd.f32 0.0, %v3060
        %3062 = vmatmul.bf16.gmra.mxu0 %v1755
        %v3063 = vpop.f32.mrf.mxu0
        %v3064 = vadd.f32 0.0, %v3063
        %v3065 = vpop.f32.mrf.mxu0
        %v3066 = vadd.f32 0.0, %v3065
        %3067 = vmatmul.bf16.gmra.mxu0 %v1758
        %v3068 = vpop.f32.mrf.mxu0
        %v3069 = vadd.f32 0.0, %v3068
        %v3070 = vpop.f32.mrf.mxu0
        %v3071 = vadd.f32 0.0, %v3070
        %3072 = vmatmul.bf16.gmra.mxu0 %v3041
        %v3073 = vpop.f32.mrf.mxu0
        %v3074 = vadd.f32 0.0, %v3073
        %v3075 = vpop.f32.mrf.mxu0
        %v3076 = vadd.f32 0.0, %v3075
        %3077 = vmatmul.bf16.gmra.mxu0 %v3044
        %v3078 = vpop.f32.mrf.mxu0
        %v3079 = vadd.f32 0.0, %v3078
        %v3080 = vpop.f32.mrf.mxu0
        %v3081 = vadd.f32 0.0, %v3080
        %3082 = vmatmul.bf16.gmra.mxu0 %v3047
        %v3083 = vpop.f32.mrf.mxu0
        %v3084 = vadd.f32 0.0, %v3083
        %v3085 = vpop.f32.mrf.mxu0
        %v3086 = vadd.f32 0.0, %v3085
        %3087 = vdwg.mxu0
        %v3088 = vadd.f32 %v2986, %v3059
        %v3089 = vadd.f32 %v2987, %v3061
        %v3090 = vadd.f32 %v2988, %v3064
        %v3091 = vadd.f32 %v2989, %v3066
        %v3092 = vadd.f32 %v2990, %v3069
        %v3093 = vadd.f32 %v2991, %v3071
        %v3094 = vadd.f32 %v2992, %v3074
        %v3095 = vadd.f32 %v2993, %v3076
        %v3096 = vadd.f32 %v2994, %v3079
        %v3097 = vadd.f32 %v2995, %v3081
        %v3098 = vadd.f32 %v2996, %v3084
        %v3099 = vadd.f32 %v2997, %v3086
        %v3100 = vld [vmem:[%s3 + $0x200] sm:$0xf]
        %v3101 = vld [vmem:[%s3 + $0x204] sm:$0xf]
        %v3102 = vld [vmem:[%s3 + $0x208] sm:$0xf]
        %v3103 = vld [vmem:[%s3 + $0x20c] sm:$0xf]
        %v3104 = vld [vmem:[%s3 + $0x210] sm:$0xf]
        %v3105 = vld [vmem:[%s3 + $0x214] sm:$0xf]
        %v3106 = vld [vmem:[%s3 + $0x218] sm:$0xf]
        %v3107 = vld [vmem:[%s3 + $0x21c] sm:$0xf]
        %v3108 = vrot.slane %v1264, 2
        %v3109 = vrot.slane %v1260, 3
        %v3110 = vor.u32 %v3108, %v3109
        %v3111 = vrot.slane %v1272, 2
        %v3112 = vrot.slane %v1268, 3
        %v3113 = vor.u32 %v3111, %v3112
        %v3114 = vsel %vm1945, %v3110, %v3113
        %v3115 = vrot.slane %v1280, 2
        %v3116 = vrot.slane %v1276, 3
        %v3117 = vor.u32 %v3115, %v3116
        %v3118 = vsel %vm1945, %v3113, %v3117
        %v3119 = vrot.slane %v1288, 2
        %v3120 = vrot.slane %v1284, 3
        %v3121 = vor.u32 %v3119, %v3120
        %v3122 = vsel %vm1945, %v3117, %v3121
        %v3123 = vshrl.u32 %v2353, 16
        %v3125 = vrot.slane %v3123, 2
        %v3126 = vshll.u32 %v2353, 16
        %v3128 = vrot.slane %v3126, 3
        %v3129 = vor.u32 %v3125, %v3128
        %v3130 = vsel %vm1945, %v3121, %v3129
        %v3132 = vshrl.u32 %v3008, 16
        %v3134 = vrot.slane %v3132, 2
        %v3135 = vshll.u32 %v3008, 16
        %v3137 = vrot.slane %v3135, 3
        %v3138 = vor.u32 %v3134, %v3137
        %v3139 = vsel %vm1945, %v3129, %v3138
        %v3141 = vshrl.u32 %v3009, 16
        %v3143 = vrot.slane %v3141, 2
        %v3144 = vshll.u32 %v3009, 16
        %v3146 = vrot.slane %v3144, 3
        %v3147 = vor.u32 %v3143, %v3146
        %v3148 = vsel %vm1945, %v3138, %v3147
        %v3157 = vunpack.c.l.b16 %v3100
        %v3158 = vunpack.c.l.b16 %v3101
        %v3159 = vunpack.c.l.b16 %v3102
        %v3160 = vunpack.c.l.b16 %v3103
        %v3161 = vunpack.c.l.b16 %v3104
        %v3162 = vunpack.c.l.b16 %v3105
        %v3163 = vunpack.c.l.b16 %v3106
        %v3164 = vunpack.c.l.b16 %v3107
        %v3165 = vpack.c.b16 %v3158, %v3157
        %v3166 = vpack.c.b16 %v3160, %v3159
        %v3167 = vpack.c.b16 %v3162, %v3161
        %v3168 = vpack.c.b16 %v3164, %v3163
        %v3174 = vsel %vm1320, %v3114, 0
        %v3177 = vsel %vm1320, %v3118, 0
        %v3180 = vsel %vm1320, %v3122, 0
        %v3183 = vsel %vm1320, %v3130, 0
        %v3186 = vsel %vm1320, %v3139, 0
        %v3189 = vsel %vm1320, %v3148, 0
        %3191 = vmatpush.bf16.msra.mxu0 0
        %3192 = vmatpush.bf16.msra.mxu0 0
        %3193 = vmatpush.bf16.msra.mxu0 0
        %3194 = vmatpush.bf16.msra.mxu0 0
        %3195 = vmatpush.bf16.msra.mxu0 %v3168
        %3196 = vmatpush.bf16.msra.mxu0 %v3167
        %3197 = vmatpush.bf16.msra.mxu0 %v3166
        %3198 = vmatpush.bf16.msra.mxu0 %v3165
        %3199 = vmatmul.bf16.gmra.mxu0 %v3174
        %v3200 = vpop.f32.mrf.mxu0
        %v3201 = vadd.f32 0.0, %v3200
        %v3202 = vpop.f32.mrf.mxu0
        %v3203 = vadd.f32 0.0, %v3202
        %3204 = vmatmul.bf16.gmra.mxu0 %v3177
        %v3205 = vpop.f32.mrf.mxu0
        %v3206 = vadd.f32 0.0, %v3205
        %v3207 = vpop.f32.mrf.mxu0
        %v3208 = vadd.f32 0.0, %v3207
        %3209 = vmatmul.bf16.gmra.mxu0 %v3180
        %v3210 = vpop.f32.mrf.mxu0
        %v3211 = vadd.f32 0.0, %v3210
        %v3212 = vpop.f32.mrf.mxu0
        %v3213 = vadd.f32 0.0, %v3212
        %3214 = vmatmul.bf16.gmra.mxu0 %v3183
        %v3215 = vpop.f32.mrf.mxu0
        %v3216 = vadd.f32 0.0, %v3215
        %v3217 = vpop.f32.mrf.mxu0
        %v3218 = vadd.f32 0.0, %v3217
        %3219 = vmatmul.bf16.gmra.mxu0 %v3186
        %v3220 = vpop.f32.mrf.mxu0
        %v3221 = vadd.f32 0.0, %v3220
        %v3222 = vpop.f32.mrf.mxu0
        %v3223 = vadd.f32 0.0, %v3222
        %3224 = vmatmul.bf16.gmra.mxu0 %v3189
        %v3225 = vpop.f32.mrf.mxu0
        %v3226 = vadd.f32 0.0, %v3225
        %v3227 = vpop.f32.mrf.mxu0
        %v3228 = vadd.f32 0.0, %v3227
        %3229 = vdwg.mxu0
        %v3230 = vadd.f32 %v3088, %v3201
        %v3231 = vadd.f32 %v3089, %v3203
        %v3232 = vadd.f32 %v3090, %v3206
        %v3233 = vadd.f32 %v3091, %v3208
        %v3234 = vadd.f32 %v3092, %v3211
        %v3235 = vadd.f32 %v3093, %v3213
        %v3236 = vadd.f32 %v3094, %v3216
        %v3237 = vadd.f32 %v3095, %v3218
        %v3238 = vadd.f32 %v3096, %v3221
        %v3239 = vadd.f32 %v3097, %v3223
        %v3240 = vadd.f32 %v3098, %v3226
        %v3241 = vadd.f32 %v3099, %v3228
        %v3242 = vld [vmem:[%s3 + $0x220] sm:$0xf]
        %v3243 = vld [vmem:[%s3 + $0x224] sm:$0xf]
        %v3244 = vld [vmem:[%s3 + $0x228] sm:$0xf]
        %v3245 = vld [vmem:[%s3 + $0x22c] sm:$0xf]
        %v3246 = vld [vmem:[%s3 + $0x230] sm:$0xf]
        %v3247 = vld [vmem:[%s3 + $0x234] sm:$0xf]
        %v3248 = vld [vmem:[%s3 + $0x238] sm:$0xf]
        %v3249 = vld [vmem:[%s3 + $0x23c] sm:$0xf]
        %v3250 = vrot.slane %v1238, 3
        %v3251 = vrot.slane %v1239, 3
        %v3252 = vsel %vm2109, %v3250, %v3251
        %v3253 = vrot.slane %v1240, 3
        %v3254 = vsel %vm2109, %v3251, %v3253
        %v3255 = vrot.slane %v1241, 3
        %v3256 = vsel %vm2109, %v3253, %v3255
        %v3257 = vrot.slane %v2353, 3
        %v3258 = vsel %vm2109, %v3255, %v3257
        %v3259 = vrot.slane %v3008, 3
        %v3260 = vsel %vm2109, %v3257, %v3259
        %v3261 = vrot.slane %v3009, 3
        %v3262 = vsel %vm2109, %v3259, %v3261
        %v3271 = vunpack.c.l.b16 %v3242
        %v3272 = vunpack.c.l.b16 %v3243
        %v3273 = vunpack.c.l.b16 %v3244
        %v3274 = vunpack.c.l.b16 %v3245
        %v3275 = vunpack.c.l.b16 %v3246
        %v3276 = vunpack.c.l.b16 %v3247
        %v3277 = vunpack.c.l.b16 %v3248
        %v3278 = vunpack.c.l.b16 %v3249
        %v3279 = vpack.c.b16 %v3272, %v3271
        %v3280 = vpack.c.b16 %v3274, %v3273
        %v3281 = vpack.c.b16 %v3276, %v3275
        %v3282 = vpack.c.b16 %v3278, %v3277
        %v3288 = vsel %vm1320, %v3252, 0
        %v3291 = vsel %vm1320, %v3254, 0
        %v3294 = vsel %vm1320, %v3256, 0
        %v3297 = vsel %vm1320, %v3258, 0
        %v3300 = vsel %vm1320, %v3260, 0
        %v3303 = vsel %vm1320, %v3262, 0
        %3305 = vmatpush.bf16.msra.mxu0 0
        %3306 = vmatpush.bf16.msra.mxu0 0
        %3307 = vmatpush.bf16.msra.mxu0 0
        %3308 = vmatpush.bf16.msra.mxu0 0
        %3309 = vmatpush.bf16.msra.mxu0 %v3282
        %3310 = vmatpush.bf16.msra.mxu0 %v3281
        %3311 = vmatpush.bf16.msra.mxu0 %v3280
        %3312 = vmatpush.bf16.msra.mxu0 %v3279
        %3313 = vmatmul.bf16.gmra.mxu0 %v3288
        %v3314 = vpop.f32.mrf.mxu0
        %v3315 = vadd.f32 0.0, %v3314
        %v3316 = vpop.f32.mrf.mxu0
        %v3317 = vadd.f32 0.0, %v3316
        %3318 = vmatmul.bf16.gmra.mxu0 %v3291
        %v3319 = vpop.f32.mrf.mxu0
        %v3320 = vadd.f32 0.0, %v3319
        %v3321 = vpop.f32.mrf.mxu0
        %v3322 = vadd.f32 0.0, %v3321
        %3323 = vmatmul.bf16.gmra.mxu0 %v3294
        %v3324 = vpop.f32.mrf.mxu0
        %v3325 = vadd.f32 0.0, %v3324
        %v3326 = vpop.f32.mrf.mxu0
        %v3327 = vadd.f32 0.0, %v3326
        %3328 = vmatmul.bf16.gmra.mxu0 %v3297
        %v3329 = vpop.f32.mrf.mxu0
        %v3330 = vadd.f32 0.0, %v3329
        %v3331 = vpop.f32.mrf.mxu0
        %v3332 = vadd.f32 0.0, %v3331
        %3333 = vmatmul.bf16.gmra.mxu0 %v3300
        %v3334 = vpop.f32.mrf.mxu0
        %v3335 = vadd.f32 0.0, %v3334
        %v3336 = vpop.f32.mrf.mxu0
        %v3337 = vadd.f32 0.0, %v3336
        %3338 = vmatmul.bf16.gmra.mxu0 %v3303
        %v3339 = vpop.f32.mrf.mxu0
        %v3340 = vadd.f32 0.0, %v3339
        %v3341 = vpop.f32.mrf.mxu0
        %v3342 = vadd.f32 0.0, %v3341
        %3343 = vdwg.mxu0
        %v3344 = vadd.f32 %v3230, %v3315
        %v3345 = vadd.f32 %v3231, %v3317
        %v3346 = vadd.f32 %v3232, %v3320
        %v3347 = vadd.f32 %v3233, %v3322
        %v3348 = vadd.f32 %v3234, %v3325
        %v3349 = vadd.f32 %v3235, %v3327
        %v3350 = vadd.f32 %v3236, %v3330
        %v3351 = vadd.f32 %v3237, %v3332
        %v3352 = vadd.f32 %v3238, %v3335
        %v3353 = vadd.f32 %v3239, %v3337
        %v3354 = vadd.f32 %v3240, %v3340
        %v3355 = vadd.f32 %v3241, %v3342
        %v3356 = vld [vmem:[%s3 + $0x240] sm:$0xf]
        %v3357 = vld [vmem:[%s3 + $0x244] sm:$0xf]
        %v3358 = vld [vmem:[%s3 + $0x248] sm:$0xf]
        %v3359 = vld [vmem:[%s3 + $0x24c] sm:$0xf]
        %v3360 = vld [vmem:[%s3 + $0x250] sm:$0xf]
        %v3361 = vld [vmem:[%s3 + $0x254] sm:$0xf]
        %v3362 = vld [vmem:[%s3 + $0x258] sm:$0xf]
        %v3363 = vld [vmem:[%s3 + $0x25c] sm:$0xf]
        %v3364 = vrot.slane %v1264, 3
        %v3365 = vrot.slane %v1260, 4
        %v3366 = vor.u32 %v3364, %v3365
        %v3367 = vrot.slane %v1272, 3
        %v3368 = vrot.slane %v1268, 4
        %v3369 = vor.u32 %v3367, %v3368
        %v3370 = vsel %vm2224, %v3366, %v3369
        %v3371 = vrot.slane %v1280, 3
        %v3372 = vrot.slane %v1276, 4
        %v3373 = vor.u32 %v3371, %v3372
        %v3374 = vsel %vm2224, %v3369, %v3373
        %v3375 = vrot.slane %v1288, 3
        %v3376 = vrot.slane %v1284, 4
        %v3377 = vor.u32 %v3375, %v3376
        %v3378 = vsel %vm2224, %v3373, %v3377
        %v3379 = vrot.slane %v3123, 3
        %v3380 = vrot.slane %v3126, 4
        %v3381 = vor.u32 %v3379, %v3380
        %v3382 = vsel %vm2224, %v3377, %v3381
        %v3383 = vrot.slane %v3132, 3
        %v3384 = vrot.slane %v3135, 4
        %v3385 = vor.u32 %v3383, %v3384
        %v3386 = vsel %vm2224, %v3381, %v3385
        %v3387 = vrot.slane %v3141, 3
        %v3388 = vrot.slane %v3144, 4
        %v3389 = vor.u32 %v3387, %v3388
        %v3390 = vsel %vm2224, %v3385, %v3389
        %v3399 = vunpack.c.l.b16 %v3356
        %v3400 = vunpack.c.l.b16 %v3357
        %v3401 = vunpack.c.l.b16 %v3358
        %v3402 = vunpack.c.l.b16 %v3359
        %v3403 = vunpack.c.l.b16 %v3360
        %v3404 = vunpack.c.l.b16 %v3361
        %v3405 = vunpack.c.l.b16 %v3362
        %v3406 = vunpack.c.l.b16 %v3363
        %v3407 = vpack.c.b16 %v3400, %v3399
        %v3408 = vpack.c.b16 %v3402, %v3401
        %v3409 = vpack.c.b16 %v3404, %v3403
        %v3410 = vpack.c.b16 %v3406, %v3405
        %v3416 = vsel %vm1320, %v3370, 0
        %v3419 = vsel %vm1320, %v3374, 0
        %v3422 = vsel %vm1320, %v3378, 0
        %v3425 = vsel %vm1320, %v3382, 0
        %v3428 = vsel %vm1320, %v3386, 0
        %v3431 = vsel %vm1320, %v3390, 0
        %3433 = vmatpush.bf16.msra.mxu0 0
        %3434 = vmatpush.bf16.msra.mxu0 0
        %3435 = vmatpush.bf16.msra.mxu0 0
        %3436 = vmatpush.bf16.msra.mxu0 0
        %3437 = vmatpush.bf16.msra.mxu0 %v3410
        %3438 = vmatpush.bf16.msra.mxu0 %v3409
        %3439 = vmatpush.bf16.msra.mxu0 %v3408
        %3440 = vmatpush.bf16.msra.mxu0 %v3407
        %3441 = vmatmul.bf16.gmra.mxu0 %v3416
        %v3442 = vpop.f32.mrf.mxu0
        %v3443 = vadd.f32 0.0, %v3442
        %v3444 = vpop.f32.mrf.mxu0
        %v3445 = vadd.f32 0.0, %v3444
        %3446 = vmatmul.bf16.gmra.mxu0 %v3419
        %v3447 = vpop.f32.mrf.mxu0
        %v3448 = vadd.f32 0.0, %v3447
        %v3449 = vpop.f32.mrf.mxu0
        %v3450 = vadd.f32 0.0, %v3449
        %3451 = vmatmul.bf16.gmra.mxu0 %v3422
        %v3452 = vpop.f32.mrf.mxu0
        %v3453 = vadd.f32 0.0, %v3452
        %v3454 = vpop.f32.mrf.mxu0
        %v3455 = vadd.f32 0.0, %v3454
        %3456 = vmatmul.bf16.gmra.mxu0 %v3425
        %v3457 = vpop.f32.mrf.mxu0
        %v3458 = vadd.f32 0.0, %v3457
        %v3459 = vpop.f32.mrf.mxu0
        %v3460 = vadd.f32 0.0, %v3459
        %3461 = vmatmul.bf16.gmra.mxu0 %v3428
        %v3462 = vpop.f32.mrf.mxu0
        %v3463 = vadd.f32 0.0, %v3462
        %v3464 = vpop.f32.mrf.mxu0
        %v3465 = vadd.f32 0.0, %v3464
        %3466 = vmatmul.bf16.gmra.mxu0 %v3431
        %v3467 = vpop.f32.mrf.mxu0
        %v3468 = vadd.f32 0.0, %v3467
        %v3469 = vpop.f32.mrf.mxu0
        %v3470 = vadd.f32 0.0, %v3469
        %3471 = vdwg.mxu0
        %v3472 = vadd.f32 %v3344, %v3443
        %v3473 = vadd.f32 %v3345, %v3445
        %v3474 = vadd.f32 %v3346, %v3448
        %v3475 = vadd.f32 %v3347, %v3450
        %v3476 = vadd.f32 %v3348, %v3453
        %v3477 = vadd.f32 %v3349, %v3455
        %v3478 = vadd.f32 %v3350, %v3458
        %v3479 = vadd.f32 %v3351, %v3460
        %v3480 = vadd.f32 %v3352, %v3463
        %v3481 = vadd.f32 %v3353, %v3465
        %v3482 = vadd.f32 %v3354, %v3468
        %v3483 = vadd.f32 %v3355, %v3470
        %v3484 = vld [vmem:[%s3 + $0x260] sm:$0xf]
        %v3485 = vld [vmem:[%s3 + $0x264] sm:$0xf]
        %v3486 = vld [vmem:[%s3 + $0x268] sm:$0xf]
        %v3487 = vld [vmem:[%s3 + $0x26c] sm:$0xf]
        %v3488 = vld [vmem:[%s3 + $0x270] sm:$0xf]
        %v3489 = vld [vmem:[%s3 + $0x274] sm:$0xf]
        %v3490 = vld [vmem:[%s3 + $0x278] sm:$0xf]
        %v3491 = vld [vmem:[%s3 + $0x27c] sm:$0xf]
        %v3492 = vpack.c.b16 %v3007, %v2540
        %v3501 = vunpack.c.l.b16 %v3484
        %v3502 = vunpack.c.l.b16 %v3485
        %v3503 = vunpack.c.l.b16 %v3486
        %v3504 = vunpack.c.l.b16 %v3487
        %v3505 = vunpack.c.l.b16 %v3488
        %v3506 = vunpack.c.l.b16 %v3489
        %v3507 = vunpack.c.l.b16 %v3490
        %v3508 = vunpack.c.l.b16 %v3491
        %v3509 = vpack.c.b16 %v3502, %v3501
        %v3510 = vpack.c.b16 %v3504, %v3503
        %v3511 = vpack.c.b16 %v3506, %v3505
        %v3512 = vpack.c.b16 %v3508, %v3507
        %v3518 = vsel %vm1320, %v3492, 0
        %3520 = vmatpush.bf16.msra.mxu0 0
        %3521 = vmatpush.bf16.msra.mxu0 0
        %3522 = vmatpush.bf16.msra.mxu0 0
        %3523 = vmatpush.bf16.msra.mxu0 0
        %3524 = vmatpush.bf16.msra.mxu0 %v3512
        %3525 = vmatpush.bf16.msra.mxu0 %v3511
        %3526 = vmatpush.bf16.msra.mxu0 %v3510
        %3527 = vmatpush.bf16.msra.mxu0 %v3509
        %3528 = vmatmul.bf16.gmra.mxu0 %v2469
        %v3529 = vpop.f32.mrf.mxu0
        %v3530 = vadd.f32 0.0, %v3529
        %v3531 = vpop.f32.mrf.mxu0
        %v3532 = vadd.f32 0.0, %v3531
        %3533 = vmatmul.bf16.gmra.mxu0 %v2471
        %v3534 = vpop.f32.mrf.mxu0
        %v3535 = vadd.f32 0.0, %v3534
        %v3536 = vpop.f32.mrf.mxu0
        %v3537 = vadd.f32 0.0, %v3536
        %3538 = vmatmul.bf16.gmra.mxu0 %v2473
        %v3539 = vpop.f32.mrf.mxu0
        %v3540 = vadd.f32 0.0, %v3539
        %v3541 = vpop.f32.mrf.mxu0
        %v3542 = vadd.f32 0.0, %v3541
        %3543 = vmatmul.bf16.gmra.mxu0 %v2475
        %v3544 = vpop.f32.mrf.mxu0
        %v3545 = vadd.f32 0.0, %v3544
        %v3546 = vpop.f32.mrf.mxu0
        %v3547 = vadd.f32 0.0, %v3546
        %3548 = vmatmul.bf16.gmra.mxu0 %v2478
        %v3549 = vpop.f32.mrf.mxu0
        %v3550 = vadd.f32 0.0, %v3549
        %v3551 = vpop.f32.mrf.mxu0
        %v3552 = vadd.f32 0.0, %v3551
        %3553 = vmatmul.bf16.gmra.mxu0 %v3518
        %v3554 = vpop.f32.mrf.mxu0
        %v3555 = vadd.f32 0.0, %v3554
        %v3556 = vpop.f32.mrf.mxu0
        %v3557 = vadd.f32 0.0, %v3556
        %3558 = vdwg.mxu0
        %v3559 = vadd.f32 %v3472, %v3530
        %v3560 = vadd.f32 %v3473, %v3532
        %v3561 = vadd.f32 %v3474, %v3535
        %v3562 = vadd.f32 %v3475, %v3537
        %v3563 = vadd.f32 %v3476, %v3540
        %v3564 = vadd.f32 %v3477, %v3542
        %v3565 = vadd.f32 %v3478, %v3545
        %v3566 = vadd.f32 %v3479, %v3547
        %v3567 = vadd.f32 %v3480, %v3550
        %v3568 = vadd.f32 %v3481, %v3552
        %v3569 = vadd.f32 %v3482, %v3555
        %v3570 = vadd.f32 %v3483, %v3557
        %v3571 = vld [vmem:[%s3 + $0x280] sm:$0xf]
        %v3572 = vld [vmem:[%s3 + $0x284] sm:$0xf]
        %v3573 = vld [vmem:[%s3 + $0x288] sm:$0xf]
        %v3574 = vld [vmem:[%s3 + $0x28c] sm:$0xf]
        %v3575 = vld [vmem:[%s3 + $0x290] sm:$0xf]
        %v3576 = vld [vmem:[%s3 + $0x294] sm:$0xf]
        %v3577 = vld [vmem:[%s3 + $0x298] sm:$0xf]
        %v3578 = vld [vmem:[%s3 + $0x29c] sm:$0xf]
        %v3580 = vunpack.c.l.b16 %v1192
        %v3581 = vpack.c.b16 %v3580, %v3007
        %v3590 = vunpack.c.l.b16 %v3571
        %v3591 = vunpack.c.l.b16 %v3572
        %v3592 = vunpack.c.l.b16 %v3573
        %v3593 = vunpack.c.l.b16 %v3574
        %v3594 = vunpack.c.l.b16 %v3575
        %v3595 = vunpack.c.l.b16 %v3576
        %v3596 = vunpack.c.l.b16 %v3577
        %v3597 = vunpack.c.l.b16 %v3578
        %v3598 = vpack.c.b16 %v3591, %v3590
        %v3599 = vpack.c.b16 %v3593, %v3592
        %v3600 = vpack.c.b16 %v3595, %v3594
        %v3601 = vpack.c.b16 %v3597, %v3596
        %v3606 = vsel %vm1320, %v3008, 0
        %v3609 = vsel %vm1320, %v3581, 0
        %3611 = vmatpush.bf16.msra.mxu0 0
        %3612 = vmatpush.bf16.msra.mxu0 0
        %3613 = vmatpush.bf16.msra.mxu0 0
        %3614 = vmatpush.bf16.msra.mxu0 0
        %3615 = vmatpush.bf16.msra.mxu0 %v3601
        %3616 = vmatpush.bf16.msra.mxu0 %v3600
        %3617 = vmatpush.bf16.msra.mxu0 %v3599
        %3618 = vmatpush.bf16.msra.mxu0 %v3598
        %3619 = vmatmul.bf16.gmra.mxu0 %v1408
        %v3620 = vpop.f32.mrf.mxu0
        %v3621 = vadd.f32 0.0, %v3620
        %v3622 = vpop.f32.mrf.mxu0
        %v3623 = vadd.f32 0.0, %v3622
        %3624 = vmatmul.bf16.gmra.mxu0 %v1410
        %v3625 = vpop.f32.mrf.mxu0
        %v3626 = vadd.f32 0.0, %v3625
        %v3627 = vpop.f32.mrf.mxu0
        %v3628 = vadd.f32 0.0, %v3627
        %3629 = vmatmul.bf16.gmra.mxu0 %v1412
        %v3630 = vpop.f32.mrf.mxu0
        %v3631 = vadd.f32 0.0, %v3630
        %v3632 = vpop.f32.mrf.mxu0
        %v3633 = vadd.f32 0.0, %v3632
        %3634 = vmatmul.bf16.gmra.mxu0 %v2379
        %v3635 = vpop.f32.mrf.mxu0
        %v3636 = vadd.f32 0.0, %v3635
        %v3637 = vpop.f32.mrf.mxu0
        %v3638 = vadd.f32 0.0, %v3637
        %3639 = vmatmul.bf16.gmra.mxu0 %v3606
        %v3640 = vpop.f32.mrf.mxu0
        %v3641 = vadd.f32 0.0, %v3640
        %v3642 = vpop.f32.mrf.mxu0
        %v3643 = vadd.f32 0.0, %v3642
        %3644 = vmatmul.bf16.gmra.mxu0 %v3609
        %v3645 = vpop.f32.mrf.mxu0
        %v3646 = vadd.f32 0.0, %v3645
        %v3647 = vpop.f32.mrf.mxu0
        %v3648 = vadd.f32 0.0, %v3647
        %3649 = vdwg.mxu0
        %v3650 = vadd.f32 %v3559, %v3621
        %v3651 = vadd.f32 %v3560, %v3623
        %v3652 = vadd.f32 %v3561, %v3626
        %v3653 = vadd.f32 %v3562, %v3628
        %v3654 = vadd.f32 %v3563, %v3631
        %v3655 = vadd.f32 %v3564, %v3633
        %v3656 = vadd.f32 %v3565, %v3636
        %v3657 = vadd.f32 %v3566, %v3638
        %v3658 = vadd.f32 %v3567, %v3641
        %v3659 = vadd.f32 %v3568, %v3643
        %v3660 = vadd.f32 %v3569, %v3646
        %v3661 = vadd.f32 %v3570, %v3648
        %v3662 = vld [vmem:[%s3 + $0x2a0] sm:$0xf]
        %v3663 = vld [vmem:[%s3 + $0x2a4] sm:$0xf]
        %v3664 = vld [vmem:[%s3 + $0x2a8] sm:$0xf]
        %v3665 = vld [vmem:[%s3 + $0x2ac] sm:$0xf]
        %v3666 = vld [vmem:[%s3 + $0x2b0] sm:$0xf]
        %v3667 = vld [vmem:[%s3 + $0x2b4] sm:$0xf]
        %v3668 = vld [vmem:[%s3 + $0x2b8] sm:$0xf]
        %v3669 = vld [vmem:[%s3 + $0x2bc] sm:$0xf]
        %v3671 = vunpack.c.l.b16 %v1193
        %v3672 = vpack.c.b16 %v3671, %v3671
        %v3673 = vrot.slane %v3126, 1
        %v3674 = vsel %vm1243, %v1290, %v3673
        %v3675 = vor.u32 %v3123, %v3673
        %v3676 = vrot.slane %v3135, 1
        %v3677 = vsel %vm1243, %v3675, %v3676
        %v3678 = vor.u32 %v3132, %v3676
        %v3679 = vshll.u32 %v3581, 16
        %v3681 = vrot.slane %v3679, 1
        %v3682 = vsel %vm1243, %v3678, %v3681
        %v3683 = vshrl.u32 %v3581, 16
        %v3685 = vor.u32 %v3683, %v3681
        %v3687 = vshll.u32 %v3672, 16
        %v3689 = vrot.slane %v3687, 1
        %v3690 = vsel %vm1243, %v3685, %v3689
        %v3699 = vunpack.c.l.b16 %v3662
        %v3700 = vunpack.c.l.b16 %v3663
        %v3701 = vunpack.c.l.b16 %v3664
        %v3702 = vunpack.c.l.b16 %v3665
        %v3703 = vunpack.c.l.b16 %v3666
        %v3704 = vunpack.c.l.b16 %v3667
        %v3705 = vunpack.c.l.b16 %v3668
        %v3706 = vunpack.c.l.b16 %v3669
        %v3707 = vpack.c.b16 %v3700, %v3699
        %v3708 = vpack.c.b16 %v3702, %v3701
        %v3709 = vpack.c.b16 %v3704, %v3703
        %v3710 = vpack.c.b16 %v3706, %v3705
        %v3716 = vsel %vm1320, %v3674, 0
        %v3719 = vsel %vm1320, %v3677, 0
        %v3722 = vsel %vm1320, %v3682, 0
        %v3725 = vsel %vm1320, %v3690, 0
        %3727 = vmatpush.bf16.msra.mxu0 0
        %3728 = vmatpush.bf16.msra.mxu0 0
        %3729 = vmatpush.bf16.msra.mxu0 0
        %3730 = vmatpush.bf16.msra.mxu0 0
        %3731 = vmatpush.bf16.msra.mxu0 %v3710
        %3732 = vmatpush.bf16.msra.mxu0 %v3709
        %3733 = vmatpush.bf16.msra.mxu0 %v3708
        %3734 = vmatpush.bf16.msra.mxu0 %v3707
        %3735 = vmatmul.bf16.gmra.mxu0 %v1331
        %v3736 = vpop.f32.mrf.mxu0
        %v3737 = vadd.f32 0.0, %v3736
        %v3738 = vpop.f32.mrf.mxu0
        %v3739 = vadd.f32 0.0, %v3738
        %3740 = vmatmul.bf16.gmra.mxu0 %v1334
        %v3741 = vpop.f32.mrf.mxu0
        %v3742 = vadd.f32 0.0, %v3741
        %v3743 = vpop.f32.mrf.mxu0
        %v3744 = vadd.f32 0.0, %v3743
        %3745 = vmatmul.bf16.gmra.mxu0 %v3716
        %v3746 = vpop.f32.mrf.mxu0
        %v3747 = vadd.f32 0.0, %v3746
        %v3748 = vpop.f32.mrf.mxu0
        %v3749 = vadd.f32 0.0, %v3748
        %3750 = vmatmul.bf16.gmra.mxu0 %v3719
        %v3751 = vpop.f32.mrf.mxu0
        %v3752 = vadd.f32 0.0, %v3751
        %v3753 = vpop.f32.mrf.mxu0
        %v3754 = vadd.f32 0.0, %v3753
        %3755 = vmatmul.bf16.gmra.mxu0 %v3722
        %v3756 = vpop.f32.mrf.mxu0
        %v3757 = vadd.f32 0.0, %v3756
        %v3758 = vpop.f32.mrf.mxu0
        %v3759 = vadd.f32 0.0, %v3758
        %3760 = vmatmul.bf16.gmra.mxu0 %v3725
        %v3761 = vpop.f32.mrf.mxu0
        %v3762 = vadd.f32 0.0, %v3761
        %v3763 = vpop.f32.mrf.mxu0
        %v3764 = vadd.f32 0.0, %v3763
        %3765 = vdwg.mxu0
        %v3766 = vadd.f32 %v3650, %v3737
        %v3767 = vadd.f32 %v3651, %v3739
        %v3768 = vadd.f32 %v3652, %v3742
        %v3769 = vadd.f32 %v3653, %v3744
        %v3770 = vadd.f32 %v3654, %v3747
        %v3771 = vadd.f32 %v3655, %v3749
        %v3772 = vadd.f32 %v3656, %v3752
        %v3773 = vadd.f32 %v3657, %v3754
        %v3774 = vadd.f32 %v3658, %v3757
        %v3775 = vadd.f32 %v3659, %v3759
        %v3776 = vadd.f32 %v3660, %v3762
        %v3777 = vadd.f32 %v3661, %v3764
        %v3778 = vld [vmem:[%s3 + $0x2c0] sm:$0xf]
        %v3779 = vld [vmem:[%s3 + $0x2c4] sm:$0xf]
        %v3780 = vld [vmem:[%s3 + $0x2c8] sm:$0xf]
        %v3781 = vld [vmem:[%s3 + $0x2cc] sm:$0xf]
        %v3782 = vld [vmem:[%s3 + $0x2d0] sm:$0xf]
        %v3783 = vld [vmem:[%s3 + $0x2d4] sm:$0xf]
        %v3784 = vld [vmem:[%s3 + $0x2d8] sm:$0xf]
        %v3785 = vld [vmem:[%s3 + $0x2dc] sm:$0xf]
        %v3786 = vrot.slane %v2353, 1
        %v3787 = vsel %vm1461, %v1471, %v3786
        %v3788 = vrot.slane %v3008, 1
        %v3789 = vsel %vm1461, %v3786, %v3788
        %v3790 = vrot.slane %v3581, 1
        %v3791 = vsel %vm1461, %v3788, %v3790
        %v3792 = vrot.slane %v3672, 1
        %v3793 = vsel %vm1461, %v3790, %v3792
        %v3802 = vunpack.c.l.b16 %v3778
        %v3803 = vunpack.c.l.b16 %v3779
        %v3804 = vunpack.c.l.b16 %v3780
        %v3805 = vunpack.c.l.b16 %v3781
        %v3806 = vunpack.c.l.b16 %v3782
        %v3807 = vunpack.c.l.b16 %v3783
        %v3808 = vunpack.c.l.b16 %v3784
        %v3809 = vunpack.c.l.b16 %v3785
        %v3810 = vpack.c.b16 %v3803, %v3802
        %v3811 = vpack.c.b16 %v3805, %v3804
        %v3812 = vpack.c.b16 %v3807, %v3806
        %v3813 = vpack.c.b16 %v3809, %v3808
        %v3819 = vsel %vm1320, %v3787, 0
        %v3822 = vsel %vm1320, %v3789, 0
        %v3825 = vsel %vm1320, %v3791, 0
        %v3828 = vsel %vm1320, %v3793, 0
        %3830 = vmatpush.bf16.msra.mxu0 0
        %3831 = vmatpush.bf16.msra.mxu0 0
        %3832 = vmatpush.bf16.msra.mxu0 0
        %3833 = vmatpush.bf16.msra.mxu0 0
        %3834 = vmatpush.bf16.msra.mxu0 %v3813
        %3835 = vmatpush.bf16.msra.mxu0 %v3812
        %3836 = vmatpush.bf16.msra.mxu0 %v3811
        %3837 = vmatpush.bf16.msra.mxu0 %v3810
        %3838 = vmatmul.bf16.gmra.mxu0 %v1509
        %v3839 = vpop.f32.mrf.mxu0
        %v3840 = vadd.f32 0.0, %v3839
        %v3841 = vpop.f32.mrf.mxu0
        %v3842 = vadd.f32 0.0, %v3841
        %3843 = vmatmul.bf16.gmra.mxu0 %v1512
        %v3844 = vpop.f32.mrf.mxu0
        %v3845 = vadd.f32 0.0, %v3844
        %v3846 = vpop.f32.mrf.mxu0
        %v3847 = vadd.f32 0.0, %v3846
        %3848 = vmatmul.bf16.gmra.mxu0 %v3819
        %v3849 = vpop.f32.mrf.mxu0
        %v3850 = vadd.f32 0.0, %v3849
        %v3851 = vpop.f32.mrf.mxu0
        %v3852 = vadd.f32 0.0, %v3851
        %3853 = vmatmul.bf16.gmra.mxu0 %v3822
        %v3854 = vpop.f32.mrf.mxu0
        %v3855 = vadd.f32 0.0, %v3854
        %v3856 = vpop.f32.mrf.mxu0
        %v3857 = vadd.f32 0.0, %v3856
        %3858 = vmatmul.bf16.gmra.mxu0 %v3825
        %v3859 = vpop.f32.mrf.mxu0
        %v3860 = vadd.f32 0.0, %v3859
        %v3861 = vpop.f32.mrf.mxu0
        %v3862 = vadd.f32 0.0, %v3861
        %3863 = vmatmul.bf16.gmra.mxu0 %v3828
        %v3864 = vpop.f32.mrf.mxu0
        %v3865 = vadd.f32 0.0, %v3864
        %v3866 = vpop.f32.mrf.mxu0
        %v3867 = vadd.f32 0.0, %v3866
        %3868 = vdwg.mxu0
        %v3869 = vadd.f32 %v3766, %v3840
        %v3870 = vadd.f32 %v3767, %v3842
        %v3871 = vadd.f32 %v3768, %v3845
        %v3872 = vadd.f32 %v3769, %v3847
        %v3873 = vadd.f32 %v3770, %v3850
        %v3874 = vadd.f32 %v3771, %v3852
        %v3875 = vadd.f32 %v3772, %v3855
        %v3876 = vadd.f32 %v3773, %v3857
        %v3877 = vadd.f32 %v3774, %v3860
        %v3878 = vadd.f32 %v3775, %v3862
        %v3879 = vadd.f32 %v3776, %v3865
        %v3880 = vadd.f32 %v3777, %v3867
        %v3881 = vld [vmem:[%s3 + $0x2e0] sm:$0xf]
        %v3882 = vld [vmem:[%s3 + $0x2e4] sm:$0xf]
        %v3883 = vld [vmem:[%s3 + $0x2e8] sm:$0xf]
        %v3884 = vld [vmem:[%s3 + $0x2ec] sm:$0xf]
        %v3885 = vld [vmem:[%s3 + $0x2f0] sm:$0xf]
        %v3886 = vld [vmem:[%s3 + $0x2f4] sm:$0xf]
        %v3887 = vld [vmem:[%s3 + $0x2f8] sm:$0xf]
        %v3888 = vld [vmem:[%s3 + $0x2fc] sm:$0xf]
        %v3889 = vrot.slane %v3123, 1
        %v3890 = vrot.slane %v3126, 2
        %v3891 = vor.u32 %v3889, %v3890
        %v3892 = vsel %vm1576, %v1598, %v3891
        %v3893 = vrot.slane %v3132, 1
        %v3894 = vrot.slane %v3135, 2
        %v3895 = vor.u32 %v3893, %v3894
        %v3896 = vsel %vm1576, %v3891, %v3895
        %v3897 = vrot.slane %v3683, 1
        %v3898 = vrot.slane %v3679, 2
        %v3899 = vor.u32 %v3897, %v3898
        %v3900 = vsel %vm1576, %v3895, %v3899
        %v3901 = vshrl.u32 %v3672, 16
        %v3903 = vrot.slane %v3901, 1
        %v3904 = vrot.slane %v3687, 2
        %v3905 = vor.u32 %v3903, %v3904
        %v3906 = vsel %vm1576, %v3899, %v3905
        %v3915 = vunpack.c.l.b16 %v3881
        %v3916 = vunpack.c.l.b16 %v3882
        %v3917 = vunpack.c.l.b16 %v3883
        %v3918 = vunpack.c.l.b16 %v3884
        %v3919 = vunpack.c.l.b16 %v3885
        %v3920 = vunpack.c.l.b16 %v3886
        %v3921 = vunpack.c.l.b16 %v3887
        %v3922 = vunpack.c.l.b16 %v3888
        %v3923 = vpack.c.b16 %v3916, %v3915
        %v3924 = vpack.c.b16 %v3918, %v3917
        %v3925 = vpack.c.b16 %v3920, %v3919
        %v3926 = vpack.c.b16 %v3922, %v3921
        %v3932 = vsel %vm1320, %v3892, 0
        %v3935 = vsel %vm1320, %v3896, 0
        %v3938 = vsel %vm1320, %v3900, 0
        %v3941 = vsel %vm1320, %v3906, 0
        %3943 = vmatpush.bf16.msra.mxu0 0
        %3944 = vmatpush.bf16.msra.mxu0 0
        %3945 = vmatpush.bf16.msra.mxu0 0
        %3946 = vmatpush.bf16.msra.mxu0 0
        %3947 = vmatpush.bf16.msra.mxu0 %v3926
        %3948 = vmatpush.bf16.msra.mxu0 %v3925
        %3949 = vmatpush.bf16.msra.mxu0 %v3924
        %3950 = vmatpush.bf16.msra.mxu0 %v3923
        %3951 = vmatmul.bf16.gmra.mxu0 %v1640
        %v3952 = vpop.f32.mrf.mxu0
        %v3953 = vadd.f32 0.0, %v3952
        %v3954 = vpop.f32.mrf.mxu0
        %v3955 = vadd.f32 0.0, %v3954
        %3956 = vmatmul.bf16.gmra.mxu0 %v1643
        %v3957 = vpop.f32.mrf.mxu0
        %v3958 = vadd.f32 0.0, %v3957
        %v3959 = vpop.f32.mrf.mxu0
        %v3960 = vadd.f32 0.0, %v3959
        %3961 = vmatmul.bf16.gmra.mxu0 %v3932
        %v3962 = vpop.f32.mrf.mxu0
        %v3963 = vadd.f32 0.0, %v3962
        %v3964 = vpop.f32.mrf.mxu0
        %v3965 = vadd.f32 0.0, %v3964
        %3966 = vmatmul.bf16.gmra.mxu0 %v3935
        %v3967 = vpop.f32.mrf.mxu0
        %v3968 = vadd.f32 0.0, %v3967
        %v3969 = vpop.f32.mrf.mxu0
        %v3970 = vadd.f32 0.0, %v3969
        %3971 = vmatmul.bf16.gmra.mxu0 %v3938
        %v3972 = vpop.f32.mrf.mxu0
        %v3973 = vadd.f32 0.0, %v3972
        %v3974 = vpop.f32.mrf.mxu0
        %v3975 = vadd.f32 0.0, %v3974
        %3976 = vmatmul.bf16.gmra.mxu0 %v3941
        %v3977 = vpop.f32.mrf.mxu0
        %v3978 = vadd.f32 0.0, %v3977
        %v3979 = vpop.f32.mrf.mxu0
        %v3980 = vadd.f32 0.0, %v3979
        %3981 = vdwg.mxu0
        %v3982 = vadd.f32 %v3869, %v3953
        %v3983 = vadd.f32 %v3870, %v3955
        %v3984 = vadd.f32 %v3871, %v3958
        %v3985 = vadd.f32 %v3872, %v3960
        %v3986 = vadd.f32 %v3873, %v3963
        %v3987 = vadd.f32 %v3874, %v3965
        %v3988 = vadd.f32 %v3875, %v3968
        %v3989 = vadd.f32 %v3876, %v3970
        %v3990 = vadd.f32 %v3877, %v3973
        %v3991 = vadd.f32 %v3878, %v3975
        %v3992 = vadd.f32 %v3879, %v3978
        %v3993 = vadd.f32 %v3880, %v3980
        %v3994 = vld [vmem:[%s3 + $0x300] sm:$0xf]
        %v3995 = vld [vmem:[%s3 + $0x304] sm:$0xf]
        %v3996 = vld [vmem:[%s3 + $0x308] sm:$0xf]
        %v3997 = vld [vmem:[%s3 + $0x30c] sm:$0xf]
        %v3998 = vld [vmem:[%s3 + $0x310] sm:$0xf]
        %v3999 = vld [vmem:[%s3 + $0x314] sm:$0xf]
        %v4000 = vld [vmem:[%s3 + $0x318] sm:$0xf]
        %v4001 = vld [vmem:[%s3 + $0x31c] sm:$0xf]
        %v4002 = vrot.slane %v3581, 2
        %v4003 = vsel %vm1707, %v3012, %v4002
        %v4004 = vrot.slane %v3672, 2
        %v4005 = vsel %vm1707, %v4002, %v4004
        %v4014 = vunpack.c.l.b16 %v3994
        %v4015 = vunpack.c.l.b16 %v3995
        %v4016 = vunpack.c.l.b16 %v3996
        %v4017 = vunpack.c.l.b16 %v3997
        %v4018 = vunpack.c.l.b16 %v3998
        %v4019 = vunpack.c.l.b16 %v3999
        %v4020 = vunpack.c.l.b16 %v4000
        %v4021 = vunpack.c.l.b16 %v4001
        %v4022 = vpack.c.b16 %v4015, %v4014
        %v4023 = vpack.c.b16 %v4017, %v4016
        %v4024 = vpack.c.b16 %v4019, %v4018
        %v4025 = vpack.c.b16 %v4021, %v4020
        %v4031 = vsel %vm1320, %v4003, 0
        %v4034 = vsel %vm1320, %v4005, 0
        %4036 = vmatpush.bf16.msra.mxu0 0
        %4037 = vmatpush.bf16.msra.mxu0 0
        %4038 = vmatpush.bf16.msra.mxu0 0
        %4039 = vmatpush.bf16.msra.mxu0 0
        %4040 = vmatpush.bf16.msra.mxu0 %v4025
        %4041 = vmatpush.bf16.msra.mxu0 %v4024
        %4042 = vmatpush.bf16.msra.mxu0 %v4023
        %4043 = vmatpush.bf16.msra.mxu0 %v4022
        %4044 = vmatmul.bf16.gmra.mxu0 %v1755
        %v4045 = vpop.f32.mrf.mxu0
        %v4046 = vadd.f32 0.0, %v4045
        %v4047 = vpop.f32.mrf.mxu0
        %v4048 = vadd.f32 0.0, %v4047
        %4049 = vmatmul.bf16.gmra.mxu0 %v1758
        %v4050 = vpop.f32.mrf.mxu0
        %v4051 = vadd.f32 0.0, %v4050
        %v4052 = vpop.f32.mrf.mxu0
        %v4053 = vadd.f32 0.0, %v4052
        %4054 = vmatmul.bf16.gmra.mxu0 %v3041
        %v4055 = vpop.f32.mrf.mxu0
        %v4056 = vadd.f32 0.0, %v4055
        %v4057 = vpop.f32.mrf.mxu0
        %v4058 = vadd.f32 0.0, %v4057
        %4059 = vmatmul.bf16.gmra.mxu0 %v3044
        %v4060 = vpop.f32.mrf.mxu0
        %v4061 = vadd.f32 0.0, %v4060
        %v4062 = vpop.f32.mrf.mxu0
        %v4063 = vadd.f32 0.0, %v4062
        %4064 = vmatmul.bf16.gmra.mxu0 %v4031
        %v4065 = vpop.f32.mrf.mxu0
        %v4066 = vadd.f32 0.0, %v4065
        %v4067 = vpop.f32.mrf.mxu0
        %v4068 = vadd.f32 0.0, %v4067
        %4069 = vmatmul.bf16.gmra.mxu0 %v4034
        %v4070 = vpop.f32.mrf.mxu0
        %v4071 = vadd.f32 0.0, %v4070
        %v4072 = vpop.f32.mrf.mxu0
        %v4073 = vadd.f32 0.0, %v4072
        %4074 = vdwg.mxu0
        %v4075 = vadd.f32 %v3982, %v4046
        %v4076 = vadd.f32 %v3983, %v4048
        %v4077 = vadd.f32 %v3984, %v4051
        %v4078 = vadd.f32 %v3985, %v4053
        %v4079 = vadd.f32 %v3986, %v4056
        %v4080 = vadd.f32 %v3987, %v4058
        %v4081 = vadd.f32 %v3988, %v4061
        %v4082 = vadd.f32 %v3989, %v4063
        %v4083 = vadd.f32 %v3990, %v4066
        %v4084 = vadd.f32 %v3991, %v4068
        %v4085 = vadd.f32 %v3992, %v4071
        %v4086 = vadd.f32 %v3993, %v4073
        %vm4099 = vcmask 1046528
        %v4100 = vrot.slane %v4075, 1
        %v4101 = vrot.slane %v4076, 1
        %v4102 = vsel %vm4099, %v4100, %v4101
        %v4103 = vrot.slane %v4077, 1
        %v4104 = vsel %vm4099, %v4101, %v4103
        %v4105 = vrot.slane %v4078, 1
        %v4106 = vsel %vm4099, %v4103, %v4105
        %v4107 = vrot.slane %v4079, 1
        %v4108 = vsel %vm4099, %v4105, %v4107
        %v4109 = vrot.slane %v4080, 1
        %v4110 = vsel %vm4099, %v4107, %v4109
        %v4111 = vrot.slane %v4081, 1
        %v4112 = vsel %vm4099, %v4109, %v4111
        %v4113 = vrot.slane %v4082, 1
        %v4114 = vsel %vm4099, %v4111, %v4113
        %v4115 = vrot.slane %v4083, 1
        %v4116 = vsel %vm4099, %v4113, %v4115
        %v4117 = vrot.slane %v4084, 1
        %v4118 = vsel %vm4099, %v4115, %v4117
        %v4119 = vrot.slane %v4085, 1
        %v4120 = vsel %vm4099, %v4117, %v4119
        %v4121 = vrot.slane %v4086, 1
        %v4122 = vsel %vm4099, %v4119, %v4121
        %v4135 = vmax.f32 %v4075, %v4102
        %v4136 = vmax.f32 %v4076, %v4104
        %v4137 = vmax.f32 %v4077, %v4106
        %v4138 = vmax.f32 %v4078, %v4108
        %v4139 = vmax.f32 %v4079, %v4110
        %v4140 = vmax.f32 %v4080, %v4112
        %v4141 = vmax.f32 %v4081, %v4114
        %v4142 = vmax.f32 %v4082, %v4116
        %v4143 = vmax.f32 %v4083, %v4118
        %v4144 = vmax.f32 %v4084, %v4120
        %v4145 = vmax.f32 %v4085, %v4122
        %v4146 = vmax.f32 %v4086, %v4121
        %vm4155 = vcmask 1043456
        %v4156 = vrot.slane %v4136, 4
        %v4157 = vrot.slane %v4137, 4
        %v4158 = vsel %vm4155, %v4156, %v4157
        %v4159 = vrot.slane %v4139, 4
        %v4160 = vrot.slane %v4140, 4
        %v4161 = vsel %vm4155, %v4159, %v4160
        %v4162 = vrot.slane %v4142, 4
        %v4163 = vrot.slane %v4143, 4
        %v4164 = vsel %vm4155, %v4162, %v4163
        %v4165 = vrot.slane %v4145, 4
        %v4166 = vrot.slane %v4146, 4
        %v4167 = vsel %vm4155, %v4165, %v4166
        %v4172 = vmax.f32 %v4135, %v4158
        %v4173 = vmax.f32 %v4138, %v4161
        %v4174 = vmax.f32 %v4141, %v4164
        %v4175 = vmax.f32 %v4144, %v4167
        %v4176 = vld [vmem:[%s4] sm:$0x1]
        %v4178 = vperm.slane %v4176, 0
        %v4180 = vadd.f32 %v4172, %v4178
        %v4181 = vadd.f32 %v4173, %v4178
        %v4182 = vadd.f32 %v4174, %v4178
        %v4183 = vadd.f32 %v4175, %v4178
        %v4184 = vmax.f32 %v4180, 0.0
        %v4185 = vmax.f32 %v4181, 0.0
        %v4186 = vmax.f32 %v4182, 0.0
        %v4187 = vmax.f32 %v4183, 0.0
        %v4188 = vpack.c.bf16 %v4184, %v4184
        %v4189 = vpack.c.bf16 %v4185, %v4185
        %v4190 = vpack.c.bf16 %v4186, %v4186
        %v4191 = vpack.c.bf16 %v4187, %v4187
        %v4192 = vld [vmem:[%s6] sm:$0x3]
        %v4193 = vld [vmem:[%s5] sm:$0xff]
        %v4194 = vld [vmem:[%s5 + $0x8] sm:$0xff]
        %v4195 = vld [vmem:[%s5 + $0x10] sm:$0xff]
        %v4196 = vld [vmem:[%s5 + $0x18] sm:$0xff]
        %v4197 = vld [vmem:[%s5 + $0x20] sm:$0xff]
        %v4198 = vld [vmem:[%s5 + $0x28] sm:$0xff]
        %v4199 = vld [vmem:[%s5 + $0x30] sm:$0xff]
        %v4200 = vld [vmem:[%s5 + $0x38] sm:$0xff]
        %v4209 = vunpack.c.l.b16 %v4193
        %v4210 = vunpack.c.h.b16 %v4193
        %v4211 = vunpack.c.l.b16 %v4194
        %v4212 = vunpack.c.h.b16 %v4194
        %v4213 = vunpack.c.l.b16 %v4195
        %v4214 = vunpack.c.h.b16 %v4195
        %v4215 = vunpack.c.l.b16 %v4196
        %v4216 = vunpack.c.h.b16 %v4196
        %v4217 = vunpack.c.l.b16 %v4197
        %v4218 = vunpack.c.h.b16 %v4197
        %v4219 = vunpack.c.l.b16 %v4198
        %v4220 = vunpack.c.h.b16 %v4198
        %v4221 = vunpack.c.l.b16 %v4199
        %v4222 = vunpack.c.h.b16 %v4199
        %v4223 = vunpack.c.l.b16 %v4200
        %v4224 = vunpack.c.h.b16 %v4200
        %v4225 = vpack.c.b16 %v4211, %v4209
        %v4226 = vpack.c.b16 %v4212, %v4210
        %v4227 = vpack.c.b16 %v4215, %v4213
        %v4228 = vpack.c.b16 %v4216, %v4214
        %v4229 = vpack.c.b16 %v4219, %v4217
        %v4230 = vpack.c.b16 %v4220, %v4218
        %v4231 = vpack.c.b16 %v4223, %v4221
        %v4232 = vpack.c.b16 %v4224, %v4222
        %v4242 = vsel %vm1320, %v4188, 0
        %4244 = vmatpush.bf16.msra.mxu0 0
        %4245 = vmatpush.bf16.msra.mxu0 0
        %4246 = vmatpush.bf16.msra.mxu0 0
        %4247 = vmatpush.bf16.msra.mxu0 0
        %4248 = vmatpush.bf16.msra.mxu0 %v4231
        %4249 = vmatpush.bf16.msra.mxu0 %v4229
        %4250 = vmatpush.bf16.msra.mxu0 %v4227
        %4251 = vmatpush.bf16.msra.mxu0 %v4225
        %4252 = vmatmul.bf16.gmra.mxu0 %v4242
        %v4253 = vpop.f32.mrf.mxu0
        %v4254 = vadd.f32 0.0, %v4253
        %v4255 = vpop.f32.mrf.mxu0
        %4256 = vdwg.mxu0
        %4257 = vmatpush.bf16.msra.mxu0 0
        %4258 = vmatpush.bf16.msra.mxu0 0
        %4259 = vmatpush.bf16.msra.mxu0 0
        %4260 = vmatpush.bf16.msra.mxu0 0
        %4261 = vmatpush.bf16.msra.mxu0 %v4232
        %4262 = vmatpush.bf16.msra.mxu0 %v4230
        %4263 = vmatpush.bf16.msra.mxu0 %v4228
        %4264 = vmatpush.bf16.msra.mxu0 %v4226
        %4265 = vmatmul.bf16.gmra.mxu0 %v4242
        %v4266 = vpop.f32.mrf.mxu0
        %v4267 = vadd.f32 0.0, %v4266
        %v4268 = vpop.f32.mrf.mxu0
        %4269 = vdwg.mxu0
        %v4272 = vrot.slane %v4267, 7
        %vm4273 = vcmask 1040384
        %v4274 = vsel %vm4273, %v4254, %v4272
        %v4276 = vadd.f32 %v4192, %v4274
        %v4277 = vld [vmem:[%s5 + $0x40] sm:$0xff]
        %v4278 = vld [vmem:[%s5 + $0x48] sm:$0xff]
        %v4279 = vld [vmem:[%s5 + $0x50] sm:$0xff]
        %v4280 = vld [vmem:[%s5 + $0x58] sm:$0xff]
        %v4281 = vld [vmem:[%s5 + $0x60] sm:$0xff]
        %v4282 = vld [vmem:[%s5 + $0x68] sm:$0xff]
        %v4283 = vld [vmem:[%s5 + $0x70] sm:$0xff]
        %v4284 = vld [vmem:[%s5 + $0x78] sm:$0xff]
        %v4286 = vunpack.c.l.b16 %v4188
        %v4287 = vpack.c.b16 %v4286, %v4286
        %v4288 = vrot.slane %v4287, 1
        %v4297 = vunpack.c.l.b16 %v4277
        %v4298 = vunpack.c.h.b16 %v4277
        %v4299 = vunpack.c.l.b16 %v4278
        %v4300 = vunpack.c.h.b16 %v4278
        %v4301 = vunpack.c.l.b16 %v4279
        %v4302 = vunpack.c.h.b16 %v4279
        %v4303 = vunpack.c.l.b16 %v4280
        %v4304 = vunpack.c.h.b16 %v4280
        %v4305 = vunpack.c.l.b16 %v4281
        %v4306 = vunpack.c.h.b16 %v4281
        %v4307 = vunpack.c.l.b16 %v4282
        %v4308 = vunpack.c.h.b16 %v4282
        %v4309 = vunpack.c.l.b16 %v4283
        %v4310 = vunpack.c.h.b16 %v4283
        %v4311 = vunpack.c.l.b16 %v4284
        %v4312 = vunpack.c.h.b16 %v4284
        %v4313 = vpack.c.b16 %v4299, %v4297
        %v4314 = vpack.c.b16 %v4300, %v4298
        %v4315 = vpack.c.b16 %v4303, %v4301
        %v4316 = vpack.c.b16 %v4304, %v4302
        %v4317 = vpack.c.b16 %v4307, %v4305
        %v4318 = vpack.c.b16 %v4308, %v4306
        %v4319 = vpack.c.b16 %v4311, %v4309
        %v4320 = vpack.c.b16 %v4312, %v4310
        %v4330 = vsel %vm1320, %v4288, 0
        %4332 = vmatpush.bf16.msra.mxu0 0
        %4333 = vmatpush.bf16.msra.mxu0 0
        %4334 = vmatpush.bf16.msra.mxu0 0
        %4335 = vmatpush.bf16.msra.mxu0 0
        %4336 = vmatpush.bf16.msra.mxu0 %v4319
        %4337 = vmatpush.bf16.msra.mxu0 %v4317
        %4338 = vmatpush.bf16.msra.mxu0 %v4315
        %4339 = vmatpush.bf16.msra.mxu0 %v4313
        %4340 = vmatmul.bf16.gmra.mxu0 %v4330
        %v4341 = vpop.f32.mrf.mxu0
        %v4342 = vadd.f32 0.0, %v4341
        %v4343 = vpop.f32.mrf.mxu0
        %4344 = vdwg.mxu0
        %4345 = vmatpush.bf16.msra.mxu0 0
        %4346 = vmatpush.bf16.msra.mxu0 0
        %4347 = vmatpush.bf16.msra.mxu0 0
        %4348 = vmatpush.bf16.msra.mxu0 0
        %4349 = vmatpush.bf16.msra.mxu0 %v4320
        %4350 = vmatpush.bf16.msra.mxu0 %v4318
        %4351 = vmatpush.bf16.msra.mxu0 %v4316
        %4352 = vmatpush.bf16.msra.mxu0 %v4314
        %4353 = vmatmul.bf16.gmra.mxu0 %v4330
        %v4354 = vpop.f32.mrf.mxu0
        %v4355 = vadd.f32 0.0, %v4354
        %v4356 = vpop.f32.mrf.mxu0
        %4357 = vdwg.mxu0
        %v4360 = vrot.slane %v4355, 7
        %v4361 = vsel %vm4273, %v4342, %v4360
        %v4363 = vadd.f32 %v4276, %v4361
        %v4364 = vld [vmem:[%s5 + $0x80] sm:$0xff]
        %v4365 = vld [vmem:[%s5 + $0x88] sm:$0xff]
        %v4366 = vld [vmem:[%s5 + $0x90] sm:$0xff]
        %v4367 = vld [vmem:[%s5 + $0x98] sm:$0xff]
        %v4368 = vld [vmem:[%s5 + $0xa0] sm:$0xff]
        %v4369 = vld [vmem:[%s5 + $0xa8] sm:$0xff]
        %v4370 = vld [vmem:[%s5 + $0xb0] sm:$0xff]
        %v4371 = vld [vmem:[%s5 + $0xb8] sm:$0xff]
        %v4372 = vrot.slane %v4287, 2
        %v4381 = vunpack.c.l.b16 %v4364
        %v4382 = vunpack.c.h.b16 %v4364
        %v4383 = vunpack.c.l.b16 %v4365
        %v4384 = vunpack.c.h.b16 %v4365
        %v4385 = vunpack.c.l.b16 %v4366
        %v4386 = vunpack.c.h.b16 %v4366
        %v4387 = vunpack.c.l.b16 %v4367
        %v4388 = vunpack.c.h.b16 %v4367
        %v4389 = vunpack.c.l.b16 %v4368
        %v4390 = vunpack.c.h.b16 %v4368
        %v4391 = vunpack.c.l.b16 %v4369
        %v4392 = vunpack.c.h.b16 %v4369
        %v4393 = vunpack.c.l.b16 %v4370
        %v4394 = vunpack.c.h.b16 %v4370
        %v4395 = vunpack.c.l.b16 %v4371
        %v4396 = vunpack.c.h.b16 %v4371
        %v4397 = vpack.c.b16 %v4383, %v4381
        %v4398 = vpack.c.b16 %v4384, %v4382
        %v4399 = vpack.c.b16 %v4387, %v4385
        %v4400 = vpack.c.b16 %v4388, %v4386
        %v4401 = vpack.c.b16 %v4391, %v4389
        %v4402 = vpack.c.b16 %v4392, %v4390
        %v4403 = vpack.c.b16 %v4395, %v4393
        %v4404 = vpack.c.b16 %v4396, %v4394
        %v4414 = vsel %vm1320, %v4372, 0
        %4416 = vmatpush.bf16.msra.mxu0 0
        %4417 = vmatpush.bf16.msra.mxu0 0
        %4418 = vmatpush.bf16.msra.mxu0 0
        %4419 = vmatpush.bf16.msra.mxu0 0
        %4420 = vmatpush.bf16.msra.mxu0 %v4403
        %4421 = vmatpush.bf16.msra.mxu0 %v4401
        %4422 = vmatpush.bf16.msra.mxu0 %v4399
        %4423 = vmatpush.bf16.msra.mxu0 %v4397
        %4424 = vmatmul.bf16.gmra.mxu0 %v4414
        %v4425 = vpop.f32.mrf.mxu0
        %v4426 = vadd.f32 0.0, %v4425
        %v4427 = vpop.f32.mrf.mxu0
        %4428 = vdwg.mxu0
        %4429 = vmatpush.bf16.msra.mxu0 0
        %4430 = vmatpush.bf16.msra.mxu0 0
        %4431 = vmatpush.bf16.msra.mxu0 0
        %4432 = vmatpush.bf16.msra.mxu0 0
        %4433 = vmatpush.bf16.msra.mxu0 %v4404
        %4434 = vmatpush.bf16.msra.mxu0 %v4402
        %4435 = vmatpush.bf16.msra.mxu0 %v4400
        %4436 = vmatpush.bf16.msra.mxu0 %v4398
        %4437 = vmatmul.bf16.gmra.mxu0 %v4414
        %v4438 = vpop.f32.mrf.mxu0
        %v4439 = vadd.f32 0.0, %v4438
        %v4440 = vpop.f32.mrf.mxu0
        %4441 = vdwg.mxu0
        %v4444 = vrot.slane %v4439, 7
        %v4445 = vsel %vm4273, %v4426, %v4444
        %v4447 = vadd.f32 %v4363, %v4445
        %v4448 = vld [vmem:[%s5 + $0xc0] sm:$0xff]
        %v4449 = vld [vmem:[%s5 + $0xc8] sm:$0xff]
        %v4450 = vld [vmem:[%s5 + $0xd0] sm:$0xff]
        %v4451 = vld [vmem:[%s5 + $0xd8] sm:$0xff]
        %v4452 = vld [vmem:[%s5 + $0xe0] sm:$0xff]
        %v4453 = vld [vmem:[%s5 + $0xe8] sm:$0xff]
        %v4454 = vld [vmem:[%s5 + $0xf0] sm:$0xff]
        %v4455 = vld [vmem:[%s5 + $0xf8] sm:$0xff]
        %v4456 = vrot.slane %v4287, 3
        %v4465 = vunpack.c.l.b16 %v4448
        %v4466 = vunpack.c.h.b16 %v4448
        %v4467 = vunpack.c.l.b16 %v4449
        %v4468 = vunpack.c.h.b16 %v4449
        %v4469 = vunpack.c.l.b16 %v4450
        %v4470 = vunpack.c.h.b16 %v4450
        %v4471 = vunpack.c.l.b16 %v4451
        %v4472 = vunpack.c.h.b16 %v4451
        %v4473 = vunpack.c.l.b16 %v4452
        %v4474 = vunpack.c.h.b16 %v4452
        %v4475 = vunpack.c.l.b16 %v4453
        %v4476 = vunpack.c.h.b16 %v4453
        %v4477 = vunpack.c.l.b16 %v4454
        %v4478 = vunpack.c.h.b16 %v4454
        %v4479 = vunpack.c.l.b16 %v4455
        %v4480 = vunpack.c.h.b16 %v4455
        %v4481 = vpack.c.b16 %v4467, %v4465
        %v4482 = vpack.c.b16 %v4468, %v4466
        %v4483 = vpack.c.b16 %v4471, %v4469
        %v4484 = vpack.c.b16 %v4472, %v4470
        %v4485 = vpack.c.b16 %v4475, %v4473
        %v4486 = vpack.c.b16 %v4476, %v4474
        %v4487 = vpack.c.b16 %v4479, %v4477
        %v4488 = vpack.c.b16 %v4480, %v4478
        %v4498 = vsel %vm1320, %v4456, 0
        %4500 = vmatpush.bf16.msra.mxu0 0
        %4501 = vmatpush.bf16.msra.mxu0 0
        %4502 = vmatpush.bf16.msra.mxu0 0
        %4503 = vmatpush.bf16.msra.mxu0 0
        %4504 = vmatpush.bf16.msra.mxu0 %v4487
        %4505 = vmatpush.bf16.msra.mxu0 %v4485
        %4506 = vmatpush.bf16.msra.mxu0 %v4483
        %4507 = vmatpush.bf16.msra.mxu0 %v4481
        %4508 = vmatmul.bf16.gmra.mxu0 %v4498
        %v4509 = vpop.f32.mrf.mxu0
        %v4510 = vadd.f32 0.0, %v4509
        %v4511 = vpop.f32.mrf.mxu0
        %4512 = vdwg.mxu0
        %4513 = vmatpush.bf16.msra.mxu0 0
        %4514 = vmatpush.bf16.msra.mxu0 0
        %4515 = vmatpush.bf16.msra.mxu0 0
        %4516 = vmatpush.bf16.msra.mxu0 0
        %4517 = vmatpush.bf16.msra.mxu0 %v4488
        %4518 = vmatpush.bf16.msra.mxu0 %v4486
        %4519 = vmatpush.bf16.msra.mxu0 %v4484
        %4520 = vmatpush.bf16.msra.mxu0 %v4482
        %4521 = vmatmul.bf16.gmra.mxu0 %v4498
        %v4522 = vpop.f32.mrf.mxu0
        %v4523 = vadd.f32 0.0, %v4522
        %v4524 = vpop.f32.mrf.mxu0
        %4525 = vdwg.mxu0
        %v4528 = vrot.slane %v4523, 7
        %v4529 = vsel %vm4273, %v4510, %v4528
        %v4531 = vadd.f32 %v4447, %v4529
        %v4532 = vld [vmem:[%s5 + $0x100] sm:$0xff]
        %v4533 = vld [vmem:[%s5 + $0x108] sm:$0xff]
        %v4534 = vld [vmem:[%s5 + $0x110] sm:$0xff]
        %v4535 = vld [vmem:[%s5 + $0x118] sm:$0xff]
        %v4536 = vld [vmem:[%s5 + $0x120] sm:$0xff]
        %v4537 = vld [vmem:[%s5 + $0x128] sm:$0xff]
        %v4538 = vld [vmem:[%s5 + $0x130] sm:$0xff]
        %v4539 = vld [vmem:[%s5 + $0x138] sm:$0xff]
        %v4548 = vunpack.c.l.b16 %v4532
        %v4549 = vunpack.c.h.b16 %v4532
        %v4550 = vunpack.c.l.b16 %v4533
        %v4551 = vunpack.c.h.b16 %v4533
        %v4552 = vunpack.c.l.b16 %v4534
        %v4553 = vunpack.c.h.b16 %v4534
        %v4554 = vunpack.c.l.b16 %v4535
        %v4555 = vunpack.c.h.b16 %v4535
        %v4556 = vunpack.c.l.b16 %v4536
        %v4557 = vunpack.c.h.b16 %v4536
        %v4558 = vunpack.c.l.b16 %v4537
        %v4559 = vunpack.c.h.b16 %v4537
        %v4560 = vunpack.c.l.b16 %v4538
        %v4561 = vunpack.c.h.b16 %v4538
        %v4562 = vunpack.c.l.b16 %v4539
        %v4563 = vunpack.c.h.b16 %v4539
        %v4564 = vpack.c.b16 %v4550, %v4548
        %v4565 = vpack.c.b16 %v4551, %v4549
        %v4566 = vpack.c.b16 %v4554, %v4552
        %v4567 = vpack.c.b16 %v4555, %v4553
        %v4568 = vpack.c.b16 %v4558, %v4556
        %v4569 = vpack.c.b16 %v4559, %v4557
        %v4570 = vpack.c.b16 %v4562, %v4560
        %v4571 = vpack.c.b16 %v4563, %v4561
        %v4581 = vsel %vm1320, %v4189, 0
        %4583 = vmatpush.bf16.msra.mxu0 0
        %4584 = vmatpush.bf16.msra.mxu0 0
        %4585 = vmatpush.bf16.msra.mxu0 0
        %4586 = vmatpush.bf16.msra.mxu0 0
        %4587 = vmatpush.bf16.msra.mxu0 %v4570
        %4588 = vmatpush.bf16.msra.mxu0 %v4568
        %4589 = vmatpush.bf16.msra.mxu0 %v4566
        %4590 = vmatpush.bf16.msra.mxu0 %v4564
        %4591 = vmatmul.bf16.gmra.mxu0 %v4581
        %v4592 = vpop.f32.mrf.mxu0
        %v4593 = vadd.f32 0.0, %v4592
        %v4594 = vpop.f32.mrf.mxu0
        %4595 = vdwg.mxu0
        %4596 = vmatpush.bf16.msra.mxu0 0
        %4597 = vmatpush.bf16.msra.mxu0 0
        %4598 = vmatpush.bf16.msra.mxu0 0
        %4599 = vmatpush.bf16.msra.mxu0 0
        %4600 = vmatpush.bf16.msra.mxu0 %v4571
        %4601 = vmatpush.bf16.msra.mxu0 %v4569
        %4602 = vmatpush.bf16.msra.mxu0 %v4567
        %4603 = vmatpush.bf16.msra.mxu0 %v4565
        %4604 = vmatmul.bf16.gmra.mxu0 %v4581
        %v4605 = vpop.f32.mrf.mxu0
        %v4606 = vadd.f32 0.0, %v4605
        %v4607 = vpop.f32.mrf.mxu0
        %4608 = vdwg.mxu0
        %v4611 = vrot.slane %v4606, 7
        %v4612 = vsel %vm4273, %v4593, %v4611
        %v4614 = vadd.f32 %v4531, %v4612
        %v4615 = vld [vmem:[%s5 + $0x140] sm:$0xff]
        %v4616 = vld [vmem:[%s5 + $0x148] sm:$0xff]
        %v4617 = vld [vmem:[%s5 + $0x150] sm:$0xff]
        %v4618 = vld [vmem:[%s5 + $0x158] sm:$0xff]
        %v4619 = vld [vmem:[%s5 + $0x160] sm:$0xff]
        %v4620 = vld [vmem:[%s5 + $0x168] sm:$0xff]
        %v4621 = vld [vmem:[%s5 + $0x170] sm:$0xff]
        %v4622 = vld [vmem:[%s5 + $0x178] sm:$0xff]
        %v4624 = vunpack.c.l.b16 %v4189
        %v4625 = vpack.c.b16 %v4624, %v4624
        %v4626 = vrot.slane %v4625, 1
        %v4635 = vunpack.c.l.b16 %v4615
        %v4636 = vunpack.c.h.b16 %v4615
        %v4637 = vunpack.c.l.b16 %v4616
        %v4638 = vunpack.c.h.b16 %v4616
        %v4639 = vunpack.c.l.b16 %v4617
        %v4640 = vunpack.c.h.b16 %v4617
        %v4641 = vunpack.c.l.b16 %v4618
        %v4642 = vunpack.c.h.b16 %v4618
        %v4643 = vunpack.c.l.b16 %v4619
        %v4644 = vunpack.c.h.b16 %v4619
        %v4645 = vunpack.c.l.b16 %v4620
        %v4646 = vunpack.c.h.b16 %v4620
        %v4647 = vunpack.c.l.b16 %v4621
        %v4648 = vunpack.c.h.b16 %v4621
        %v4649 = vunpack.c.l.b16 %v4622
        %v4650 = vunpack.c.h.b16 %v4622
        %v4651 = vpack.c.b16 %v4637, %v4635
        %v4652 = vpack.c.b16 %v4638, %v4636
        %v4653 = vpack.c.b16 %v4641, %v4639
        %v4654 = vpack.c.b16 %v4642, %v4640
        %v4655 = vpack.c.b16 %v4645, %v4643
        %v4656 = vpack.c.b16 %v4646, %v4644
        %v4657 = vpack.c.b16 %v4649, %v4647
        %v4658 = vpack.c.b16 %v4650, %v4648
        %v4668 = vsel %vm1320, %v4626, 0
        %4670 = vmatpush.bf16.msra.mxu0 0
        %4671 = vmatpush.bf16.msra.mxu0 0
        %4672 = vmatpush.bf16.msra.mxu0 0
        %4673 = vmatpush.bf16.msra.mxu0 0
        %4674 = vmatpush.bf16.msra.mxu0 %v4657
        %4675 = vmatpush.bf16.msra.mxu0 %v4655
        %4676 = vmatpush.bf16.msra.mxu0 %v4653
        %4677 = vmatpush.bf16.msra.mxu0 %v4651
        %4678 = vmatmul.bf16.gmra.mxu0 %v4668
        %v4679 = vpop.f32.mrf.mxu0
        %v4680 = vadd.f32 0.0, %v4679
        %v4681 = vpop.f32.mrf.mxu0
        %4682 = vdwg.mxu0
        %4683 = vmatpush.bf16.msra.mxu0 0
        %4684 = vmatpush.bf16.msra.mxu0 0
        %4685 = vmatpush.bf16.msra.mxu0 0
        %4686 = vmatpush.bf16.msra.mxu0 0
        %4687 = vmatpush.bf16.msra.mxu0 %v4658
        %4688 = vmatpush.bf16.msra.mxu0 %v4656
        %4689 = vmatpush.bf16.msra.mxu0 %v4654
        %4690 = vmatpush.bf16.msra.mxu0 %v4652
        %4691 = vmatmul.bf16.gmra.mxu0 %v4668
        %v4692 = vpop.f32.mrf.mxu0
        %v4693 = vadd.f32 0.0, %v4692
        %v4694 = vpop.f32.mrf.mxu0
        %4695 = vdwg.mxu0
        %v4698 = vrot.slane %v4693, 7
        %v4699 = vsel %vm4273, %v4680, %v4698
        %v4701 = vadd.f32 %v4614, %v4699
        %v4702 = vld [vmem:[%s5 + $0x180] sm:$0xff]
        %v4703 = vld [vmem:[%s5 + $0x188] sm:$0xff]
        %v4704 = vld [vmem:[%s5 + $0x190] sm:$0xff]
        %v4705 = vld [vmem:[%s5 + $0x198] sm:$0xff]
        %v4706 = vld [vmem:[%s5 + $0x1a0] sm:$0xff]
        %v4707 = vld [vmem:[%s5 + $0x1a8] sm:$0xff]
        %v4708 = vld [vmem:[%s5 + $0x1b0] sm:$0xff]
        %v4709 = vld [vmem:[%s5 + $0x1b8] sm:$0xff]
        %v4710 = vrot.slane %v4625, 2
        %v4719 = vunpack.c.l.b16 %v4702
        %v4720 = vunpack.c.h.b16 %v4702
        %v4721 = vunpack.c.l.b16 %v4703
        %v4722 = vunpack.c.h.b16 %v4703
        %v4723 = vunpack.c.l.b16 %v4704
        %v4724 = vunpack.c.h.b16 %v4704
        %v4725 = vunpack.c.l.b16 %v4705
        %v4726 = vunpack.c.h.b16 %v4705
        %v4727 = vunpack.c.l.b16 %v4706
        %v4728 = vunpack.c.h.b16 %v4706
        %v4729 = vunpack.c.l.b16 %v4707
        %v4730 = vunpack.c.h.b16 %v4707
        %v4731 = vunpack.c.l.b16 %v4708
        %v4732 = vunpack.c.h.b16 %v4708
        %v4733 = vunpack.c.l.b16 %v4709
        %v4734 = vunpack.c.h.b16 %v4709
        %v4735 = vpack.c.b16 %v4721, %v4719
        %v4736 = vpack.c.b16 %v4722, %v4720
        %v4737 = vpack.c.b16 %v4725, %v4723
        %v4738 = vpack.c.b16 %v4726, %v4724
        %v4739 = vpack.c.b16 %v4729, %v4727
        %v4740 = vpack.c.b16 %v4730, %v4728
        %v4741 = vpack.c.b16 %v4733, %v4731
        %v4742 = vpack.c.b16 %v4734, %v4732
        %v4752 = vsel %vm1320, %v4710, 0
        %4754 = vmatpush.bf16.msra.mxu0 0
        %4755 = vmatpush.bf16.msra.mxu0 0
        %4756 = vmatpush.bf16.msra.mxu0 0
        %4757 = vmatpush.bf16.msra.mxu0 0
        %4758 = vmatpush.bf16.msra.mxu0 %v4741
        %4759 = vmatpush.bf16.msra.mxu0 %v4739
        %4760 = vmatpush.bf16.msra.mxu0 %v4737
        %4761 = vmatpush.bf16.msra.mxu0 %v4735
        %4762 = vmatmul.bf16.gmra.mxu0 %v4752
        %v4763 = vpop.f32.mrf.mxu0
        %v4764 = vadd.f32 0.0, %v4763
        %v4765 = vpop.f32.mrf.mxu0
        %4766 = vdwg.mxu0
        %4767 = vmatpush.bf16.msra.mxu0 0
        %4768 = vmatpush.bf16.msra.mxu0 0
        %4769 = vmatpush.bf16.msra.mxu0 0
        %4770 = vmatpush.bf16.msra.mxu0 0
        %4771 = vmatpush.bf16.msra.mxu0 %v4742
        %4772 = vmatpush.bf16.msra.mxu0 %v4740
        %4773 = vmatpush.bf16.msra.mxu0 %v4738
        %4774 = vmatpush.bf16.msra.mxu0 %v4736
        %4775 = vmatmul.bf16.gmra.mxu0 %v4752
        %v4776 = vpop.f32.mrf.mxu0
        %v4777 = vadd.f32 0.0, %v4776
        %v4778 = vpop.f32.mrf.mxu0
        %4779 = vdwg.mxu0
        %v4782 = vrot.slane %v4777, 7
        %v4783 = vsel %vm4273, %v4764, %v4782
        %v4785 = vadd.f32 %v4701, %v4783
        %v4786 = vld [vmem:[%s5 + $0x1c0] sm:$0xff]
        %v4787 = vld [vmem:[%s5 + $0x1c8] sm:$0xff]
        %v4788 = vld [vmem:[%s5 + $0x1d0] sm:$0xff]
        %v4789 = vld [vmem:[%s5 + $0x1d8] sm:$0xff]
        %v4790 = vld [vmem:[%s5 + $0x1e0] sm:$0xff]
        %v4791 = vld [vmem:[%s5 + $0x1e8] sm:$0xff]
        %v4792 = vld [vmem:[%s5 + $0x1f0] sm:$0xff]
        %v4793 = vld [vmem:[%s5 + $0x1f8] sm:$0xff]
        %v4794 = vrot.slane %v4625, 3
        %v4803 = vunpack.c.l.b16 %v4786
        %v4804 = vunpack.c.h.b16 %v4786
        %v4805 = vunpack.c.l.b16 %v4787
        %v4806 = vunpack.c.h.b16 %v4787
        %v4807 = vunpack.c.l.b16 %v4788
        %v4808 = vunpack.c.h.b16 %v4788
        %v4809 = vunpack.c.l.b16 %v4789
        %v4810 = vunpack.c.h.b16 %v4789
        %v4811 = vunpack.c.l.b16 %v4790
        %v4812 = vunpack.c.h.b16 %v4790
        %v4813 = vunpack.c.l.b16 %v4791
        %v4814 = vunpack.c.h.b16 %v4791
        %v4815 = vunpack.c.l.b16 %v4792
        %v4816 = vunpack.c.h.b16 %v4792
        %v4817 = vunpack.c.l.b16 %v4793
        %v4818 = vunpack.c.h.b16 %v4793
        %v4819 = vpack.c.b16 %v4805, %v4803
        %v4820 = vpack.c.b16 %v4806, %v4804
        %v4821 = vpack.c.b16 %v4809, %v4807
        %v4822 = vpack.c.b16 %v4810, %v4808
        %v4823 = vpack.c.b16 %v4813, %v4811
        %v4824 = vpack.c.b16 %v4814, %v4812
        %v4825 = vpack.c.b16 %v4817, %v4815
        %v4826 = vpack.c.b16 %v4818, %v4816
        %v4836 = vsel %vm1320, %v4794, 0
        %4838 = vmatpush.bf16.msra.mxu0 0
        %4839 = vmatpush.bf16.msra.mxu0 0
        %4840 = vmatpush.bf16.msra.mxu0 0
        %4841 = vmatpush.bf16.msra.mxu0 0
        %4842 = vmatpush.bf16.msra.mxu0 %v4825
        %4843 = vmatpush.bf16.msra.mxu0 %v4823
        %4844 = vmatpush.bf16.msra.mxu0 %v4821
        %4845 = vmatpush.bf16.msra.mxu0 %v4819
        %4846 = vmatmul.bf16.gmra.mxu0 %v4836
        %v4847 = vpop.f32.mrf.mxu0
        %v4848 = vadd.f32 0.0, %v4847
        %v4849 = vpop.f32.mrf.mxu0
        %4850 = vdwg.mxu0
        %4851 = vmatpush.bf16.msra.mxu0 0
        %4852 = vmatpush.bf16.msra.mxu0 0
        %4853 = vmatpush.bf16.msra.mxu0 0
        %4854 = vmatpush.bf16.msra.mxu0 0
        %4855 = vmatpush.bf16.msra.mxu0 %v4826
        %4856 = vmatpush.bf16.msra.mxu0 %v4824
        %4857 = vmatpush.bf16.msra.mxu0 %v4822
        %4858 = vmatpush.bf16.msra.mxu0 %v4820
        %4859 = vmatmul.bf16.gmra.mxu0 %v4836
        %v4860 = vpop.f32.mrf.mxu0
        %v4861 = vadd.f32 0.0, %v4860
        %v4862 = vpop.f32.mrf.mxu0
        %4863 = vdwg.mxu0
        %v4866 = vrot.slane %v4861, 7
        %v4867 = vsel %vm4273, %v4848, %v4866
        %v4869 = vadd.f32 %v4785, %v4867
        %v4870 = vld [vmem:[%s5 + $0x200] sm:$0xff]
        %v4871 = vld [vmem:[%s5 + $0x208] sm:$0xff]
        %v4872 = vld [vmem:[%s5 + $0x210] sm:$0xff]
        %v4873 = vld [vmem:[%s5 + $0x218] sm:$0xff]
        %v4874 = vld [vmem:[%s5 + $0x220] sm:$0xff]
        %v4875 = vld [vmem:[%s5 + $0x228] sm:$0xff]
        %v4876 = vld [vmem:[%s5 + $0x230] sm:$0xff]
        %v4877 = vld [vmem:[%s5 + $0x238] sm:$0xff]
        %v4886 = vunpack.c.l.b16 %v4870
        %v4887 = vunpack.c.h.b16 %v4870
        %v4888 = vunpack.c.l.b16 %v4871
        %v4889 = vunpack.c.h.b16 %v4871
        %v4890 = vunpack.c.l.b16 %v4872
        %v4891 = vunpack.c.h.b16 %v4872
        %v4892 = vunpack.c.l.b16 %v4873
        %v4893 = vunpack.c.h.b16 %v4873
        %v4894 = vunpack.c.l.b16 %v4874
        %v4895 = vunpack.c.h.b16 %v4874
        %v4896 = vunpack.c.l.b16 %v4875
        %v4897 = vunpack.c.h.b16 %v4875
        %v4898 = vunpack.c.l.b16 %v4876
        %v4899 = vunpack.c.h.b16 %v4876
        %v4900 = vunpack.c.l.b16 %v4877
        %v4901 = vunpack.c.h.b16 %v4877
        %v4902 = vpack.c.b16 %v4888, %v4886
        %v4903 = vpack.c.b16 %v4889, %v4887
        %v4904 = vpack.c.b16 %v4892, %v4890
        %v4905 = vpack.c.b16 %v4893, %v4891
        %v4906 = vpack.c.b16 %v4896, %v4894
        %v4907 = vpack.c.b16 %v4897, %v4895
        %v4908 = vpack.c.b16 %v4900, %v4898
        %v4909 = vpack.c.b16 %v4901, %v4899
        %v4919 = vsel %vm1320, %v4190, 0
        %4921 = vmatpush.bf16.msra.mxu0 0
        %4922 = vmatpush.bf16.msra.mxu0 0
        %4923 = vmatpush.bf16.msra.mxu0 0
        %4924 = vmatpush.bf16.msra.mxu0 0
        %4925 = vmatpush.bf16.msra.mxu0 %v4908
        %4926 = vmatpush.bf16.msra.mxu0 %v4906
        %4927 = vmatpush.bf16.msra.mxu0 %v4904
        %4928 = vmatpush.bf16.msra.mxu0 %v4902
        %4929 = vmatmul.bf16.gmra.mxu0 %v4919
        %v4930 = vpop.f32.mrf.mxu0
        %v4931 = vadd.f32 0.0, %v4930
        %v4932 = vpop.f32.mrf.mxu0
        %4933 = vdwg.mxu0
        %4934 = vmatpush.bf16.msra.mxu0 0
        %4935 = vmatpush.bf16.msra.mxu0 0
        %4936 = vmatpush.bf16.msra.mxu0 0
        %4937 = vmatpush.bf16.msra.mxu0 0
        %4938 = vmatpush.bf16.msra.mxu0 %v4909
        %4939 = vmatpush.bf16.msra.mxu0 %v4907
        %4940 = vmatpush.bf16.msra.mxu0 %v4905
        %4941 = vmatpush.bf16.msra.mxu0 %v4903
        %4942 = vmatmul.bf16.gmra.mxu0 %v4919
        %v4943 = vpop.f32.mrf.mxu0
        %v4944 = vadd.f32 0.0, %v4943
        %v4945 = vpop.f32.mrf.mxu0
        %4946 = vdwg.mxu0
        %v4949 = vrot.slane %v4944, 7
        %v4950 = vsel %vm4273, %v4931, %v4949
        %v4952 = vadd.f32 %v4869, %v4950
        %v4953 = vld [vmem:[%s5 + $0x240] sm:$0xff]
        %v4954 = vld [vmem:[%s5 + $0x248] sm:$0xff]
        %v4955 = vld [vmem:[%s5 + $0x250] sm:$0xff]
        %v4956 = vld [vmem:[%s5 + $0x258] sm:$0xff]
        %v4957 = vld [vmem:[%s5 + $0x260] sm:$0xff]
        %v4958 = vld [vmem:[%s5 + $0x268] sm:$0xff]
        %v4959 = vld [vmem:[%s5 + $0x270] sm:$0xff]
        %v4960 = vld [vmem:[%s5 + $0x278] sm:$0xff]
        %v4962 = vunpack.c.l.b16 %v4190
        %v4963 = vpack.c.b16 %v4962, %v4962
        %v4964 = vrot.slane %v4963, 1
        %v4973 = vunpack.c.l.b16 %v4953
        %v4974 = vunpack.c.h.b16 %v4953
        %v4975 = vunpack.c.l.b16 %v4954
        %v4976 = vunpack.c.h.b16 %v4954
        %v4977 = vunpack.c.l.b16 %v4955
        %v4978 = vunpack.c.h.b16 %v4955
        %v4979 = vunpack.c.l.b16 %v4956
        %v4980 = vunpack.c.h.b16 %v4956
        %v4981 = vunpack.c.l.b16 %v4957
        %v4982 = vunpack.c.h.b16 %v4957
        %v4983 = vunpack.c.l.b16 %v4958
        %v4984 = vunpack.c.h.b16 %v4958
        %v4985 = vunpack.c.l.b16 %v4959
        %v4986 = vunpack.c.h.b16 %v4959
        %v4987 = vunpack.c.l.b16 %v4960
        %v4988 = vunpack.c.h.b16 %v4960
        %v4989 = vpack.c.b16 %v4975, %v4973
        %v4990 = vpack.c.b16 %v4976, %v4974
        %v4991 = vpack.c.b16 %v4979, %v4977
        %v4992 = vpack.c.b16 %v4980, %v4978
        %v4993 = vpack.c.b16 %v4983, %v4981
        %v4994 = vpack.c.b16 %v4984, %v4982
        %v4995 = vpack.c.b16 %v4987, %v4985
        %v4996 = vpack.c.b16 %v4988, %v4986
        %v5006 = vsel %vm1320, %v4964, 0
        %5008 = vmatpush.bf16.msra.mxu0 0
        %5009 = vmatpush.bf16.msra.mxu0 0
        %5010 = vmatpush.bf16.msra.mxu0 0
        %5011 = vmatpush.bf16.msra.mxu0 0
        %5012 = vmatpush.bf16.msra.mxu0 %v4995
        %5013 = vmatpush.bf16.msra.mxu0 %v4993
        %5014 = vmatpush.bf16.msra.mxu0 %v4991
        %5015 = vmatpush.bf16.msra.mxu0 %v4989
        %5016 = vmatmul.bf16.gmra.mxu0 %v5006
        %v5017 = vpop.f32.mrf.mxu0
        %v5018 = vadd.f32 0.0, %v5017
        %v5019 = vpop.f32.mrf.mxu0
        %5020 = vdwg.mxu0
        %5021 = vmatpush.bf16.msra.mxu0 0
        %5022 = vmatpush.bf16.msra.mxu0 0
        %5023 = vmatpush.bf16.msra.mxu0 0
        %5024 = vmatpush.bf16.msra.mxu0 0
        %5025 = vmatpush.bf16.msra.mxu0 %v4996
        %5026 = vmatpush.bf16.msra.mxu0 %v4994
        %5027 = vmatpush.bf16.msra.mxu0 %v4992
        %5028 = vmatpush.bf16.msra.mxu0 %v4990
        %5029 = vmatmul.bf16.gmra.mxu0 %v5006
        %v5030 = vpop.f32.mrf.mxu0
        %v5031 = vadd.f32 0.0, %v5030
        %v5032 = vpop.f32.mrf.mxu0
        %5033 = vdwg.mxu0
        %v5036 = vrot.slane %v5031, 7
        %v5037 = vsel %vm4273, %v5018, %v5036
        %v5039 = vadd.f32 %v4952, %v5037
        %v5040 = vld [vmem:[%s5 + $0x280] sm:$0xff]
        %v5041 = vld [vmem:[%s5 + $0x288] sm:$0xff]
        %v5042 = vld [vmem:[%s5 + $0x290] sm:$0xff]
        %v5043 = vld [vmem:[%s5 + $0x298] sm:$0xff]
        %v5044 = vld [vmem:[%s5 + $0x2a0] sm:$0xff]
        %v5045 = vld [vmem:[%s5 + $0x2a8] sm:$0xff]
        %v5046 = vld [vmem:[%s5 + $0x2b0] sm:$0xff]
        %v5047 = vld [vmem:[%s5 + $0x2b8] sm:$0xff]
        %v5048 = vrot.slane %v4963, 2
        %v5057 = vunpack.c.l.b16 %v5040
        %v5058 = vunpack.c.h.b16 %v5040
        %v5059 = vunpack.c.l.b16 %v5041
        %v5060 = vunpack.c.h.b16 %v5041
        %v5061 = vunpack.c.l.b16 %v5042
        %v5062 = vunpack.c.h.b16 %v5042
        %v5063 = vunpack.c.l.b16 %v5043
        %v5064 = vunpack.c.h.b16 %v5043
        %v5065 = vunpack.c.l.b16 %v5044
        %v5066 = vunpack.c.h.b16 %v5044
        %v5067 = vunpack.c.l.b16 %v5045
        %v5068 = vunpack.c.h.b16 %v5045
        %v5069 = vunpack.c.l.b16 %v5046
        %v5070 = vunpack.c.h.b16 %v5046
        %v5071 = vunpack.c.l.b16 %v5047
        %v5072 = vunpack.c.h.b16 %v5047
        %v5073 = vpack.c.b16 %v5059, %v5057
        %v5074 = vpack.c.b16 %v5060, %v5058
        %v5075 = vpack.c.b16 %v5063, %v5061
        %v5076 = vpack.c.b16 %v5064, %v5062
        %v5077 = vpack.c.b16 %v5067, %v5065
        %v5078 = vpack.c.b16 %v5068, %v5066
        %v5079 = vpack.c.b16 %v5071, %v5069
        %v5080 = vpack.c.b16 %v5072, %v5070
        %v5090 = vsel %vm1320, %v5048, 0
        %5092 = vmatpush.bf16.msra.mxu0 0
        %5093 = vmatpush.bf16.msra.mxu0 0
        %5094 = vmatpush.bf16.msra.mxu0 0
        %5095 = vmatpush.bf16.msra.mxu0 0
        %5096 = vmatpush.bf16.msra.mxu0 %v5079
        %5097 = vmatpush.bf16.msra.mxu0 %v5077
        %5098 = vmatpush.bf16.msra.mxu0 %v5075
        %5099 = vmatpush.bf16.msra.mxu0 %v5073
        %5100 = vmatmul.bf16.gmra.mxu0 %v5090
        %v5101 = vpop.f32.mrf.mxu0
        %v5102 = vadd.f32 0.0, %v5101
        %v5103 = vpop.f32.mrf.mxu0
        %5104 = vdwg.mxu0
        %5105 = vmatpush.bf16.msra.mxu0 0
        %5106 = vmatpush.bf16.msra.mxu0 0
        %5107 = vmatpush.bf16.msra.mxu0 0
        %5108 = vmatpush.bf16.msra.mxu0 0
        %5109 = vmatpush.bf16.msra.mxu0 %v5080
        %5110 = vmatpush.bf16.msra.mxu0 %v5078
        %5111 = vmatpush.bf16.msra.mxu0 %v5076
        %5112 = vmatpush.bf16.msra.mxu0 %v5074
        %5113 = vmatmul.bf16.gmra.mxu0 %v5090
        %v5114 = vpop.f32.mrf.mxu0
        %v5115 = vadd.f32 0.0, %v5114
        %v5116 = vpop.f32.mrf.mxu0
        %5117 = vdwg.mxu0
        %v5120 = vrot.slane %v5115, 7
        %v5121 = vsel %vm4273, %v5102, %v5120
        %v5123 = vadd.f32 %v5039, %v5121
        %v5124 = vld [vmem:[%s5 + $0x2c0] sm:$0xff]
        %v5125 = vld [vmem:[%s5 + $0x2c8] sm:$0xff]
        %v5126 = vld [vmem:[%s5 + $0x2d0] sm:$0xff]
        %v5127 = vld [vmem:[%s5 + $0x2d8] sm:$0xff]
        %v5128 = vld [vmem:[%s5 + $0x2e0] sm:$0xff]
        %v5129 = vld [vmem:[%s5 + $0x2e8] sm:$0xff]
        %v5130 = vld [vmem:[%s5 + $0x2f0] sm:$0xff]
        %v5131 = vld [vmem:[%s5 + $0x2f8] sm:$0xff]
        %v5132 = vrot.slane %v4963, 3
        %v5141 = vunpack.c.l.b16 %v5124
        %v5142 = vunpack.c.h.b16 %v5124
        %v5143 = vunpack.c.l.b16 %v5125
        %v5144 = vunpack.c.h.b16 %v5125
        %v5145 = vunpack.c.l.b16 %v5126
        %v5146 = vunpack.c.h.b16 %v5126
        %v5147 = vunpack.c.l.b16 %v5127
        %v5148 = vunpack.c.h.b16 %v5127
        %v5149 = vunpack.c.l.b16 %v5128
        %v5150 = vunpack.c.h.b16 %v5128
        %v5151 = vunpack.c.l.b16 %v5129
        %v5152 = vunpack.c.h.b16 %v5129
        %v5153 = vunpack.c.l.b16 %v5130
        %v5154 = vunpack.c.h.b16 %v5130
        %v5155 = vunpack.c.l.b16 %v5131
        %v5156 = vunpack.c.h.b16 %v5131
        %v5157 = vpack.c.b16 %v5143, %v5141
        %v5158 = vpack.c.b16 %v5144, %v5142
        %v5159 = vpack.c.b16 %v5147, %v5145
        %v5160 = vpack.c.b16 %v5148, %v5146
        %v5161 = vpack.c.b16 %v5151, %v5149
        %v5162 = vpack.c.b16 %v5152, %v5150
        %v5163 = vpack.c.b16 %v5155, %v5153
        %v5164 = vpack.c.b16 %v5156, %v5154
        %v5174 = vsel %vm1320, %v5132, 0
        %5176 = vmatpush.bf16.msra.mxu0 0
        %5177 = vmatpush.bf16.msra.mxu0 0
        %5178 = vmatpush.bf16.msra.mxu0 0
        %5179 = vmatpush.bf16.msra.mxu0 0
        %5180 = vmatpush.bf16.msra.mxu0 %v5163
        %5181 = vmatpush.bf16.msra.mxu0 %v5161
        %5182 = vmatpush.bf16.msra.mxu0 %v5159
        %5183 = vmatpush.bf16.msra.mxu0 %v5157
        %5184 = vmatmul.bf16.gmra.mxu0 %v5174
        %v5185 = vpop.f32.mrf.mxu0
        %v5186 = vadd.f32 0.0, %v5185
        %v5187 = vpop.f32.mrf.mxu0
        %5188 = vdwg.mxu0
        %5189 = vmatpush.bf16.msra.mxu0 0
        %5190 = vmatpush.bf16.msra.mxu0 0
        %5191 = vmatpush.bf16.msra.mxu0 0
        %5192 = vmatpush.bf16.msra.mxu0 0
        %5193 = vmatpush.bf16.msra.mxu0 %v5164
        %5194 = vmatpush.bf16.msra.mxu0 %v5162
        %5195 = vmatpush.bf16.msra.mxu0 %v5160
        %5196 = vmatpush.bf16.msra.mxu0 %v5158
        %5197 = vmatmul.bf16.gmra.mxu0 %v5174
        %v5198 = vpop.f32.mrf.mxu0
        %v5199 = vadd.f32 0.0, %v5198
        %v5200 = vpop.f32.mrf.mxu0
        %5201 = vdwg.mxu0
        %v5204 = vrot.slane %v5199, 7
        %v5205 = vsel %vm4273, %v5186, %v5204
        %v5207 = vadd.f32 %v5123, %v5205
        %v5208 = vld [vmem:[%s5 + $0x300] sm:$0xff]
        %v5209 = vld [vmem:[%s5 + $0x308] sm:$0xff]
        %v5210 = vld [vmem:[%s5 + $0x310] sm:$0xff]
        %v5211 = vld [vmem:[%s5 + $0x318] sm:$0xff]
        %v5212 = vld [vmem:[%s5 + $0x320] sm:$0xff]
        %v5213 = vld [vmem:[%s5 + $0x328] sm:$0xff]
        %v5214 = vld [vmem:[%s5 + $0x330] sm:$0xff]
        %v5215 = vld [vmem:[%s5 + $0x338] sm:$0xff]
        %v5224 = vunpack.c.l.b16 %v5208
        %v5225 = vunpack.c.h.b16 %v5208
        %v5226 = vunpack.c.l.b16 %v5209
        %v5227 = vunpack.c.h.b16 %v5209
        %v5228 = vunpack.c.l.b16 %v5210
        %v5229 = vunpack.c.h.b16 %v5210
        %v5230 = vunpack.c.l.b16 %v5211
        %v5231 = vunpack.c.h.b16 %v5211
        %v5232 = vunpack.c.l.b16 %v5212
        %v5233 = vunpack.c.h.b16 %v5212
        %v5234 = vunpack.c.l.b16 %v5213
        %v5235 = vunpack.c.h.b16 %v5213
        %v5236 = vunpack.c.l.b16 %v5214
        %v5237 = vunpack.c.h.b16 %v5214
        %v5238 = vunpack.c.l.b16 %v5215
        %v5239 = vunpack.c.h.b16 %v5215
        %v5240 = vpack.c.b16 %v5226, %v5224
        %v5241 = vpack.c.b16 %v5227, %v5225
        %v5242 = vpack.c.b16 %v5230, %v5228
        %v5243 = vpack.c.b16 %v5231, %v5229
        %v5244 = vpack.c.b16 %v5234, %v5232
        %v5245 = vpack.c.b16 %v5235, %v5233
        %v5246 = vpack.c.b16 %v5238, %v5236
        %v5247 = vpack.c.b16 %v5239, %v5237
        %v5257 = vsel %vm1320, %v4191, 0
        %5259 = vmatpush.bf16.msra.mxu0 0
        %5260 = vmatpush.bf16.msra.mxu0 0
        %5261 = vmatpush.bf16.msra.mxu0 0
        %5262 = vmatpush.bf16.msra.mxu0 0
        %5263 = vmatpush.bf16.msra.mxu0 %v5246
        %5264 = vmatpush.bf16.msra.mxu0 %v5244
        %5265 = vmatpush.bf16.msra.mxu0 %v5242
        %5266 = vmatpush.bf16.msra.mxu0 %v5240
        %5267 = vmatmul.bf16.gmra.mxu0 %v5257
        %v5268 = vpop.f32.mrf.mxu0
        %v5269 = vadd.f32 0.0, %v5268
        %v5270 = vpop.f32.mrf.mxu0
        %5271 = vdwg.mxu0
        %5272 = vmatpush.bf16.msra.mxu0 0
        %5273 = vmatpush.bf16.msra.mxu0 0
        %5274 = vmatpush.bf16.msra.mxu0 0
        %5275 = vmatpush.bf16.msra.mxu0 0
        %5276 = vmatpush.bf16.msra.mxu0 %v5247
        %5277 = vmatpush.bf16.msra.mxu0 %v5245
        %5278 = vmatpush.bf16.msra.mxu0 %v5243
        %5279 = vmatpush.bf16.msra.mxu0 %v5241
        %5280 = vmatmul.bf16.gmra.mxu0 %v5257
        %v5281 = vpop.f32.mrf.mxu0
        %v5282 = vadd.f32 0.0, %v5281
        %v5283 = vpop.f32.mrf.mxu0
        %5284 = vdwg.mxu0
        %v5287 = vrot.slane %v5282, 7
        %v5288 = vsel %vm4273, %v5269, %v5287
        %v5290 = vadd.f32 %v5207, %v5288
        %v5291 = vld [vmem:[%s5 + $0x340] sm:$0xff]
        %v5292 = vld [vmem:[%s5 + $0x348] sm:$0xff]
        %v5293 = vld [vmem:[%s5 + $0x350] sm:$0xff]
        %v5294 = vld [vmem:[%s5 + $0x358] sm:$0xff]
        %v5295 = vld [vmem:[%s5 + $0x360] sm:$0xff]
        %v5296 = vld [vmem:[%s5 + $0x368] sm:$0xff]
        %v5297 = vld [vmem:[%s5 + $0x370] sm:$0xff]
        %v5298 = vld [vmem:[%s5 + $0x378] sm:$0xff]
        %v5300 = vunpack.c.l.b16 %v4191
        %v5301 = vpack.c.b16 %v5300, %v5300
        %v5302 = vrot.slane %v5301, 1
        %v5311 = vunpack.c.l.b16 %v5291
        %v5312 = vunpack.c.h.b16 %v5291
        %v5313 = vunpack.c.l.b16 %v5292
        %v5314 = vunpack.c.h.b16 %v5292
        %v5315 = vunpack.c.l.b16 %v5293
        %v5316 = vunpack.c.h.b16 %v5293
        %v5317 = vunpack.c.l.b16 %v5294
        %v5318 = vunpack.c.h.b16 %v5294
        %v5319 = vunpack.c.l.b16 %v5295
        %v5320 = vunpack.c.h.b16 %v5295
        %v5321 = vunpack.c.l.b16 %v5296
        %v5322 = vunpack.c.h.b16 %v5296
        %v5323 = vunpack.c.l.b16 %v5297
        %v5324 = vunpack.c.h.b16 %v5297
        %v5325 = vunpack.c.l.b16 %v5298
        %v5326 = vunpack.c.h.b16 %v5298
        %v5327 = vpack.c.b16 %v5313, %v5311
        %v5328 = vpack.c.b16 %v5314, %v5312
        %v5329 = vpack.c.b16 %v5317, %v5315
        %v5330 = vpack.c.b16 %v5318, %v5316
        %v5331 = vpack.c.b16 %v5321, %v5319
        %v5332 = vpack.c.b16 %v5322, %v5320
        %v5333 = vpack.c.b16 %v5325, %v5323
        %v5334 = vpack.c.b16 %v5326, %v5324
        %v5344 = vsel %vm1320, %v5302, 0
        %5346 = vmatpush.bf16.msra.mxu0 0
        %5347 = vmatpush.bf16.msra.mxu0 0
        %5348 = vmatpush.bf16.msra.mxu0 0
        %5349 = vmatpush.bf16.msra.mxu0 0
        %5350 = vmatpush.bf16.msra.mxu0 %v5333
        %5351 = vmatpush.bf16.msra.mxu0 %v5331
        %5352 = vmatpush.bf16.msra.mxu0 %v5329
        %5353 = vmatpush.bf16.msra.mxu0 %v5327
        %5354 = vmatmul.bf16.gmra.mxu0 %v5344
        %v5355 = vpop.f32.mrf.mxu0
        %v5356 = vadd.f32 0.0, %v5355
        %v5357 = vpop.f32.mrf.mxu0
        %5358 = vdwg.mxu0
        %5359 = vmatpush.bf16.msra.mxu0 0
        %5360 = vmatpush.bf16.msra.mxu0 0
        %5361 = vmatpush.bf16.msra.mxu0 0
        %5362 = vmatpush.bf16.msra.mxu0 0
        %5363 = vmatpush.bf16.msra.mxu0 %v5334
        %5364 = vmatpush.bf16.msra.mxu0 %v5332
        %5365 = vmatpush.bf16.msra.mxu0 %v5330
        %5366 = vmatpush.bf16.msra.mxu0 %v5328
        %5367 = vmatmul.bf16.gmra.mxu0 %v5344
        %v5368 = vpop.f32.mrf.mxu0
        %v5369 = vadd.f32 0.0, %v5368
        %v5370 = vpop.f32.mrf.mxu0
        %5371 = vdwg.mxu0
        %v5374 = vrot.slane %v5369, 7
        %v5375 = vsel %vm4273, %v5356, %v5374
        %v5377 = vadd.f32 %v5290, %v5375
        %v5378 = vld [vmem:[%s5 + $0x380] sm:$0xff]
        %v5379 = vld [vmem:[%s5 + $0x388] sm:$0xff]
        %v5380 = vld [vmem:[%s5 + $0x390] sm:$0xff]
        %v5381 = vld [vmem:[%s5 + $0x398] sm:$0xff]
        %v5382 = vld [vmem:[%s5 + $0x3a0] sm:$0xff]
        %v5383 = vld [vmem:[%s5 + $0x3a8] sm:$0xff]
        %v5384 = vld [vmem:[%s5 + $0x3b0] sm:$0xff]
        %v5385 = vld [vmem:[%s5 + $0x3b8] sm:$0xff]
        %v5386 = vrot.slane %v5301, 2
        %v5395 = vunpack.c.l.b16 %v5378
        %v5396 = vunpack.c.h.b16 %v5378
        %v5397 = vunpack.c.l.b16 %v5379
        %v5398 = vunpack.c.h.b16 %v5379
        %v5399 = vunpack.c.l.b16 %v5380
        %v5400 = vunpack.c.h.b16 %v5380
        %v5401 = vunpack.c.l.b16 %v5381
        %v5402 = vunpack.c.h.b16 %v5381
        %v5403 = vunpack.c.l.b16 %v5382
        %v5404 = vunpack.c.h.b16 %v5382
        %v5405 = vunpack.c.l.b16 %v5383
        %v5406 = vunpack.c.h.b16 %v5383
        %v5407 = vunpack.c.l.b16 %v5384
        %v5408 = vunpack.c.h.b16 %v5384
        %v5409 = vunpack.c.l.b16 %v5385
        %v5410 = vunpack.c.h.b16 %v5385
        %v5411 = vpack.c.b16 %v5397, %v5395
        %v5412 = vpack.c.b16 %v5398, %v5396
        %v5413 = vpack.c.b16 %v5401, %v5399
        %v5414 = vpack.c.b16 %v5402, %v5400
        %v5415 = vpack.c.b16 %v5405, %v5403
        %v5416 = vpack.c.b16 %v5406, %v5404
        %v5417 = vpack.c.b16 %v5409, %v5407
        %v5418 = vpack.c.b16 %v5410, %v5408
        %v5428 = vsel %vm1320, %v5386, 0
        %5430 = vmatpush.bf16.msra.mxu0 0
        %5431 = vmatpush.bf16.msra.mxu0 0
        %5432 = vmatpush.bf16.msra.mxu0 0
        %5433 = vmatpush.bf16.msra.mxu0 0
        %5434 = vmatpush.bf16.msra.mxu0 %v5417
        %5435 = vmatpush.bf16.msra.mxu0 %v5415
        %5436 = vmatpush.bf16.msra.mxu0 %v5413
        %5437 = vmatpush.bf16.msra.mxu0 %v5411
        %5438 = vmatmul.bf16.gmra.mxu0 %v5428
        %v5439 = vpop.f32.mrf.mxu0
        %v5440 = vadd.f32 0.0, %v5439
        %v5441 = vpop.f32.mrf.mxu0
        %5442 = vdwg.mxu0
        %5443 = vmatpush.bf16.msra.mxu0 0
        %5444 = vmatpush.bf16.msra.mxu0 0
        %5445 = vmatpush.bf16.msra.mxu0 0
        %5446 = vmatpush.bf16.msra.mxu0 0
        %5447 = vmatpush.bf16.msra.mxu0 %v5418
        %5448 = vmatpush.bf16.msra.mxu0 %v5416
        %5449 = vmatpush.bf16.msra.mxu0 %v5414
        %5450 = vmatpush.bf16.msra.mxu0 %v5412
        %5451 = vmatmul.bf16.gmra.mxu0 %v5428
        %v5452 = vpop.f32.mrf.mxu0
        %v5453 = vadd.f32 0.0, %v5452
        %v5454 = vpop.f32.mrf.mxu0
        %5455 = vdwg.mxu0
        %v5458 = vrot.slane %v5453, 7
        %v5459 = vsel %vm4273, %v5440, %v5458
        %v5461 = vadd.f32 %v5377, %v5459
        %v5462 = vld [vmem:[%s5 + $0x3c0] sm:$0xff]
        %v5463 = vld [vmem:[%s5 + $0x3c8] sm:$0xff]
        %v5464 = vld [vmem:[%s5 + $0x3d0] sm:$0xff]
        %v5465 = vld [vmem:[%s5 + $0x3d8] sm:$0xff]
        %v5466 = vld [vmem:[%s5 + $0x3e0] sm:$0xff]
        %v5467 = vld [vmem:[%s5 + $0x3e8] sm:$0xff]
        %v5468 = vld [vmem:[%s5 + $0x3f0] sm:$0xff]
        %v5469 = vld [vmem:[%s5 + $0x3f8] sm:$0xff]
        %v5470 = vrot.slane %v5301, 3
        %v5479 = vunpack.c.l.b16 %v5462
        %v5480 = vunpack.c.h.b16 %v5462
        %v5481 = vunpack.c.l.b16 %v5463
        %v5482 = vunpack.c.h.b16 %v5463
        %v5483 = vunpack.c.l.b16 %v5464
        %v5484 = vunpack.c.h.b16 %v5464
        %v5485 = vunpack.c.l.b16 %v5465
        %v5486 = vunpack.c.h.b16 %v5465
        %v5487 = vunpack.c.l.b16 %v5466
        %v5488 = vunpack.c.h.b16 %v5466
        %v5489 = vunpack.c.l.b16 %v5467
        %v5490 = vunpack.c.h.b16 %v5467
        %v5491 = vunpack.c.l.b16 %v5468
        %v5492 = vunpack.c.h.b16 %v5468
        %v5493 = vunpack.c.l.b16 %v5469
        %v5494 = vunpack.c.h.b16 %v5469
        %v5495 = vpack.c.b16 %v5481, %v5479
        %v5496 = vpack.c.b16 %v5482, %v5480
        %v5497 = vpack.c.b16 %v5485, %v5483
        %v5498 = vpack.c.b16 %v5486, %v5484
        %v5499 = vpack.c.b16 %v5489, %v5487
        %v5500 = vpack.c.b16 %v5490, %v5488
        %v5501 = vpack.c.b16 %v5493, %v5491
        %v5502 = vpack.c.b16 %v5494, %v5492
        %v5512 = vsel %vm1320, %v5470, 0
        %5514 = vmatpush.bf16.msra.mxu0 0
        %5515 = vmatpush.bf16.msra.mxu0 0
        %5516 = vmatpush.bf16.msra.mxu0 0
        %5517 = vmatpush.bf16.msra.mxu0 0
        %5518 = vmatpush.bf16.msra.mxu0 %v5501
        %5519 = vmatpush.bf16.msra.mxu0 %v5499
        %5520 = vmatpush.bf16.msra.mxu0 %v5497
        %5521 = vmatpush.bf16.msra.mxu0 %v5495
        %5522 = vmatmul.bf16.gmra.mxu0 %v5512
        %v5523 = vpop.f32.mrf.mxu0
        %v5524 = vadd.f32 0.0, %v5523
        %v5525 = vpop.f32.mrf.mxu0
        %5526 = vdwg.mxu0
        %5527 = vmatpush.bf16.msra.mxu0 0
        %5528 = vmatpush.bf16.msra.mxu0 0
        %5529 = vmatpush.bf16.msra.mxu0 0
        %5530 = vmatpush.bf16.msra.mxu0 0
        %5531 = vmatpush.bf16.msra.mxu0 %v5502
        %5532 = vmatpush.bf16.msra.mxu0 %v5500
        %5533 = vmatpush.bf16.msra.mxu0 %v5498
        %5534 = vmatpush.bf16.msra.mxu0 %v5496
        %5535 = vmatmul.bf16.gmra.mxu0 %v5512
        %v5536 = vpop.f32.mrf.mxu0
        %v5537 = vadd.f32 0.0, %v5536
        %v5538 = vpop.f32.mrf.mxu0
        %5539 = vdwg.mxu0
        %v5542 = vrot.slane %v5537, 7
        %v5543 = vsel %vm4273, %v5524, %v5542
        %v5545 = vadd.f32 %v5461, %v5543
        %v5546 = vmax.f32 %v5545, 0.0
        %v5547 = vpack.c.bf16 %v5546, %v5546
        %v5548 = vld [vmem:[%s7] sm:$0xf]
        %v5549 = vld [vmem:[%s7 + $0x4] sm:$0xf]
        %v5550 = vld [vmem:[%s7 + $0x8] sm:$0xf]
        %v5551 = vld [vmem:[%s7 + $0xc] sm:$0xf]
        %v5552 = vld [vmem:[%s7 + $0x10] sm:$0xf]
        %v5553 = vld [vmem:[%s7 + $0x14] sm:$0xf]
        %v5554 = vld [vmem:[%s7 + $0x18] sm:$0xf]
        %v5555 = vld [vmem:[%s7 + $0x1c] sm:$0xf]
        %v5556 = vld [vmem:[%s7 + $0x20] sm:$0xf]
        %v5557 = vld [vmem:[%s7 + $0x24] sm:$0xf]
        %v5558 = vld [vmem:[%s7 + $0x28] sm:$0xf]
        %v5559 = vld [vmem:[%s7 + $0x2c] sm:$0xf]
        %v5560 = vld [vmem:[%s7 + $0x30] sm:$0xf]
        %v5561 = vld [vmem:[%s7 + $0x34] sm:$0xf]
        %v5562 = vld [vmem:[%s7 + $0x38] sm:$0xf]
        %v5563 = vld [vmem:[%s7 + $0x3c] sm:$0xf]
        %v5564 = vld [vmem:[%s8] sm:$0x1]
        %v5581 = vunpack.c.l.b16 %v5548
        %v5582 = vunpack.c.l.b16 %v5549
        %v5583 = vunpack.c.l.b16 %v5550
        %v5584 = vunpack.c.l.b16 %v5551
        %v5585 = vunpack.c.l.b16 %v5552
        %v5586 = vunpack.c.l.b16 %v5553
        %v5587 = vunpack.c.l.b16 %v5554
        %v5588 = vunpack.c.l.b16 %v5555
        %v5589 = vunpack.c.l.b16 %v5556
        %v5590 = vunpack.c.l.b16 %v5557
        %v5591 = vunpack.c.l.b16 %v5558
        %v5592 = vunpack.c.l.b16 %v5559
        %v5593 = vunpack.c.l.b16 %v5560
        %v5594 = vunpack.c.l.b16 %v5561
        %v5595 = vunpack.c.l.b16 %v5562
        %v5596 = vunpack.c.l.b16 %v5563
        %v5597 = vpack.c.b16 %v5582, %v5581
        %v5598 = vpack.c.b16 %v5584, %v5583
        %v5599 = vpack.c.b16 %v5586, %v5585
        %v5600 = vpack.c.b16 %v5588, %v5587
        %v5601 = vpack.c.b16 %v5590, %v5589
        %v5602 = vpack.c.b16 %v5592, %v5591
        %v5603 = vpack.c.b16 %v5594, %v5593
        %v5604 = vpack.c.b16 %v5596, %v5595
        %5613 = vmatpush.bf16.msra.mxu0 %v5604
        %5614 = vmatpush.bf16.msra.mxu0 %v5603
        %5615 = vmatpush.bf16.msra.mxu0 %v5602
        %5616 = vmatpush.bf16.msra.mxu0 %v5601
        %5617 = vmatpush.bf16.msra.mxu0 %v5600
        %5618 = vmatpush.bf16.msra.mxu0 %v5599
        %5619 = vmatpush.bf16.msra.mxu0 %v5598
        %5620 = vmatpush.bf16.msra.mxu0 %v5597
        %5621 = vmatmul.bf16.gmra.mxu0 %v5547
        %v5622 = vpop.f32.mrf.mxu0
        %v5623 = vadd.f32 %v5564, %v5622
        %v5624 = vpop.f32.mrf.mxu0
        %5625 = vdwg.mxu0
        %v5626 = vmax.f32 %v5623, 0.0
        %v5627 = vpack.c.bf16 %v5626, %v5626
        %v5628 = vld [vmem:[%s9] sm:$0xf]
        %v5629 = vld [vmem:[%s9 + $0x4] sm:$0xf]
        %v5630 = vld [vmem:[%s9 + $0x8] sm:$0xf]
        %v5631 = vld [vmem:[%s9 + $0xc] sm:$0xf]
        %v5632 = vld [vmem:[%s9 + $0x10] sm:$0xf]
        %v5633 = vld [vmem:[%s9 + $0x14] sm:$0xf]
        %v5634 = vld [vmem:[%s9 + $0x18] sm:$0xf]
        %v5635 = vld [vmem:[%s9 + $0x1c] sm:$0xf]
        %v5636 = vld [vmem:[%s9 + $0x20] sm:$0xf]
        %v5637 = vld [vmem:[%s9 + $0x24] sm:$0xf]
        %v5638 = vld [vmem:[%s9 + $0x28] sm:$0xf]
        %v5639 = vld [vmem:[%s9 + $0x2c] sm:$0xf]
        %v5640 = vld [vmem:[%s9 + $0x30] sm:$0xf]
        %v5641 = vld [vmem:[%s9 + $0x34] sm:$0xf]
        %v5642 = vld [vmem:[%s9 + $0x38] sm:$0xf]
        %v5643 = vld [vmem:[%s9 + $0x3c] sm:$0xf]
        %v5644 = vld [vmem:[%s10] sm:$0x1]
        %v5661 = vunpack.c.l.b16 %v5628
        %v5662 = vunpack.c.l.b16 %v5629
        %v5663 = vunpack.c.l.b16 %v5630
        %v5664 = vunpack.c.l.b16 %v5631
        %v5665 = vunpack.c.l.b16 %v5632
        %v5666 = vunpack.c.l.b16 %v5633
        %v5667 = vunpack.c.l.b16 %v5634
        %v5668 = vunpack.c.l.b16 %v5635
        %v5669 = vunpack.c.l.b16 %v5636
        %v5670 = vunpack.c.l.b16 %v5637
        %v5671 = vunpack.c.l.b16 %v5638
        %v5672 = vunpack.c.l.b16 %v5639
        %v5673 = vunpack.c.l.b16 %v5640
        %v5674 = vunpack.c.l.b16 %v5641
        %v5675 = vunpack.c.l.b16 %v5642
        %v5676 = vunpack.c.l.b16 %v5643
        %v5677 = vpack.c.b16 %v5662, %v5661
        %v5678 = vpack.c.b16 %v5664, %v5663
        %v5679 = vpack.c.b16 %v5666, %v5665
        %v5680 = vpack.c.b16 %v5668, %v5667
        %v5681 = vpack.c.b16 %v5670, %v5669
        %v5682 = vpack.c.b16 %v5672, %v5671
        %v5683 = vpack.c.b16 %v5674, %v5673
        %v5684 = vpack.c.b16 %v5676, %v5675
        %5693 = vmatpush.bf16.msra.mxu0 %v5684
        %5694 = vmatpush.bf16.msra.mxu0 %v5683
        %5695 = vmatpush.bf16.msra.mxu0 %v5682
        %5696 = vmatpush.bf16.msra.mxu0 %v5681
        %5697 = vmatpush.bf16.msra.mxu0 %v5680
        %5698 = vmatpush.bf16.msra.mxu0 %v5679
        %5699 = vmatpush.bf16.msra.mxu0 %v5678
        %5700 = vmatpush.bf16.msra.mxu0 %v5677
        %5701 = vmatmul.bf16.gmra.mxu0 %v5627
        %v5702 = vpop.f32.mrf.mxu0
        %v5703 = vadd.f32 %v5644, %v5702
        %v5704 = vpop.f32.mrf.mxu0
        %5705 = vdwg.mxu0
        %v5706 = vsel %vm4273, %v5703, -inf
        %5707 = vmax.xlane.f32.xlu0 %v5706
        %v5708 = vpop.xlane.xlu0 %5707
        %v5709 = vsub.f32 %v5703, %v5708
        %v5710 = vmul.f32 %v5709, 1.442695
        %v5711 = vpow.pop %v5710
        %v5712 = vsel %vm4273, %v5711, 0.0
        %5713 = vadd.xlane.f32.xlu0 %v5712
        %v5714 = vpop.xlane.xlu0 %5713
        %v5715 = vlog2.pop %v5714
        %v5716 = vmul.f32 %v5715, 0.6931472
        %v5717 = vadd.f32 %v5708, %v5716
        %v5718 = vsub.f32 %v5703, %v5717
        %5719 = vst [vmem:[%s463] sm:$0x1] %v5718
        %v5721 = vrot.slane %v5545, 1
        %v5723 = vmax.f32 %v5721, 0.0
        %v5724 = vpack.c.bf16 %v5723, %v5723
        %v5725 = vld [vmem:[%s11] sm:$0xf]
        %v5726 = vld [vmem:[%s11 + $0x4] sm:$0xf]
        %v5727 = vld [vmem:[%s11 + $0x8] sm:$0xf]
        %v5728 = vld [vmem:[%s11 + $0xc] sm:$0xf]
        %v5729 = vld [vmem:[%s11 + $0x10] sm:$0xf]
        %v5730 = vld [vmem:[%s11 + $0x14] sm:$0xf]
        %v5731 = vld [vmem:[%s11 + $0x18] sm:$0xf]
        %v5732 = vld [vmem:[%s11 + $0x1c] sm:$0xf]
        %v5733 = vld [vmem:[%s11 + $0x20] sm:$0xf]
        %v5734 = vld [vmem:[%s11 + $0x24] sm:$0xf]
        %v5735 = vld [vmem:[%s11 + $0x28] sm:$0xf]
        %v5736 = vld [vmem:[%s11 + $0x2c] sm:$0xf]
        %v5737 = vld [vmem:[%s11 + $0x30] sm:$0xf]
        %v5738 = vld [vmem:[%s11 + $0x34] sm:$0xf]
        %v5739 = vld [vmem:[%s11 + $0x38] sm:$0xf]
        %v5740 = vld [vmem:[%s11 + $0x3c] sm:$0xf]
        %v5741 = vld [vmem:[%s12] sm:$0x1]
        %v5758 = vunpack.c.l.b16 %v5725
        %v5759 = vunpack.c.l.b16 %v5726
        %v5760 = vunpack.c.l.b16 %v5727
        %v5761 = vunpack.c.l.b16 %v5728
        %v5762 = vunpack.c.l.b16 %v5729
        %v5763 = vunpack.c.l.b16 %v5730
        %v5764 = vunpack.c.l.b16 %v5731
        %v5765 = vunpack.c.l.b16 %v5732
        %v5766 = vunpack.c.l.b16 %v5733
        %v5767 = vunpack.c.l.b16 %v5734
        %v5768 = vunpack.c.l.b16 %v5735
        %v5769 = vunpack.c.l.b16 %v5736
        %v5770 = vunpack.c.l.b16 %v5737
        %v5771 = vunpack.c.l.b16 %v5738
        %v5772 = vunpack.c.l.b16 %v5739
        %v5773 = vunpack.c.l.b16 %v5740
        %v5774 = vpack.c.b16 %v5759, %v5758
        %v5775 = vpack.c.b16 %v5761, %v5760
        %v5776 = vpack.c.b16 %v5763, %v5762
        %v5777 = vpack.c.b16 %v5765, %v5764
        %v5778 = vpack.c.b16 %v5767, %v5766
        %v5779 = vpack.c.b16 %v5769, %v5768
        %v5780 = vpack.c.b16 %v5771, %v5770
        %v5781 = vpack.c.b16 %v5773, %v5772
        %5790 = vmatpush.bf16.msra.mxu0 %v5781
        %5791 = vmatpush.bf16.msra.mxu0 %v5780
        %5792 = vmatpush.bf16.msra.mxu0 %v5779
        %5793 = vmatpush.bf16.msra.mxu0 %v5778
        %5794 = vmatpush.bf16.msra.mxu0 %v5777
        %5795 = vmatpush.bf16.msra.mxu0 %v5776
        %5796 = vmatpush.bf16.msra.mxu0 %v5775
        %5797 = vmatpush.bf16.msra.mxu0 %v5774
        %5798 = vmatmul.bf16.gmra.mxu0 %v5724
        %v5799 = vpop.f32.mrf.mxu0
        %v5800 = vadd.f32 %v5741, %v5799
        %v5801 = vpop.f32.mrf.mxu0
        %5802 = vdwg.mxu0
        %v5803 = vsel %vm4273, %v5800, -inf
        %5804 = vmax.xlane.f32.xlu0 %v5803
        %v5805 = vpop.xlane.xlu0 %5804
        %v5806 = vsub.f32 %v5800, %v5805
        %v5807 = vmul.f32 %v5806, 1.442695
        %v5808 = vpow.pop %v5807
        %v5809 = vsel %vm4273, %v5808, 0.0
        %5810 = vadd.xlane.f32.xlu0 %v5809
        %v5811 = vpop.xlane.xlu0 %5810
        %v5812 = vlog2.pop %v5811
        %v5813 = vmul.f32 %v5812, 0.6931472
        %v5814 = vadd.f32 %v5805, %v5813
        %v5815 = vsub.f32 %v5800, %v5814
        %5816 = vst [vmem:[%s469] sm:$0x1] %v5815
        %s5817 = sand.u32 %s318, 1
        %s5818 = scalar_lea.sflag [#allocation4], %s5817
        %s5819 = sand.u32 %s318, 1
        %s5820 = scalar_lea.vmem [#allocation3], %s5819
        %s5821 = sand.u32 %s344, 1
        %s5822 = scalar_lea.sflag [#allocation6], %s5821
        %s5823 = sand.u32 %s344, 1
        %s5824 = scalar_lea.vmem [#allocation5], %s5823
        // Predicated region
        $region73: #{_lambda_.1} parent=71 // pred_check
          %p5825 = pneg %p328
        $region74: #{_lambda_.1} parent=71 // pred_check_branch
          %5827 = sbr.rel (%p5825) target = $region76
        $region75: #{_lambda_.1} parent=71 // pred_region
          %5829 = vsyncadd %s5818, 0
          %s5830 = scalar_lea.hbm %s13, %s32
          %s5832 = sshll.u32 %s5820, 4
          %s5833 = int_to_ptr.vmem [resolvable:$true] %s5832
          %s5834 = sshll.u32 %s5830, 4
          %s5835 = int_to_ptr.hbm [resolvable:$true] %s5834
          %5837 = dma.vmem_to_hbm [thread:$0]  %s5833, 16, %s5835, %s5818
        $region76: #{_lambda_.1} parent=71 // pred_fallthru
          _
        // Predicated region
        $region77: #{_lambda_.1} parent=71 // pred_check
          %p5838 = pneg %p354
        $region78: #{_lambda_.1} parent=71 // pred_check_branch
          %5840 = sbr.rel (%p5838) target = $region80
        $region79: #{_lambda_.1} parent=71 // pred_region
          %5842 = vsyncadd %s5822, 0
          %s5843 = scalar_lea.hbm %s14, %s32
          %s5845 = sshll.u32 %s5824, 4
          %s5846 = int_to_ptr.vmem [resolvable:$true] %s5845
          %s5847 = sshll.u32 %s5843, 4
          %s5848 = int_to_ptr.hbm [resolvable:$true] %s5847
          %5850 = dma.vmem_to_hbm [thread:$0]  %s5846, 16, %s5848, %s5822
        $region80: #{_lambda_.1} parent=71 // pred_fallthru
          _
      $region72: #{_lambda_.1} parent=5 // pred_fallthru
        _
      %p5851 = scmp.le.s32.totalorder 2, %s27
      // Predicated region
      $region81: #{_lambda_.1} parent=5 // pred_check
        %p5852 = pneg %p5851
      $region82: #{_lambda_.1} parent=5 // pred_check_branch
        %5854 = sbr.rel (%p5852) target = $region84
      $region83: #{_lambda_.1} parent=5 // pred_region
        %s5855 = ssub.s32 %s27, 2
        // Predicated region
        $region85: #{_lambda_.1} parent=83 // pred_check
          %p5856 = pneg %p334
        $region86: #{_lambda_.1} parent=83 // pred_check_branch
          %5858 = sbr.rel (%p5856) target = $region88
        $region87: #{_lambda_.1} parent=83 // pred_region
          %s5859 = sand.u32 %s319, 1
          %s5860 = scalar_lea.sflag [#allocation4], %s5859
          %s5861 = sand.u32 %s319, 1
          %s5862 = scalar_lea.vmem [#allocation3], %s5861
          %5864 = dma.done %s5860, 16
        $region88: #{_lambda_.1} parent=83 // pred_fallthru
          _
        // Predicated region
        $region89: #{_lambda_.1} parent=83 // pred_check
          %p5865 = pneg %p360
        $region90: #{_lambda_.1} parent=83 // pred_check_branch
          %5867 = sbr.rel (%p5865) target = $region92
        $region91: #{_lambda_.1} parent=83 // pred_region
          %s5868 = sand.u32 %s345, 1
          %s5869 = scalar_lea.sflag [#allocation6], %s5868
          %s5870 = sand.u32 %s345, 1
          %s5871 = scalar_lea.vmem [#allocation5], %s5870
          %5873 = dma.done %s5869, 16
        $region92: #{_lambda_.1} parent=83 // pred_fallthru
          _
      $region84: #{_lambda_.1} parent=5 // pred_fallthru
        _
    $region6: #{_lambda_.1} parent=1 // loop_footer
      %s31 = sadd.s32 1, %s27
    $region7: #{_lambda_.1} parent=1 // loop_footer_branch
      %26 = sbr.rel target = $region3
    $region8: #{_lambda_.1} parent=1 // loop_exit
      _
    %5874 = vsyncpa [#allocation4], 1
    %s5875 = scalar_lea.sflag [#allocation4], 1
    %5876 = vsyncpa %s5875, 1
    %5877 = vsyncpa [#allocation6], 1
    %s5878 = scalar_lea.sflag [#allocation6], 1
    %5879 = vsyncpa %s5878, 1

</llo_original>
